<compile_context>
chip_gen: v7x
topology: tpu7x:2x2x1
jax: 0.10.0
libtpu: 0.0.40
codegen_flags: <defaults>
</compile_context>

<pallas_src>
import jax
import jax.numpy as jnp
import numpy as np
from jax.experimental import pallas as pl
from jax.experimental.pallas import tpu as pltpu


# ----------------------------------------------------------------------------
# 3x3 stride-1 depthwise conv + ReLU6 on a flat (S=H*W, C) activation.
# One aligned store of the activation + 2 aligned halo-zero stores, then 8
# statically shifted loads; W-wrap taps are masked with a (S,1) iota mask.
# ----------------------------------------------------------------------------
def _dw3x3(h, pad_ref, wd_ref, bd_ref, S, W, PAD, mw_l, mw_r):
    C = h.shape[-1]
    pad_ref[0:PAD, :] = jnp.zeros((PAD, C), jnp.float32)
    pad_ref[PAD + S:PAD + S + PAD, :] = jnp.zeros((PAD, C), jnp.float32)
    pad_ref[PAD:PAD + S, :] = h                                   # aligned (PAD % 8 == 0)

    acc = None
    for kh in range(3):
        for kw in range(3):
            tap = kh * 3 + kw
            if kh == 1 and kw == 1:
                v = h                                             # centre tap: live value
            else:
                off = (kh - 1) * W + (kw - 1)
                v = pad_ref[PAD + off:PAD + off + S, :]           # shifted load
                if kw == 0:                                       # would wrap to (h, W-1)
                    v = jnp.where(mw_l, v, 0.0)
                elif kw == 2:                                     # would wrap to (h, 0)
                    v = jnp.where(mw_r, v, 0.0)
            contrib = v * wd_ref[tap:tap + 1, :]
            acc = contrib if acc is None else acc + contrib
    return jnp.clip(acc + bd_ref[...], 0.0, 6.0)


# ----------------------------------------------------------------------------
# Kernel 1: fused features  (block1 -> block2 (+res) -> tail 1x1 ConvBNReLU6),
# one grid step per image, everything resident in VMEM.
# ----------------------------------------------------------------------------
def _make_features_kernel(S, W, PAD):
    def kernel(x_ref,
               we1_ref, be1_ref, wd1_ref, bd1_ref, wp1_ref, bp1_ref,
               we2_ref, be2_ref, wd2_ref, bd2_ref, wp2_ref, bp2_ref,
               wl_ref, bl_ref,
               o_ref, pad1_ref, pad2_ref):
        f32 = jnp.float32
        bf16 = jnp.bfloat16

        x = x_ref[0].astype(bf16)                                 # (S, Cin)

        wi = jax.lax.broadcasted_iota(jnp.int32, (S, 1), 0) % W
        mw_l = wi != 0
        mw_r = wi != (W - 1)

        # ---- block 1: 1x1 expand (MXU) + ReLU6 -> dw 3x3 (VPU) -> 1x1 project ----
        h = jnp.dot(x, we1_ref[...], preferred_element_type=f32) + be1_ref[...]
        h = jnp.clip(h, 0.0, 6.0)
        d = _dw3x3(h, pad1_ref, wd1_ref, bd1_ref, S, W, PAD, mw_l, mw_r)
        y = jnp.dot(d.astype(bf16), wp1_ref[...],
                    preferred_element_type=f32) + bp1_ref[...]    # (S, Cmid)

        # ---- block 2 (+ residual) ----
        h = jnp.dot(y.astype(bf16), we2_ref[...], preferred_element_type=f32) + be2_ref[...]
        h = jnp.clip(h, 0.0, 6.0)
        d = _dw3x3(h, pad2_ref, wd2_ref, bd2_ref, S, W, PAD, mw_l, mw_r)
        y = jnp.dot(d.astype(bf16), wp2_ref[...],
                    preferred_element_type=f32) + bp2_ref[...] + y

        # ---- tail 1x1 ConvBNReLU6 (features[-1]) ----
        t = jnp.dot(y.astype(bf16), wl_ref[...], preferred_element_type=f32) + bl_ref[...]
        o_ref[0] = jnp.clip(t, 0.0, 6.0).astype(o_ref.dtype)

    return kernel


def fused_features(x3d, kp, N, S, W, PAD):
    Cin = x3d.shape[-1]
    C1h = kp["we1"].shape[1]
    C2h = kp["we2"].shape[1]
    C_last = kp["wl"].shape[1]

    weights = [kp["we1"], kp["be1"], kp["wd1"], kp["bd1"], kp["wp1"], kp["bp1"],
               kp["we2"], kp["be2"], kp["wd2"], kp["bd2"], kp["wp2"], kp["bp2"],
               kp["wl"], kp["bl"]]
    w_specs = [pl.BlockSpec(w.shape, lambda b: (0, 0)) for w in weights]

    return pl.pallas_call(
        _make_features_kernel(S, W, PAD),
        grid=(N,),
        out_shape=jax.ShapeDtypeStruct((N, S, C_last), jnp.bfloat16),
        in_specs=[pl.BlockSpec((1, S, Cin), lambda b: (b, 0, 0))] + w_specs,
        out_specs=pl.BlockSpec((1, S, C_last), lambda b: (b, 0, 0)),
        scratch_shapes=[pltpu.VMEM((S + 2 * PAD, C1h), jnp.float32),
                        pltpu.VMEM((S + 2 * PAD, C2h), jnp.float32)],
        compiler_params=pltpu.CompilerParams(dimension_semantics=("parallel",)),
    )(x3d, *weights)


# ----------------------------------------------------------------------------
# Kernel 2: fused classifier  (fc1 -> out1 ; ReLU -> fc2 -> out2), two outputs.
# out1 never leaves VMEM before feeding fc2.
# ----------------------------------------------------------------------------
def _classifier_kernel(x_ref, w1_ref, b1_ref, w2_ref, b2_ref, o1_ref, o2_ref):
    xq = x_ref[...].astype(jnp.bfloat16)
    y1 = jnp.dot(xq, w1_ref[...], preferred_element_type=jnp.float32) + b1_ref[...]
    o1_ref[...] = y1                                   # output1 = Linear (no activation)
    y2 = jnp.dot(jnp.maximum(y1, 0.0).astype(jnp.bfloat16), w2_ref[...],
                 preferred_element_type=jnp.float32) + b2_ref[...]
    o2_ref[...] = y2                                   # output2 = Linear(ReLU(output1))


def fused_classifier(x_flat, w1, b1, w2, b2):
    Nb = x_flat.shape[0]
    vmem = pl.BlockSpec(memory_space=pltpu.MemorySpace.VMEM)
    return pl.pallas_call(
        _classifier_kernel,
        out_shape=(jax.ShapeDtypeStruct((Nb, w1.shape[1]), jnp.float32),
                   jax.ShapeDtypeStruct((Nb, w2.shape[1]), jnp.float32)),
        in_specs=[vmem] * 5,
        out_specs=(vmem, vmem),
    )(x_flat, w1, b1, w2, b2)


# ----------------------------------------------------------------------------
# Server_Model forward (kernel path).
# ----------------------------------------------------------------------------
def server_model_forward(kp, x_nchw):
    N, Cin, H, W = x_nchw.shape
    S = H * W
    PAD = ((W + 8) // 8) * 8          # halo rows (multiple of 8, >= W+1)

    # Layout once: NCHW (PyTorch) -> flat NHWC rows, channels on the lane axis.
    x3d = jnp.transpose(x_nchw, (0, 2, 3, 1)).astype(jnp.float32).reshape(N, S, Cin)

    feat = fused_features(x3d, kp, N, S, W, PAD)        # (N, S, C_last) bf16

    # Flatten in NHWC order (free XLA reshape on the tiny bf16 handoff); w_fc1 rows
    # were permuted at setup so this matches PyTorch's nn.Flatten on NCHW exactly.
    x_flat = feat.reshape(N, -1)

    # classifier[0]=Dropout (eval identity), [1]=Linear, [2]=ReLU, [3]=Linear
    out1, out2 = fused_classifier(x_flat, kp["w_fc1"], kp["b_fc1"],
                                  kp["w_fc2"], kp["b_fc2"])
    return out1, out2


# ----------------------------------------------------------------------------
# Raw (PyTorch-semantics) parameters and the setup-time kernel transform.
# ----------------------------------------------------------------------------
def init_params(key, cin=12, c_mid=16, c_last=64, spatial=8, hidden=32, num_classes=10):
    """Raw params: weights as (in, out), BN scale/bias separate, w_fc1 rows in
    NCHW-flatten order (what nn.Flatten on NCHW feeds the Linear)."""
    def nrm(k, shape, scale=0.05):
        return scale * jax.random.normal(k, shape, jnp.float32)

    def block_params(k, c_in, c_hid, c_out):
        ks = jax.random.split(k, 9)
        return dict(
            w_exp=nrm(ks[0], (c_in, c_hid)),
            s_exp=1.0 + nrm(ks[1], (c_hid,), 0.1),
            b_exp=nrm(ks[2], (c_hid,)),
            w_dw=nrm(ks[3], (9, c_hid), 0.1),
            s_dw=1.0 + nrm(ks[4], (c_hid,), 0.1),
            b_dw=nrm(ks[5], (c_hid,)),
            w_proj=nrm(ks[6], (c_hid, c_out)),
            s_proj=1.0 + nrm(ks[7], (c_out,), 0.1),
            b_proj=nrm(ks[8], (c_out,)),
        )

    ks = jax.random.split(key, 8)
    flat = c_last * spatial * spatial
    return dict(
        block1=block_params(ks[0], cin, cin * 6, c_mid),
        block2=block_params(ks[1], c_mid, c_mid * 6, c_mid),
        w_last=nrm(ks[2], (c_mid, c_last)),
        s_last=1.0 + nrm(ks[3], (c_last,), 0.1),
        b_last=nrm(ks[4], (c_last,)),
        w_fc1=nrm(ks[5], (flat, hidden)),
        b_fc1=nrm(ks[6], (hidden,)),
        w_fc2=nrm(ks[7], (hidden, num_classes)),
        b_fc2=jnp.zeros((num_classes,), jnp.float32),
    )


def prepare_kernel_params(params, H, W):
    """Fold BN scale into weights, cast matmul weights to bf16 (f32 MXU accumulate),
    keep depthwise weights f32 (VPU), reshape biases for in-kernel broadcast, and
    permute w_fc1 rows from NCHW-flatten order to NHWC-flatten order so the kernel
    path can skip the pre-Flatten transpose."""
    def fold_bf16(w, s):
        return (w * s[None, :]).astype(jnp.bfloat16)

    def prep_block(p, i):
        return {
            f"we{i}": fold_bf16(p["w_exp"], p["s_exp"]),
            f"be{i}": p["b_exp"].reshape(1, -1),
            f"wd{i}": (p["w_dw"] * p["s_dw"][None, :]).astype(jnp.float32),   # (9, C)
            f"bd{i}": p["b_dw"].reshape(1, -1),
            f"wp{i}": fold_bf16(p["w_proj"], p["s_proj"]),
            f"bp{i}": p["b_proj"].reshape(1, -1),
        }

    c_last = params["w_last"].shape[1]
    r = np.arange(H * W * c_last)
    hh = r // (W * c_last)
    ww = (r // c_last) % W
    cc = r % c_last
    perm = cc * (H * W) + hh * W + ww        # NHWC flat index -> NCHW flat index

    kp = {}
    kp.update(prep_block(params["block1"], 1))
    kp.update(prep_block(params["block2"], 2))
    kp["wl"] = fold_bf16(params["w_last"], params["s_last"])
    kp["bl"] = params["b_last"].reshape(1, -1)
    kp["w_fc1"] = params["w_fc1"][jnp.asarray(perm)].astype(jnp.bfloat16)
    kp["b_fc1"] = params["b_fc1"].reshape(1, -1)
    kp["w_fc2"] = params["w_fc2"].astype(jnp.bfloat16)
    kp["b_fc2"] = params["b_fc2"].reshape(1, -1)
    return kp


# ----------------------------------------------------------------------------
# Pure-jnp reference with the ORIGINAL ordering (separate BN scale, NCHW flatten,
# un-permuted w_fc1) so the setup-time folding / permutation is validated.  The
# same bf16 operand quantization is mirrored so tolerances stay tight.
# ----------------------------------------------------------------------------
def _q(a):
    return a.astype(jnp.bfloat16).astype(jnp.float32)


def reference_forward(params, x_nchw):
    def mm(a, w, b):
        return jnp.dot(_q(a), _q(w), precision=jax.lax.Precision.HIGHEST) + b.reshape(1, -1)

    x = jnp.transpose(x_nchw, (0, 2, 3, 1)).astype(jnp.float32)

    def block(x4, p, use_res):
        N, H, W, C = x4.shape
        we = p["w_exp"] * p["s_exp"][None, :]
        h = jnp.clip(mm(x4.reshape(N * H * W, C), we, p["b_exp"]), 0.0, 6.0)
        Chid = h.shape[-1]
        h4 = h.reshape(N, H, W, Chid)
        hp = jnp.pad(h4, ((0, 0), (1, 1), (1, 1), (0, 0)))
        wd = p["w_dw"] * p["s_dw"][None, :]
        acc = jnp.zeros((N, H, W, Chid), jnp.float32)
        for kh in range(3):
            for kw in range(3):
                acc = acc + hp[:, kh:kh + H, kw:kw + W, :] * wd[kh * 3 + kw].reshape(1, 1, 1, Chid)
        d = jnp.clip(acc + p["b_dw"].reshape(1, 1, 1, Chid), 0.0, 6.0)
        wp = p["w_proj"] * p["s_proj"][None, :]
        out = mm(d.reshape(N * H * W, Chid), wp, p["b_proj"]).reshape(N, H, W, -1)
        return out + x4 if use_res else out

    x = block(x, params["block1"], False)
    x = block(x, params["block2"], True)
    N, H, W, C = x.shape
    wl = params["w_last"] * params["s_last"][None, :]
    x = jnp.clip(mm(x.reshape(N * H * W, C), wl, params["b_last"]), 0.0, 6.0).reshape(N, H, W, -1)
    # PyTorch nn.Flatten on NCHW
    xf = jnp.transpose(x, (0, 3, 1, 2)).reshape(N, -1)
    out1 = mm(xf, params["w_fc1"], params["b_fc1"])
    out2 = mm(jnp.maximum(out1, 0.0), params["w_fc2"], params["b_fc2"])
    return out1, out2


if __name__ == "__main__":
    key = jax.random.PRNGKey(0)
    k_x, k_p = jax.random.split(key)

    # NCHW input (server-side intermediate activation): batch=2, channels=12, 8x8.
    # Channels deliberately != spatial dims so the NCHW->NHWC plumbing is exercised.
    N, Cin, H, W = 2, 12, 8, 8
    x = jax.random.normal(k_x, (N, Cin, H, W), jnp.float32)

    params = init_params(k_p, cin=Cin, c_mid=16, c_last=64, spatial=H,
                         hidden=32, num_classes=10)
    kparams = prepare_kernel_params(params, H, W)

    fwd = jax.jit(server_model_forward)
    out1, out2 = fwd(kparams, x)
    jax.block_until_ready((out1, out2))

    ref1, ref2 = reference_forward(params, x)
    np.testing.assert_allclose(np.asarray(out1), np.asarray(ref1), rtol=2e-2, atol=2e-2)
    np.testing.assert_allclose(np.asarray(out2), np.asarray(ref2), rtol=2e-2, atol=2e-2)
    assert out1.shape == (N, 32) and out2.shape == (N, 10)

    print("KERNEL_OK")
</pallas_src>

<mosaic_0001>
module attributes {stable_mosaic.version = 11 : i64} {
  func.func @kernel(%arg0: i32, %arg1: memref<1x64x12xf32, #tpu.memory_space<vmem>>, %arg2: memref<12x72xbf16, #tpu.memory_space<vmem>>, %arg3: memref<1x72xf32, #tpu.memory_space<vmem>>, %arg4: memref<9x72xf32, #tpu.memory_space<vmem>>, %arg5: memref<1x72xf32, #tpu.memory_space<vmem>>, %arg6: memref<72x16xbf16, #tpu.memory_space<vmem>>, %arg7: memref<1x16xf32, #tpu.memory_space<vmem>>, %arg8: memref<16x96xbf16, #tpu.memory_space<vmem>>, %arg9: memref<1x96xf32, #tpu.memory_space<vmem>>, %arg10: memref<9x96xf32, #tpu.memory_space<vmem>>, %arg11: memref<1x96xf32, #tpu.memory_space<vmem>>, %arg12: memref<96x16xbf16, #tpu.memory_space<vmem>>, %arg13: memref<1x16xf32, #tpu.memory_space<vmem>>, %arg14: memref<16x64xbf16, #tpu.memory_space<vmem>>, %arg15: memref<1x64xf32, #tpu.memory_space<vmem>>, %arg16: memref<1x64x64xbf16, #tpu.memory_space<vmem>>, %arg17: memref<96x72xf32, #tpu.memory_space<vmem>>, %arg18: memref<96x96xf32, #tpu.memory_space<vmem>>) attributes {dimension_semantics = [#tpu.dimension_semantics<parallel>], iteration_bounds = array<i64: 2>, scalar_prefetch = 0 : i64, scratch_operands = 2 : i64, tpu.core_type = #tpu.core_type<tc>, window_params = [{transform_indices = @transform_0, window_bounds = array<i64: 1, 64, 12>}, {pipeline_mode = #tpu.pipeline_mode<synchronous>, transform_indices = @transform_1, window_bounds = array<i64: 12, 72>}, {pipeline_mode = #tpu.pipeline_mode<synchronous>, transform_indices = @transform_2, window_bounds = array<i64: 1, 72>}, {pipeline_mode = #tpu.pipeline_mode<synchronous>, transform_indices = @transform_3, window_bounds = array<i64: 9, 72>}, {pipeline_mode = #tpu.pipeline_mode<synchronous>, transform_indices = @transform_4, window_bounds = array<i64: 1, 72>}, {pipeline_mode = #tpu.pipeline_mode<synchronous>, transform_indices = @transform_5, window_bounds = array<i64: 72, 16>}, {pipeline_mode = #tpu.pipeline_mode<synchronous>, transform_indices = @transform_6, window_bounds = array<i64: 1, 16>}, {pipeline_mode = #tpu.pipeline_mode<synchronous>, transform_indices = @transform_7, window_bounds = array<i64: 16, 96>}, {pipeline_mode = #tpu.pipeline_mode<synchronous>, transform_indices = @transform_8, window_bounds = array<i64: 1, 96>}, {pipeline_mode = #tpu.pipeline_mode<synchronous>, transform_indices = @transform_9, window_bounds = array<i64: 9, 96>}, {pipeline_mode = #tpu.pipeline_mode<synchronous>, transform_indices = @transform_10, window_bounds = array<i64: 1, 96>}, {pipeline_mode = #tpu.pipeline_mode<synchronous>, transform_indices = @transform_11, window_bounds = array<i64: 96, 16>}, {pipeline_mode = #tpu.pipeline_mode<synchronous>, transform_indices = @transform_12, window_bounds = array<i64: 1, 16>}, {pipeline_mode = #tpu.pipeline_mode<synchronous>, transform_indices = @transform_13, window_bounds = array<i64: 16, 64>}, {pipeline_mode = #tpu.pipeline_mode<synchronous>, transform_indices = @transform_14, window_bounds = array<i64: 1, 64>}, {transform_indices = @transform_15, window_bounds = array<i64: 1, 64, 64>}]} {
    %c0 = arith.constant 0 : index
    %c0_0 = arith.constant 0 : index
    %c0_1 = arith.constant 0 : index
    %0 = vector.load %arg1[%c0, %c0_0, %c0_1] : memref<1x64x12xf32, #tpu.memory_space<vmem>>, vector<1x64x12xf32>
    %1 = vector.shape_cast %0 : vector<1x64x12xf32> to vector<64x12xf32>
    %2 = arith.truncf %1 : vector<64x12xf32> to vector<64x12xbf16>
    %3 = tpu.iota {dimensions = array<i32: 0>} : vector<64x1xi32>
    %c8_i32 = arith.constant 8 : i32
    %c0_i32 = arith.constant 0 : i32
    %4 = arith.cmpi eq, %c8_i32, %c0_i32 : i32
    %c1_i32 = arith.constant 1 : i32
    %5 = arith.select %4, %c1_i32, %c8_i32 : i32
    %6 = vector.broadcast %5 : i32 to vector<64x1xi32>
    %7 = arith.remsi %3, %6 : vector<64x1xi32>
    %c0_i32_2 = arith.constant 0 : i32
    %8 = vector.broadcast %c0_i32_2 : i32 to vector<64x1xi32>
    %9 = arith.cmpi ne, %7, %8 : vector<64x1xi32>
    %c0_i32_3 = arith.constant 0 : i32
    %10 = vector.broadcast %c0_i32_3 : i32 to vector<64x1xi32>
    %11 = arith.cmpi slt, %7, %10 : vector<64x1xi32>
    %c0_i32_4 = arith.constant 0 : i32
    %12 = arith.cmpi slt, %5, %c0_i32_4 : i32
    %13 = vector.broadcast %12 : i1 to vector<64x1xi1>
    %14 = vector.broadcast %13 : vector<64x1xi1> to vector<64x1xi1>
    %15 = arith.xori %11, %14 : vector<64x1xi1>
    %16 = arith.andi %15, %9 : vector<64x1xi1>
    %17 = vector.broadcast %5 : i32 to vector<64x1xi32>
    %18 = arith.addi %7, %17 : vector<64x1xi32>
    %19 = arith.select %16, %18, %7 : vector<64x1xi1>, vector<64x1xi32>
    %c0_i32_5 = arith.constant 0 : i32
    %20 = vector.broadcast %c0_i32_5 : i32 to vector<64x1xi32>
    %21 = arith.cmpi ne, %19, %20 : vector<64x1xi32>
    %c7_i32 = arith.constant 7 : i32
    %22 = vector.broadcast %c7_i32 : i32 to vector<64x1xi32>
    %23 = arith.cmpi ne, %19, %22 : vector<64x1xi32>
    %c0_6 = arith.constant 0 : index
    %c0_7 = arith.constant 0 : index
    %24 = vector.load %arg2[%c0_6, %c0_7] : memref<12x72xbf16, #tpu.memory_space<vmem>>, vector<12x72xbf16>
    %cst = arith.constant dense<0.000000e+00> : vector<64x72xf32>
    %25 = tpu.matmul %2, %24, %cst {dimension_numbers = #tpu.dot_dimension_numbers<[1], [0], [0], [1], [0, 0, 1, 1], [], []>} : vector<64x12xbf16>, vector<12x72xbf16>, vector<64x72xf32> -> vector<64x72xf32>
    %c0_8 = arith.constant 0 : index
    %c0_9 = arith.constant 0 : index
    %26 = vector.load %arg3[%c0_8, %c0_9] : memref<1x72xf32, #tpu.memory_space<vmem>>, vector<1x72xf32>
    %27 = vector.broadcast %26 : vector<1x72xf32> to vector<64x72xf32>
    %28 = arith.addf %25, %27 : vector<64x72xf32>
    %cst_10 = arith.constant 0.000000e+00 : f32
    %cst_11 = arith.constant 6.000000e+00 : f32
    %29 = vector.broadcast %cst_10 : f32 to vector<64x72xf32>
    %30 = arith.maximumf %29, %28 : vector<64x72xf32>
    %31 = vector.broadcast %cst_11 : f32 to vector<64x72xf32>
    %32 = arith.minimumf %31, %30 : vector<64x72xf32>
    %cst_12 = arith.constant 0.000000e+00 : f32
    %33 = vector.broadcast %cst_12 : f32 to vector<16x72xf32>
    %c0_13 = arith.constant 0 : index
    %c0_14 = arith.constant 0 : index
    %34 = vector.load %arg17[%c0_13, %c0_14] : memref<96x72xf32, #tpu.memory_space<vmem>>, vector<16x72xf32>
    tpu.vector_store %arg17[%c0_13, %c0_14], %33 {strides = array<i32>} : memref<96x72xf32, #tpu.memory_space<vmem>>, vector<16x72xf32>,
    %cst_15 = arith.constant 0.000000e+00 : f32
    %35 = vector.broadcast %cst_15 : f32 to vector<16x72xf32>
    %c80 = arith.constant 80 : index
    %c0_16 = arith.constant 0 : index
    %36 = vector.load %arg17[%c80, %c0_16] : memref<96x72xf32, #tpu.memory_space<vmem>>, vector<16x72xf32>
    tpu.vector_store %arg17[%c80, %c0_16], %35 {strides = array<i32>} : memref<96x72xf32, #tpu.memory_space<vmem>>, vector<16x72xf32>,
    %c16 = arith.constant 16 : index
    %c0_17 = arith.constant 0 : index
    %37 = vector.load %arg17[%c16, %c0_17] : memref<96x72xf32, #tpu.memory_space<vmem>>, vector<64x72xf32>
    tpu.vector_store %arg17[%c16, %c0_17], %32 {strides = array<i32>} : memref<96x72xf32, #tpu.memory_space<vmem>>, vector<64x72xf32>,
    %c7 = arith.constant 7 : index
    %c0_18 = arith.constant 0 : index
    %38 = vector.load %arg17[%c7, %c0_18] : memref<96x72xf32, #tpu.memory_space<vmem>>, vector<64x72xf32>
    %cst_19 = arith.constant 0.000000e+00 : f32
    %39 = vector.shape_cast %21 : vector<64x1xi1> to vector<64x1xi1>
    %40 = vector.broadcast %39 : vector<64x1xi1> to vector<64x72xi1>
    %41 = vector.broadcast %cst_19 : f32 to vector<64x72xf32>
    %42 = arith.select %40, %38, %41 : vector<64x72xi1>, vector<64x72xf32>
    %c0_20 = arith.constant 0 : index
    %c0_21 = arith.constant 0 : index
    %43 = vector.load %arg4[%c0_20, %c0_21] : memref<9x72xf32, #tpu.memory_space<vmem>>, vector<1x72xf32>
    %44 = vector.broadcast %43 : vector<1x72xf32> to vector<64x72xf32>
    %45 = arith.mulf %42, %44 : vector<64x72xf32>
    %c8 = arith.constant 8 : index
    %c0_22 = arith.constant 0 : index
    %46 = vector.load %arg17[%c8, %c0_22] : memref<96x72xf32, #tpu.memory_space<vmem>>, vector<64x72xf32>
    %c1 = arith.constant 1 : index
    %c0_23 = arith.constant 0 : index
    %47 = vector.load %arg4[%c1, %c0_23] : memref<9x72xf32, #tpu.memory_space<vmem>>, vector<1x72xf32>
    %48 = vector.broadcast %47 : vector<1x72xf32> to vector<64x72xf32>
    %49 = arith.mulf %46, %48 : vector<64x72xf32>
    %50 = arith.addf %45, %49 : vector<64x72xf32>
    %c9 = arith.constant 9 : index
    %c0_24 = arith.constant 0 : index
    %51 = vector.load %arg17[%c9, %c0_24] : memref<96x72xf32, #tpu.memory_space<vmem>>, vector<64x72xf32>
    %cst_25 = arith.constant 0.000000e+00 : f32
    %52 = vector.shape_cast %23 : vector<64x1xi1> to vector<64x1xi1>
    %53 = vector.broadcast %52 : vector<64x1xi1> to vector<64x72xi1>
    %54 = vector.broadcast %cst_25 : f32 to vector<64x72xf32>
    %55 = arith.select %53, %51, %54 : vector<64x72xi1>, vector<64x72xf32>
    %c2 = arith.constant 2 : index
    %c0_26 = arith.constant 0 : index
    %56 = vector.load %arg4[%c2, %c0_26] : memref<9x72xf32, #tpu.memory_space<vmem>>, vector<1x72xf32>
    %57 = vector.broadcast %56 : vector<1x72xf32> to vector<64x72xf32>
    %58 = arith.mulf %55, %57 : vector<64x72xf32>
    %59 = arith.addf %50, %58 : vector<64x72xf32>
    %c15 = arith.constant 15 : index
    %c0_27 = arith.constant 0 : index
    %60 = vector.load %arg17[%c15, %c0_27] : memref<96x72xf32, #tpu.memory_space<vmem>>, vector<64x72xf32>
    %cst_28 = arith.constant 0.000000e+00 : f32
    %61 = vector.shape_cast %21 : vector<64x1xi1> to vector<64x1xi1>
    %62 = vector.broadcast %61 : vector<64x1xi1> to vector<64x72xi1>
    %63 = vector.broadcast %cst_28 : f32 to vector<64x72xf32>
    %64 = arith.select %62, %60, %63 : vector<64x72xi1>, vector<64x72xf32>
    %c3 = arith.constant 3 : index
    %c0_29 = arith.constant 0 : index
    %65 = vector.load %arg4[%c3, %c0_29] : memref<9x72xf32, #tpu.memory_space<vmem>>, vector<1x72xf32>
    %66 = vector.broadcast %65 : vector<1x72xf32> to vector<64x72xf32>
    %67 = arith.mulf %64, %66 : vector<64x72xf32>
    %68 = arith.addf %59, %67 : vector<64x72xf32>
    %c4 = arith.constant 4 : index
    %c0_30 = arith.constant 0 : index
    %69 = vector.load %arg4[%c4, %c0_30] : memref<9x72xf32, #tpu.memory_space<vmem>>, vector<1x72xf32>
    %70 = vector.broadcast %69 : vector<1x72xf32> to vector<64x72xf32>
    %71 = arith.mulf %32, %70 : vector<64x72xf32>
    %72 = arith.addf %68, %71 : vector<64x72xf32>
    %c17 = arith.constant 17 : index
    %c0_31 = arith.constant 0 : index
    %73 = vector.load %arg17[%c17, %c0_31] : memref<96x72xf32, #tpu.memory_space<vmem>>, vector<64x72xf32>
    %cst_32 = arith.constant 0.000000e+00 : f32
    %74 = vector.shape_cast %23 : vector<64x1xi1> to vector<64x1xi1>
    %75 = vector.broadcast %74 : vector<64x1xi1> to vector<64x72xi1>
    %76 = vector.broadcast %cst_32 : f32 to vector<64x72xf32>
    %77 = arith.select %75, %73, %76 : vector<64x72xi1>, vector<64x72xf32>
    %c5 = arith.constant 5 : index
    %c0_33 = arith.constant 0 : index
    %78 = vector.load %arg4[%c5, %c0_33] : memref<9x72xf32, #tpu.memory_space<vmem>>, vector<1x72xf32>
    %79 = vector.broadcast %78 : vector<1x72xf32> to vector<64x72xf32>
    %80 = arith.mulf %77, %79 : vector<64x72xf32>
    %81 = arith.addf %72, %80 : vector<64x72xf32>
    %c23 = arith.constant 23 : index
    %c0_34 = arith.constant 0 : index
    %82 = vector.load %arg17[%c23, %c0_34] : memref<96x72xf32, #tpu.memory_space<vmem>>, vector<64x72xf32>
    %cst_35 = arith.constant 0.000000e+00 : f32
    %83 = vector.shape_cast %21 : vector<64x1xi1> to vector<64x1xi1>
    %84 = vector.broadcast %83 : vector<64x1xi1> to vector<64x72xi1>
    %85 = vector.broadcast %cst_35 : f32 to vector<64x72xf32>
    %86 = arith.select %84, %82, %85 : vector<64x72xi1>, vector<64x72xf32>
    %c6 = arith.constant 6 : index
    %c0_36 = arith.constant 0 : index
    %87 = vector.load %arg4[%c6, %c0_36] : memref<9x72xf32, #tpu.memory_space<vmem>>, vector<1x72xf32>
    %88 = vector.broadcast %87 : vector<1x72xf32> to vector<64x72xf32>
    %89 = arith.mulf %86, %88 : vector<64x72xf32>
    %90 = arith.addf %81, %89 : vector<64x72xf32>
    %c24 = arith.constant 24 : index
    %c0_37 = arith.constant 0 : index
    %91 = vector.load %arg17[%c24, %c0_37] : memref<96x72xf32, #tpu.memory_space<vmem>>, vector<64x72xf32>
    %c7_38 = arith.constant 7 : index
    %c0_39 = arith.constant 0 : index
    %92 = vector.load %arg4[%c7_38, %c0_39] : memref<9x72xf32, #tpu.memory_space<vmem>>, vector<1x72xf32>
    %93 = vector.broadcast %92 : vector<1x72xf32> to vector<64x72xf32>
    %94 = arith.mulf %91, %93 : vector<64x72xf32>
    %95 = arith.addf %90, %94 : vector<64x72xf32>
    %c25 = arith.constant 25 : index
    %c0_40 = arith.constant 0 : index
    %96 = vector.load %arg17[%c25, %c0_40] : memref<96x72xf32, #tpu.memory_space<vmem>>, vector<64x72xf32>
    %cst_41 = arith.constant 0.000000e+00 : f32
    %97 = vector.shape_cast %23 : vector<64x1xi1> to vector<64x1xi1>
    %98 = vector.broadcast %97 : vector<64x1xi1> to vector<64x72xi1>
    %99 = vector.broadcast %cst_41 : f32 to vector<64x72xf32>
    %100 = arith.select %98, %96, %99 : vector<64x72xi1>, vector<64x72xf32>
    %c8_42 = arith.constant 8 : index
    %c0_43 = arith.constant 0 : index
    %101 = vector.load %arg4[%c8_42, %c0_43] : memref<9x72xf32, #tpu.memory_space<vmem>>, vector<1x72xf32>
    %102 = vector.broadcast %101 : vector<1x72xf32> to vector<64x72xf32>
    %103 = arith.mulf %100, %102 : vector<64x72xf32>
    %104 = arith.addf %95, %103 : vector<64x72xf32>
    %c0_44 = arith.constant 0 : index
    %c0_45 = arith.constant 0 : index
    %105 = vector.load %arg5[%c0_44, %c0_45] : memref<1x72xf32, #tpu.memory_space<vmem>>, vector<1x72xf32>
    %106 = vector.broadcast %105 : vector<1x72xf32> to vector<64x72xf32>
    %107 = arith.addf %104, %106 : vector<64x72xf32>
    %cst_46 = arith.constant 0.000000e+00 : f32
    %cst_47 = arith.constant 6.000000e+00 : f32
    %108 = vector.broadcast %cst_46 : f32 to vector<64x72xf32>
    %109 = arith.maximumf %108, %107 : vector<64x72xf32>
    %110 = vector.broadcast %cst_47 : f32 to vector<64x72xf32>
    %111 = arith.minimumf %110, %109 : vector<64x72xf32>
    %112 = arith.truncf %111 : vector<64x72xf32> to vector<64x72xbf16>
    %c0_48 = arith.constant 0 : index
    %c0_49 = arith.constant 0 : index
    %113 = vector.load %arg6[%c0_48, %c0_49] : memref<72x16xbf16, #tpu.memory_space<vmem>>, vector<72x16xbf16>
    %cst_50 = arith.constant dense<0.000000e+00> : vector<64x16xf32>
    %114 = tpu.matmul %112, %113, %cst_50 {dimension_numbers = #tpu.dot_dimension_numbers<[1], [0], [0], [1], [0, 0, 1, 1], [], []>} : vector<64x72xbf16>, vector<72x16xbf16>, vector<64x16xf32> -> vector<64x16xf32>
    %c0_51 = arith.constant 0 : index
    %c0_52 = arith.constant 0 : index
    %115 = vector.load %arg7[%c0_51, %c0_52] : memref<1x16xf32, #tpu.memory_space<vmem>>, vector<1x16xf32>
    %116 = vector.broadcast %115 : vector<1x16xf32> to vector<64x16xf32>
    %117 = arith.addf %114, %116 : vector<64x16xf32>
    %118 = arith.truncf %117 : vector<64x16xf32> to vector<64x16xbf16>
    %c0_53 = arith.constant 0 : index
    %c0_54 = arith.constant 0 : index
    %119 = vector.load %arg8[%c0_53, %c0_54] : memref<16x96xbf16, #tpu.memory_space<vmem>>, vector<16x96xbf16>
    %cst_55 = arith.constant dense<0.000000e+00> : vector<64x96xf32>
    %120 = tpu.matmul %118, %119, %cst_55 {dimension_numbers = #tpu.dot_dimension_numbers<[1], [0], [0], [1], [0, 0, 1, 1], [], []>} : vector<64x16xbf16>, vector<16x96xbf16>, vector<64x96xf32> -> vector<64x96xf32>
    %c0_56 = arith.constant 0 : index
    %c0_57 = arith.constant 0 : index
    %121 = vector.load %arg9[%c0_56, %c0_57] : memref<1x96xf32, #tpu.memory_space<vmem>>, vector<1x96xf32>
    %122 = vector.broadcast %121 : vector<1x96xf32> to vector<64x96xf32>
    %123 = arith.addf %120, %122 : vector<64x96xf32>
    %cst_58 = arith.constant 0.000000e+00 : f32
    %cst_59 = arith.constant 6.000000e+00 : f32
    %124 = vector.broadcast %cst_58 : f32 to vector<64x96xf32>
    %125 = arith.maximumf %124, %123 : vector<64x96xf32>
    %126 = vector.broadcast %cst_59 : f32 to vector<64x96xf32>
    %127 = arith.minimumf %126, %125 : vector<64x96xf32>
    %cst_60 = arith.constant 0.000000e+00 : f32
    %128 = vector.broadcast %cst_60 : f32 to vector<16x96xf32>
    %c0_61 = arith.constant 0 : index
    %c0_62 = arith.constant 0 : index
    %129 = vector.load %arg18[%c0_61, %c0_62] : memref<96x96xf32, #tpu.memory_space<vmem>>, vector<16x96xf32>
    tpu.vector_store %arg18[%c0_61, %c0_62], %128 {strides = array<i32>} : memref<96x96xf32, #tpu.memory_space<vmem>>, vector<16x96xf32>,
    %cst_63 = arith.constant 0.000000e+00 : f32
    %130 = vector.broadcast %cst_63 : f32 to vector<16x96xf32>
    %c80_64 = arith.constant 80 : index
    %c0_65 = arith.constant 0 : index
    %131 = vector.load %arg18[%c80_64, %c0_65] : memref<96x96xf32, #tpu.memory_space<vmem>>, vector<16x96xf32>
    tpu.vector_store %arg18[%c80_64, %c0_65], %130 {strides = array<i32>} : memref<96x96xf32, #tpu.memory_space<vmem>>, vector<16x96xf32>,
    %c16_66 = arith.constant 16 : index
    %c0_67 = arith.constant 0 : index
    %132 = vector.load %arg18[%c16_66, %c0_67] : memref<96x96xf32, #tpu.memory_space<vmem>>, vector<64x96xf32>
    tpu.vector_store %arg18[%c16_66, %c0_67], %127 {strides = array<i32>} : memref<96x96xf32, #tpu.memory_space<vmem>>, vector<64x96xf32>,
    %c7_68 = arith.constant 7 : index
    %c0_69 = arith.constant 0 : index
    %133 = vector.load %arg18[%c7_68, %c0_69] : memref<96x96xf32, #tpu.memory_space<vmem>>, vector<64x96xf32>
    %cst_70 = arith.constant 0.000000e+00 : f32
    %134 = vector.shape_cast %21 : vector<64x1xi1> to vector<64x1xi1>
    %135 = vector.broadcast %134 : vector<64x1xi1> to vector<64x96xi1>
    %136 = vector.broadcast %cst_70 : f32 to vector<64x96xf32>
    %137 = arith.select %135, %133, %136 : vector<64x96xi1>, vector<64x96xf32>
    %c0_71 = arith.constant 0 : index
    %c0_72 = arith.constant 0 : index
    %138 = vector.load %arg10[%c0_71, %c0_72] : memref<9x96xf32, #tpu.memory_space<vmem>>, vector<1x96xf32>
    %139 = vector.broadcast %138 : vector<1x96xf32> to vector<64x96xf32>
    %140 = arith.mulf %137, %139 : vector<64x96xf32>
    %c8_73 = arith.constant 8 : index
    %c0_74 = arith.constant 0 : index
    %141 = vector.load %arg18[%c8_73, %c0_74] : memref<96x96xf32, #tpu.memory_space<vmem>>, vector<64x96xf32>
    %c1_75 = arith.constant 1 : index
    %c0_76 = arith.constant 0 : index
    %142 = vector.load %arg10[%c1_75, %c0_76] : memref<9x96xf32, #tpu.memory_space<vmem>>, vector<1x96xf32>
    %143 = vector.broadcast %142 : vector<1x96xf32> to vector<64x96xf32>
    %144 = arith.mulf %141, %143 : vector<64x96xf32>
    %145 = arith.addf %140, %144 : vector<64x96xf32>
    %c9_77 = arith.constant 9 : index
    %c0_78 = arith.constant 0 : index
    %146 = vector.load %arg18[%c9_77, %c0_78] : memref<96x96xf32, #tpu.memory_space<vmem>>, vector<64x96xf32>
    %cst_79 = arith.constant 0.000000e+00 : f32
    %147 = vector.shape_cast %23 : vector<64x1xi1> to vector<64x1xi1>
    %148 = vector.broadcast %147 : vector<64x1xi1> to vector<64x96xi1>
    %149 = vector.broadcast %cst_79 : f32 to vector<64x96xf32>
    %150 = arith.select %148, %146, %149 : vector<64x96xi1>, vector<64x96xf32>
    %c2_80 = arith.constant 2 : index
    %c0_81 = arith.constant 0 : index
    %151 = vector.load %arg10[%c2_80, %c0_81] : memref<9x96xf32, #tpu.memory_space<vmem>>, vector<1x96xf32>
    %152 = vector.broadcast %151 : vector<1x96xf32> to vector<64x96xf32>
    %153 = arith.mulf %150, %152 : vector<64x96xf32>
    %154 = arith.addf %145, %153 : vector<64x96xf32>
    %c15_82 = arith.constant 15 : index
    %c0_83 = arith.constant 0 : index
    %155 = vector.load %arg18[%c15_82, %c0_83] : memref<96x96xf32, #tpu.memory_space<vmem>>, vector<64x96xf32>
    %cst_84 = arith.constant 0.000000e+00 : f32
    %156 = vector.shape_cast %21 : vector<64x1xi1> to vector<64x1xi1>
    %157 = vector.broadcast %156 : vector<64x1xi1> to vector<64x96xi1>
    %158 = vector.broadcast %cst_84 : f32 to vector<64x96xf32>
    %159 = arith.select %157, %155, %158 : vector<64x96xi1>, vector<64x96xf32>
    %c3_85 = arith.constant 3 : index
    %c0_86 = arith.constant 0 : index
    %160 = vector.load %arg10[%c3_85, %c0_86] : memref<9x96xf32, #tpu.memory_space<vmem>>, vector<1x96xf32>
    %161 = vector.broadcast %160 : vector<1x96xf32> to vector<64x96xf32>
    %162 = arith.mulf %159, %161 : vector<64x96xf32>
    %163 = arith.addf %154, %162 : vector<64x96xf32>
    %c4_87 = arith.constant 4 : index
    %c0_88 = arith.constant 0 : index
    %164 = vector.load %arg10[%c4_87, %c0_88] : memref<9x96xf32, #tpu.memory_space<vmem>>, vector<1x96xf32>
    %165 = vector.broadcast %164 : vector<1x96xf32> to vector<64x96xf32>
    %166 = arith.mulf %127, %165 : vector<64x96xf32>
    %167 = arith.addf %163, %166 : vector<64x96xf32>
    %c17_89 = arith.constant 17 : index
    %c0_90 = arith.constant 0 : index
    %168 = vector.load %arg18[%c17_89, %c0_90] : memref<96x96xf32, #tpu.memory_space<vmem>>, vector<64x96xf32>
    %cst_91 = arith.constant 0.000000e+00 : f32
    %169 = vector.shape_cast %23 : vector<64x1xi1> to vector<64x1xi1>
    %170 = vector.broadcast %169 : vector<64x1xi1> to vector<64x96xi1>
    %171 = vector.broadcast %cst_91 : f32 to vector<64x96xf32>
    %172 = arith.select %170, %168, %171 : vector<64x96xi1>, vector<64x96xf32>
    %c5_92 = arith.constant 5 : index
    %c0_93 = arith.constant 0 : index
    %173 = vector.load %arg10[%c5_92, %c0_93] : memref<9x96xf32, #tpu.memory_space<vmem>>, vector<1x96xf32>
    %174 = vector.broadcast %173 : vector<1x96xf32> to vector<64x96xf32>
    %175 = arith.mulf %172, %174 : vector<64x96xf32>
    %176 = arith.addf %167, %175 : vector<64x96xf32>
    %c23_94 = arith.constant 23 : index
    %c0_95 = arith.constant 0 : index
    %177 = vector.load %arg18[%c23_94, %c0_95] : memref<96x96xf32, #tpu.memory_space<vmem>>, vector<64x96xf32>
    %cst_96 = arith.constant 0.000000e+00 : f32
    %178 = vector.shape_cast %21 : vector<64x1xi1> to vector<64x1xi1>
    %179 = vector.broadcast %178 : vector<64x1xi1> to vector<64x96xi1>
    %180 = vector.broadcast %cst_96 : f32 to vector<64x96xf32>
    %181 = arith.select %179, %177, %180 : vector<64x96xi1>, vector<64x96xf32>
    %c6_97 = arith.constant 6 : index
    %c0_98 = arith.constant 0 : index
    %182 = vector.load %arg10[%c6_97, %c0_98] : memref<9x96xf32, #tpu.memory_space<vmem>>, vector<1x96xf32>
    %183 = vector.broadcast %182 : vector<1x96xf32> to vector<64x96xf32>
    %184 = arith.mulf %181, %183 : vector<64x96xf32>
    %185 = arith.addf %176, %184 : vector<64x96xf32>
    %c24_99 = arith.constant 24 : index
    %c0_100 = arith.constant 0 : index
    %186 = vector.load %arg18[%c24_99, %c0_100] : memref<96x96xf32, #tpu.memory_space<vmem>>, vector<64x96xf32>
    %c7_101 = arith.constant 7 : index
    %c0_102 = arith.constant 0 : index
    %187 = vector.load %arg10[%c7_101, %c0_102] : memref<9x96xf32, #tpu.memory_space<vmem>>, vector<1x96xf32>
    %188 = vector.broadcast %187 : vector<1x96xf32> to vector<64x96xf32>
    %189 = arith.mulf %186, %188 : vector<64x96xf32>
    %190 = arith.addf %185, %189 : vector<64x96xf32>
    %c25_103 = arith.constant 25 : index
    %c0_104 = arith.constant 0 : index
    %191 = vector.load %arg18[%c25_103, %c0_104] : memref<96x96xf32, #tpu.memory_space<vmem>>, vector<64x96xf32>
    %cst_105 = arith.constant 0.000000e+00 : f32
    %192 = vector.shape_cast %23 : vector<64x1xi1> to vector<64x1xi1>
    %193 = vector.broadcast %192 : vector<64x1xi1> to vector<64x96xi1>
    %194 = vector.broadcast %cst_105 : f32 to vector<64x96xf32>
    %195 = arith.select %193, %191, %194 : vector<64x96xi1>, vector<64x96xf32>
    %c8_106 = arith.constant 8 : index
    %c0_107 = arith.constant 0 : index
    %196 = vector.load %arg10[%c8_106, %c0_107] : memref<9x96xf32, #tpu.memory_space<vmem>>, vector<1x96xf32>
    %197 = vector.broadcast %196 : vector<1x96xf32> to vector<64x96xf32>
    %198 = arith.mulf %195, %197 : vector<64x96xf32>
    %199 = arith.addf %190, %198 : vector<64x96xf32>
    %c0_108 = arith.constant 0 : index
    %c0_109 = arith.constant 0 : index
    %200 = vector.load %arg11[%c0_108, %c0_109] : memref<1x96xf32, #tpu.memory_space<vmem>>, vector<1x96xf32>
    %201 = vector.broadcast %200 : vector<1x96xf32> to vector<64x96xf32>
    %202 = arith.addf %199, %201 : vector<64x96xf32>
    %cst_110 = arith.constant 0.000000e+00 : f32
    %cst_111 = arith.constant 6.000000e+00 : f32
    %203 = vector.broadcast %cst_110 : f32 to vector<64x96xf32>
    %204 = arith.maximumf %203, %202 : vector<64x96xf32>
    %205 = vector.broadcast %cst_111 : f32 to vector<64x96xf32>
    %206 = arith.minimumf %205, %204 : vector<64x96xf32>
    %207 = arith.truncf %206 : vector<64x96xf32> to vector<64x96xbf16>
    %c0_112 = arith.constant 0 : index
    %c0_113 = arith.constant 0 : index
    %208 = vector.load %arg12[%c0_112, %c0_113] : memref<96x16xbf16, #tpu.memory_space<vmem>>, vector<96x16xbf16>
    %cst_114 = arith.constant dense<0.000000e+00> : vector<64x16xf32>
    %209 = tpu.matmul %207, %208, %cst_114 {dimension_numbers = #tpu.dot_dimension_numbers<[1], [0], [0], [1], [0, 0, 1, 1], [], []>} : vector<64x96xbf16>, vector<96x16xbf16>, vector<64x16xf32> -> vector<64x16xf32>
    %c0_115 = arith.constant 0 : index
    %c0_116 = arith.constant 0 : index
    %210 = vector.load %arg13[%c0_115, %c0_116] : memref<1x16xf32, #tpu.memory_space<vmem>>, vector<1x16xf32>
    %211 = vector.broadcast %210 : vector<1x16xf32> to vector<64x16xf32>
    %212 = arith.addf %209, %211 : vector<64x16xf32>
    %213 = arith.addf %212, %117 : vector<64x16xf32>
    %214 = arith.truncf %213 : vector<64x16xf32> to vector<64x16xbf16>
    %c0_117 = arith.constant 0 : index
    %c0_118 = arith.constant 0 : index
    %215 = vector.load %arg14[%c0_117, %c0_118] : memref<16x64xbf16, #tpu.memory_space<vmem>>, vector<16x64xbf16>
    %cst_119 = arith.constant dense<0.000000e+00> : vector<64x64xf32>
    %216 = tpu.matmul %214, %215, %cst_119 {dimension_numbers = #tpu.dot_dimension_numbers<[1], [0], [0], [1], [0, 0, 1, 1], [], []>} : vector<64x16xbf16>, vector<16x64xbf16>, vector<64x64xf32> -> vector<64x64xf32>
    %c0_120 = arith.constant 0 : index
    %c0_121 = arith.constant 0 : index
    %217 = vector.load %arg15[%c0_120, %c0_121] : memref<1x64xf32, #tpu.memory_space<vmem>>, vector<1x64xf32>
    %218 = vector.broadcast %217 : vector<1x64xf32> to vector<64x64xf32>
    %219 = arith.addf %216, %218 : vector<64x64xf32>
    %cst_122 = arith.constant 0.000000e+00 : f32
    %cst_123 = arith.constant 6.000000e+00 : f32
    %220 = vector.broadcast %cst_122 : f32 to vector<64x64xf32>
    %221 = arith.maximumf %220, %219 : vector<64x64xf32>
    %222 = vector.broadcast %cst_123 : f32 to vector<64x64xf32>
    %223 = arith.minimumf %222, %221 : vector<64x64xf32>
    %224 = arith.truncf %223 : vector<64x64xf32> to vector<64x64xbf16>
    %c0_124 = arith.constant 0 : index
    %c0_125 = arith.constant 0 : index
    %c0_126 = arith.constant 0 : index
    %225 = vector.load %arg16[%c0_124, %c0_125, %c0_126] : memref<1x64x64xbf16, #tpu.memory_space<vmem>>, vector<1x64x64xbf16>
    %226 = vector.shape_cast %225 : vector<1x64x64xbf16> to vector<64x64xbf16>
    %227 = vector.shape_cast %224 : vector<64x64xbf16> to vector<1x64x64xbf16>
    tpu.vector_store %arg16[%c0_124, %c0_125, %c0_126], %227 {strides = array<i32>} : memref<1x64x64xbf16, #tpu.memory_space<vmem>>, vector<1x64x64xbf16>,
    return
  }
  func.func @transform_0(%arg0: i32) -> (i32, i32, i32) {
    %c0_i32 = arith.constant 0 : i32
    %c0_i32_0 = arith.constant 0 : i32
    %c0_i32_1 = arith.constant 0 : i32
    return %arg0, %c0_i32, %c0_i32_0 : i32, i32, i32
  }
  func.func @transform_1(%arg0: i32) -> (i32, i32) {
    %c0_i32 = arith.constant 0 : i32
    %c0_i32_0 = arith.constant 0 : i32
    %c0_i32_1 = arith.constant 0 : i32
    return %c0_i32, %c0_i32_0 : i32, i32
  }
  func.func @transform_2(%arg0: i32) -> (i32, i32) {
    %c0_i32 = arith.constant 0 : i32
    %c0_i32_0 = arith.constant 0 : i32
    %c0_i32_1 = arith.constant 0 : i32
    return %c0_i32, %c0_i32_0 : i32, i32
  }
  func.func @transform_3(%arg0: i32) -> (i32, i32) {
    %c0_i32 = arith.constant 0 : i32
    %c0_i32_0 = arith.constant 0 : i32
    %c0_i32_1 = arith.constant 0 : i32
    return %c0_i32, %c0_i32_0 : i32, i32
  }
  func.func @transform_4(%arg0: i32) -> (i32, i32) {
    %c0_i32 = arith.constant 0 : i32
    %c0_i32_0 = arith.constant 0 : i32
    %c0_i32_1 = arith.constant 0 : i32
    return %c0_i32, %c0_i32_0 : i32, i32
  }
  func.func @transform_5(%arg0: i32) -> (i32, i32) {
    %c0_i32 = arith.constant 0 : i32
    %c0_i32_0 = arith.constant 0 : i32
    %c0_i32_1 = arith.constant 0 : i32
    return %c0_i32, %c0_i32_0 : i32, i32
  }
  func.func @transform_6(%arg0: i32) -> (i32, i32) {
    %c0_i32 = arith.constant 0 : i32
    %c0_i32_0 = arith.constant 0 : i32
    %c0_i32_1 = arith.constant 0 : i32
    return %c0_i32, %c0_i32_0 : i32, i32
  }
  func.func @transform_7(%arg0: i32) -> (i32, i32) {
    %c0_i32 = arith.constant 0 : i32
    %c0_i32_0 = arith.constant 0 : i32
    %c0_i32_1 = arith.constant 0 : i32
    return %c0_i32, %c0_i32_0 : i32, i32
  }
  func.func @transform_8(%arg0: i32) -> (i32, i32) {
    %c0_i32 = arith.constant 0 : i32
    %c0_i32_0 = arith.constant 0 : i32
    %c0_i32_1 = arith.constant 0 : i32
    return %c0_i32, %c0_i32_0 : i32, i32
  }
  func.func @transform_9(%arg0: i32) -> (i32, i32) {
    %c0_i32 = arith.constant 0 : i32
    %c0_i32_0 = arith.constant 0 : i32
    %c0_i32_1 = arith.constant 0 : i32
    return %c0_i32, %c0_i32_0 : i32, i32
  }
  func.func @transform_10(%arg0: i32) -> (i32, i32) {
    %c0_i32 = arith.constant 0 : i32
    %c0_i32_0 = arith.constant 0 : i32
    %c0_i32_1 = arith.constant 0 : i32
    return %c0_i32, %c0_i32_0 : i32, i32
  }
  func.func @transform_11(%arg0: i32) -> (i32, i32) {
    %c0_i32 = arith.constant 0 : i32
    %c0_i32_0 = arith.constant 0 : i32
    %c0_i32_1 = arith.constant 0 : i32
    return %c0_i32, %c0_i32_0 : i32, i32
  }
  func.func @transform_12(%arg0: i32) -> (i32, i32) {
    %c0_i32 = arith.constant 0 : i32
    %c0_i32_0 = arith.constant 0 : i32
    %c0_i32_1 = arith.constant 0 : i32
    return %c0_i32, %c0_i32_0 : i32, i32
  }
  func.func @transform_13(%arg0: i32) -> (i32, i32) {
    %c0_i32 = arith.constant 0 : i32
    %c0_i32_0 = arith.constant 0 : i32
    %c0_i32_1 = arith.constant 0 : i32
    return %c0_i32, %c0_i32_0 : i32, i32
  }
  func.func @transform_14(%arg0: i32) -> (i32, i32) {
    %c0_i32 = arith.constant 0 : i32
    %c0_i32_0 = arith.constant 0 : i32
    %c0_i32_1 = arith.constant 0 : i32
    return %c0_i32, %c0_i32_0 : i32, i32
  }
  func.func @transform_15(%arg0: i32) -> (i32, i32, i32) {
    %c0_i32 = arith.constant 0 : i32
    %c0_i32_0 = arith.constant 0 : i32
    %c0_i32_1 = arith.constant 0 : i32
    return %arg0, %c0_i32, %c0_i32_0 : i32, i32, i32
  }
}

module attributes {stable_mosaic.version = 11 : i64} {
  func.func @_classifier_kernel(%arg0: memref<2x4096xbf16, #tpu.memory_space<vmem>>, %arg1: memref<4096x32xbf16, #tpu.memory_space<vmem>>, %arg2: memref<1x32xf32, #tpu.memory_space<vmem>>, %arg3: memref<32x10xbf16, #tpu.memory_space<vmem>>, %arg4: memref<1x10xf32, #tpu.memory_space<vmem>>, %arg5: memref<2x32xf32, #tpu.memory_space<vmem>>, %arg6: memref<2x10xf32, #tpu.memory_space<vmem>>) attributes {dimension_semantics = [], scalar_prefetch = 0 : i64, scratch_operands = 0 : i64, tpu.core_type = #tpu.core_type<tc>} {
    %c0 = arith.constant 0 : index
    %c0_0 = arith.constant 0 : index
    %0 = vector.load %arg0[%c0, %c0_0] : memref<2x4096xbf16, #tpu.memory_space<vmem>>, vector<2x4096xbf16>
    %c0_1 = arith.constant 0 : index
    %c0_2 = arith.constant 0 : index
    %1 = vector.load %arg1[%c0_1, %c0_2] : memref<4096x32xbf16, #tpu.memory_space<vmem>>, vector<4096x32xbf16>
    %cst = arith.constant dense<0.000000e+00> : vector<2x32xf32>
    %2 = tpu.matmul %0, %1, %cst {dimension_numbers = #tpu.dot_dimension_numbers<[1], [0], [0], [1], [0, 0, 1, 1], [], []>} : vector<2x4096xbf16>, vector<4096x32xbf16>, vector<2x32xf32> -> vector<2x32xf32>
    %c0_3 = arith.constant 0 : index
    %c0_4 = arith.constant 0 : index
    %3 = vector.load %arg2[%c0_3, %c0_4] : memref<1x32xf32, #tpu.memory_space<vmem>>, vector<1x32xf32>
    %4 = vector.broadcast %3 : vector<1x32xf32> to vector<2x32xf32>
    %5 = arith.addf %2, %4 : vector<2x32xf32>
    %c0_5 = arith.constant 0 : index
    %c0_6 = arith.constant 0 : index
    %6 = vector.load %arg5[%c0_5, %c0_6] : memref<2x32xf32, #tpu.memory_space<vmem>>, vector<2x32xf32>
    tpu.vector_store %arg5[%c0_5, %c0_6], %5 {strides = array<i32>} : memref<2x32xf32, #tpu.memory_space<vmem>>, vector<2x32xf32>,
    %cst_7 = arith.constant 0.000000e+00 : f32
    %7 = vector.broadcast %cst_7 : f32 to vector<2x32xf32>
    %8 = arith.maximumf %5, %7 : vector<2x32xf32>
    %9 = arith.truncf %8 : vector<2x32xf32> to vector<2x32xbf16>
    %c0_8 = arith.constant 0 : index
    %c0_9 = arith.constant 0 : index
    %10 = vector.load %arg3[%c0_8, %c0_9] : memref<32x10xbf16, #tpu.memory_space<vmem>>, vector<32x10xbf16>
    %cst_10 = arith.constant dense<0.000000e+00> : vector<2x10xf32>
    %11 = tpu.matmul %9, %10, %cst_10 {dimension_numbers = #tpu.dot_dimension_numbers<[1], [0], [0], [1], [0, 0, 1, 1], [], []>} : vector<2x32xbf16>, vector<32x10xbf16>, vector<2x10xf32> -> vector<2x10xf32>
    %c0_11 = arith.constant 0 : index
    %c0_12 = arith.constant 0 : index
    %12 = vector.load %arg4[%c0_11, %c0_12] : memref<1x10xf32, #tpu.memory_space<vmem>>, vector<1x10xf32>
    %13 = vector.broadcast %12 : vector<1x10xf32> to vector<2x10xf32>
    %14 = arith.addf %11, %13 : vector<2x10xf32>
    %c0_13 = arith.constant 0 : index
    %c0_14 = arith.constant 0 : index
    %15 = vector.load %arg6[%c0_13, %c0_14] : memref<2x10xf32, #tpu.memory_space<vmem>>, vector<2x10xf32>
    tpu.vector_store %arg6[%c0_13, %c0_14], %14 {strides = array<i32>} : memref<2x10xf32, #tpu.memory_space<vmem>>, vector<2x10xf32>,
    return
  }
}

</mosaic_0001>

<llo_original>
// kernel: server_model_forward.2
$region0: #{server_model_forward.2}
  #allocation0 [shape = 'u32[]', space=smem, size = 0x4, offset = 0x4, fixed_abs, tag = 'smem constant byte address 0x4 - core index']
  #allocation1 [shape = 'u32[144,128]{1,0:T(1,128)}', space=vmem, size = 0x12000, scoped, tag = 'internal scratch']
  #allocation2 [shape = 'f32[96,72]{1,0:T(8,128)}', space=vmem, size = 0xc000, scoped, tag = 'scratch operand']
  #allocation3 [shape = 'f32[96,96]{1,0:T(8,128)}', space=vmem, size = 0xc000, scoped, tag = 'scratch operand']
  %s0 = inlined_call_operand.hbm [shape: f32[2,64,12], index: 0, kind: input, shape index: {}]
  %s1 = inlined_call_operand.vmem [shape: bf16[12,72], index: 1, kind: input, shape index: {}]
  %s2 = inlined_call_operand.hbm [shape: f32[1,72], index: 2, kind: input, shape index: {}]
  %s3 = inlined_call_operand.vmem [shape: f32[9,72], index: 3, kind: input, shape index: {}]
  %s4 = inlined_call_operand.hbm [shape: f32[1,72], index: 4, kind: input, shape index: {}]
  %s5 = inlined_call_operand.vmem [shape: bf16[72,16], index: 5, kind: input, shape index: {}]
  %s6 = inlined_call_operand.hbm [shape: f32[1,16], index: 6, kind: input, shape index: {}]
  %s7 = inlined_call_operand.vmem [shape: bf16[16,96], index: 7, kind: input, shape index: {}]
  %s8 = inlined_call_operand.hbm [shape: f32[1,96], index: 8, kind: input, shape index: {}]
  %s9 = inlined_call_operand.vmem [shape: f32[9,96], index: 9, kind: input, shape index: {}]
  %s10 = inlined_call_operand.hbm [shape: f32[1,96], index: 10, kind: input, shape index: {}]
  %s11 = inlined_call_operand.vmem [shape: bf16[96,16], index: 11, kind: input, shape index: {}]
  %s12 = inlined_call_operand.hbm [shape: f32[1,16], index: 12, kind: input, shape index: {}]
  %s13 = inlined_call_operand.vmem [shape: bf16[16,64], index: 13, kind: input, shape index: {}]
  %s14 = inlined_call_operand.hbm [shape: f32[1,64], index: 14, kind: input, shape index: {}]
  %s15 = inlined_call_operand.vmem [shape: bf16[2,64,64], index: 15, kind: output, shape index: {}]
  %s16 = sld [smem:[#allocation0]]
  $region125: #{server_model_forward.2} parent=0
    _
  %s18 = ssub.s32 1, %s16
  %s19 = scalar_select 0, %s18, %s16
  $region1: #{server_model_forward.2} parent=0
    #allocation4 [shape = 'u8[65536]{0}', space=vmem, size = 0x10000, scoped, tag = 'input window, operand 0']
    #allocation5 [shape = 's32[2]{0}', space=sflag, size = 0x8, scoped, tag = 'scoped memory for server_model_forward.2']
    #allocation6 [shape = 'u8[512]{0}', space=vmem, size = 0x400, scoped, tag = 'input window, operand 2, single buffered']
    #allocation7 [shape = 's32[1]{0}', space=sflag, size = 0x4, scoped, tag = 'scoped memory for server_model_forward.2']
    #allocation8 [shape = 'u8[512]{0}', space=vmem, size = 0x400, scoped, tag = 'input window, operand 4, single buffered']
    #allocation9 [shape = 'u8[512]{0}', space=vmem, size = 0x400, scoped, tag = 'input window, operand 6, single buffered']
    #allocation10 [shape = 's32[1]{0}', space=sflag, size = 0x4, scoped, tag = 'scoped memory for server_model_forward.2']
    #allocation11 [shape = 'u8[512]{0}', space=vmem, size = 0x400, scoped, tag = 'input window, operand 8, single buffered']
    #allocation12 [shape = 'u8[512]{0}', space=vmem, size = 0x400, scoped, tag = 'input window, operand 10, single buffered']
    #allocation13 [shape = 's32[1]{0}', space=sflag, size = 0x4, scoped, tag = 'scoped memory for server_model_forward.2']
    #allocation14 [shape = 'u8[512]{0}', space=vmem, size = 0x400, scoped, tag = 'input window, operand 12, single buffered']
    #allocation15 [shape = 'u8[512]{0}', space=vmem, size = 0x400, scoped, tag = 'input window, operand 14, single buffered']
    #allocation16 [shape = 's32[1]{0}', space=sflag, size = 0x4, scoped, tag = 'scoped memory for server_model_forward.2']
    %20 = vsyncpa [#allocation5], 0
    %s21 = scalar_lea.sflag [#allocation5], 1
    %22 = vsyncpa %s21, 0
    %23 = vsyncpa [#allocation7], 0
    %24 = vsyncpa [#allocation10], 0
    %25 = vsyncpa [#allocation13], 0
    %26 = vsyncpa [#allocation16], 0
    loop: start=0, step=1, limit=4
    $region2: #{server_model_forward.2} parent=1 // loop_pre_header
      _
    $region3: #{server_model_forward.2} parent=1 // loop_header
      %s28 = sphi 0, %s32
      %p29 = scmp.ge.s32.totalorder %s28, 4
      %s38 = sphi 0, %s40
      %s41 = sphi 0, %s38
      %s42 = sphi 0, %s41
      %s58 = sphi 0, %s42
      %s62 = sphi 0, %s62
      %s64 = sphi 0, %s62
      %s65 = sphi 0, %s64
      %s79 = sphi 0, %s65
      %s83 = sphi 0, %s83
      %s85 = sphi 0, %s83
      %s86 = sphi 0, %s85
      %s100 = sphi 0, %s86
      %s104 = sphi 0, %s104
      %s106 = sphi 0, %s104
      %s107 = sphi 0, %s106
      %s121 = sphi 0, %s107
      %s125 = sphi 0, %s125
      %s127 = sphi 0, %s125
      %s128 = sphi 0, %s127
      %s142 = sphi 0, %s128
      %s146 = sphi 0, %s146
      %s148 = sphi 0, %s146
      %s149 = sphi 0, %s148
      %s163 = sphi 0, %s149
      %s167 = sphi 0, %s167
      %s169 = sphi 0, %s167
      %s170 = sphi 0, %s169
      %s184 = sphi 0, %s170
      %s188 = sphi 0, %s188
      %s190 = sphi 0, %s188
      %s191 = sphi 0, %s190
      %s205 = sphi 0, %s191
      %s209 = sphi 0, %s209
      %s211 = sphi 0, %s209
      %s212 = sphi 0, %s211
      %s226 = sphi 0, %s212
      %s230 = sphi 0, %s230
      %s232 = sphi 0, %s230
      %s233 = sphi 0, %s232
      %s247 = sphi 0, %s233
      %s251 = sphi 0, %s251
      %s253 = sphi 0, %s251
      %s254 = sphi 0, %s253
      %s268 = sphi 0, %s254
      %s272 = sphi 0, %s272
      %s274 = sphi 0, %s272
      %s275 = sphi 0, %s274
      %s289 = sphi 0, %s275
      %s293 = sphi 0, %s293
      %s295 = sphi 0, %s293
      %s296 = sphi 0, %s295
      %s310 = sphi 0, %s296
      %s314 = sphi 0, %s314
      %s316 = sphi 0, %s314
      %s317 = sphi 0, %s316
      %s331 = sphi 0, %s317
      %s335 = sphi 0, %s335
      %s337 = sphi 0, %s335
      %s338 = sphi 0, %s337
      %s352 = sphi 0, %s338
      %s358 = sphi 0, %s360
      %s361 = sphi 0, %s358
      %s362 = sphi 0, %s361
      %s378 = sphi 0, %s362
    $region4: #{server_model_forward.2} parent=1 // loop_header_branch
      %31 = sbr.rel (%p29) target = $region8
    $region5: #{server_model_forward.2} parent=1 // loop_body
      %s33 = ssub.s32 %s28, 1
      %s34 = ssub.s32 %s28, 2
      %s35 = sadd.s32 %s28, 1
      %s36 = ssub.s32 %s28, %s35
      %p37 = scmp.eq.s32.totalorder %s36, 0
      %s39 = sadd.s32 %s38, 1
      %s40 = scalar_select %p37, %s38, %s39
      %p43 = pneg %p37
      %p44 = scmp.eq.s32.totalorder %s28, 1
      %p45 = por %p43, %p44
      %p46 = scmp.ne.s32.totalorder %s38, %s41
      %p47 = scmp.eq.s32.totalorder %s28, 0
      %p48 = por %p46, %p47
      %p49 = scmp.ne.s32.totalorder %s38, %s41
      %p50 = scmp.eq.s32.totalorder %s33, 1
      %p51 = por %p49, %p50
      %p52 = scmp.ne.s32.totalorder %s41, %s42
      %p53 = scmp.eq.s32.totalorder %s33, 0
      %p54 = por %p52, %p53
      %p55 = scmp.ne.s32.totalorder %s41, %s42
      %p56 = scmp.eq.s32.totalorder %s34, 1
      %p57 = por %p55, %p56
      %p59 = scmp.ne.s32.totalorder %s42, %s58
      %p60 = scmp.eq.s32.totalorder %s34, 0
      %p61 = por %p59, %p60
      %s63 = sadd.s32 %s62, 1
      %p66 = scmp.eq.s32.totalorder %s28, 1
      %p67 = scmp.ne.s32.totalorder %s62, %s64
      %p68 = scmp.eq.s32.totalorder %s28, 0
      %p69 = por %p67, %p68
      %p70 = scmp.ne.s32.totalorder %s62, %s64
      %p71 = scmp.eq.s32.totalorder %s33, 1
      %p72 = por %p70, %p71
      %p73 = scmp.ne.s32.totalorder %s64, %s65
      %p74 = scmp.eq.s32.totalorder %s33, 0
      %p75 = por %p73, %p74
      %p76 = scmp.ne.s32.totalorder %s64, %s65
      %p77 = scmp.eq.s32.totalorder %s34, 1
      %p78 = por %p76, %p77
      %p80 = scmp.ne.s32.totalorder %s65, %s79
      %p81 = scmp.eq.s32.totalorder %s34, 0
      %p82 = por %p80, %p81
      %s84 = sadd.s32 %s83, 1
      %p87 = scmp.eq.s32.totalorder %s28, 1
      %p88 = scmp.ne.s32.totalorder %s83, %s85
      %p89 = scmp.eq.s32.totalorder %s28, 0
      %p90 = por %p88, %p89
      %p91 = scmp.ne.s32.totalorder %s83, %s85
      %p92 = scmp.eq.s32.totalorder %s33, 1
      %p93 = por %p91, %p92
      %p94 = scmp.ne.s32.totalorder %s85, %s86
      %p95 = scmp.eq.s32.totalorder %s33, 0
      %p96 = por %p94, %p95
      %p97 = scmp.ne.s32.totalorder %s85, %s86
      %p98 = scmp.eq.s32.totalorder %s34, 1
      %p99 = por %p97, %p98
      %p101 = scmp.ne.s32.totalorder %s86, %s100
      %p102 = scmp.eq.s32.totalorder %s34, 0
      %p103 = por %p101, %p102
      %s105 = sadd.s32 %s104, 1
      %p108 = scmp.eq.s32.totalorder %s28, 1
      %p109 = scmp.ne.s32.totalorder %s104, %s106
      %p110 = scmp.eq.s32.totalorder %s28, 0
      %p111 = por %p109, %p110
      %p112 = scmp.ne.s32.totalorder %s104, %s106
      %p113 = scmp.eq.s32.totalorder %s33, 1
      %p114 = por %p112, %p113
      %p115 = scmp.ne.s32.totalorder %s106, %s107
      %p116 = scmp.eq.s32.totalorder %s33, 0
      %p117 = por %p115, %p116
      %p118 = scmp.ne.s32.totalorder %s106, %s107
      %p119 = scmp.eq.s32.totalorder %s34, 1
      %p120 = por %p118, %p119
      %p122 = scmp.ne.s32.totalorder %s107, %s121
      %p123 = scmp.eq.s32.totalorder %s34, 0
      %p124 = por %p122, %p123
      %s126 = sadd.s32 %s125, 1
      %p129 = scmp.eq.s32.totalorder %s28, 1
      %p130 = scmp.ne.s32.totalorder %s125, %s127
      %p131 = scmp.eq.s32.totalorder %s28, 0
      %p132 = por %p130, %p131
      %p133 = scmp.ne.s32.totalorder %s125, %s127
      %p134 = scmp.eq.s32.totalorder %s33, 1
      %p135 = por %p133, %p134
      %p136 = scmp.ne.s32.totalorder %s127, %s128
      %p137 = scmp.eq.s32.totalorder %s33, 0
      %p138 = por %p136, %p137
      %p139 = scmp.ne.s32.totalorder %s127, %s128
      %p140 = scmp.eq.s32.totalorder %s34, 1
      %p141 = por %p139, %p140
      %p143 = scmp.ne.s32.totalorder %s128, %s142
      %p144 = scmp.eq.s32.totalorder %s34, 0
      %p145 = por %p143, %p144
      %s147 = sadd.s32 %s146, 1
      %p150 = scmp.eq.s32.totalorder %s28, 1
      %p151 = scmp.ne.s32.totalorder %s146, %s148
      %p152 = scmp.eq.s32.totalorder %s28, 0
      %p153 = por %p151, %p152
      %p154 = scmp.ne.s32.totalorder %s146, %s148
      %p155 = scmp.eq.s32.totalorder %s33, 1
      %p156 = por %p154, %p155
      %p157 = scmp.ne.s32.totalorder %s148, %s149
      %p158 = scmp.eq.s32.totalorder %s33, 0
      %p159 = por %p157, %p158
      %p160 = scmp.ne.s32.totalorder %s148, %s149
      %p161 = scmp.eq.s32.totalorder %s34, 1
      %p162 = por %p160, %p161
      %p164 = scmp.ne.s32.totalorder %s149, %s163
      %p165 = scmp.eq.s32.totalorder %s34, 0
      %p166 = por %p164, %p165
      %s168 = sadd.s32 %s167, 1
      %p171 = scmp.eq.s32.totalorder %s28, 1
      %p172 = scmp.ne.s32.totalorder %s167, %s169
      %p173 = scmp.eq.s32.totalorder %s28, 0
      %p174 = por %p172, %p173
      %p175 = scmp.ne.s32.totalorder %s167, %s169
      %p176 = scmp.eq.s32.totalorder %s33, 1
      %p177 = por %p175, %p176
      %p178 = scmp.ne.s32.totalorder %s169, %s170
      %p179 = scmp.eq.s32.totalorder %s33, 0
      %p180 = por %p178, %p179
      %p181 = scmp.ne.s32.totalorder %s169, %s170
      %p182 = scmp.eq.s32.totalorder %s34, 1
      %p183 = por %p181, %p182
      %p185 = scmp.ne.s32.totalorder %s170, %s184
      %p186 = scmp.eq.s32.totalorder %s34, 0
      %p187 = por %p185, %p186
      %s189 = sadd.s32 %s188, 1
      %p192 = scmp.eq.s32.totalorder %s28, 1
      %p193 = scmp.ne.s32.totalorder %s188, %s190
      %p194 = scmp.eq.s32.totalorder %s28, 0
      %p195 = por %p193, %p194
      %p196 = scmp.ne.s32.totalorder %s188, %s190
      %p197 = scmp.eq.s32.totalorder %s33, 1
      %p198 = por %p196, %p197
      %p199 = scmp.ne.s32.totalorder %s190, %s191
      %p200 = scmp.eq.s32.totalorder %s33, 0
      %p201 = por %p199, %p200
      %p202 = scmp.ne.s32.totalorder %s190, %s191
      %p203 = scmp.eq.s32.totalorder %s34, 1
      %p204 = por %p202, %p203
      %p206 = scmp.ne.s32.totalorder %s191, %s205
      %p207 = scmp.eq.s32.totalorder %s34, 0
      %p208 = por %p206, %p207
      %s210 = sadd.s32 %s209, 1
      %p213 = scmp.eq.s32.totalorder %s28, 1
      %p214 = scmp.ne.s32.totalorder %s209, %s211
      %p215 = scmp.eq.s32.totalorder %s28, 0
      %p216 = por %p214, %p215
      %p217 = scmp.ne.s32.totalorder %s209, %s211
      %p218 = scmp.eq.s32.totalorder %s33, 1
      %p219 = por %p217, %p218
      %p220 = scmp.ne.s32.totalorder %s211, %s212
      %p221 = scmp.eq.s32.totalorder %s33, 0
      %p222 = por %p220, %p221
      %p223 = scmp.ne.s32.totalorder %s211, %s212
      %p224 = scmp.eq.s32.totalorder %s34, 1
      %p225 = por %p223, %p224
      %p227 = scmp.ne.s32.totalorder %s212, %s226
      %p228 = scmp.eq.s32.totalorder %s34, 0
      %p229 = por %p227, %p228
      %s231 = sadd.s32 %s230, 1
      %p234 = scmp.eq.s32.totalorder %s28, 1
      %p235 = scmp.ne.s32.totalorder %s230, %s232
      %p236 = scmp.eq.s32.totalorder %s28, 0
      %p237 = por %p235, %p236
      %p238 = scmp.ne.s32.totalorder %s230, %s232
      %p239 = scmp.eq.s32.totalorder %s33, 1
      %p240 = por %p238, %p239
      %p241 = scmp.ne.s32.totalorder %s232, %s233
      %p242 = scmp.eq.s32.totalorder %s33, 0
      %p243 = por %p241, %p242
      %p244 = scmp.ne.s32.totalorder %s232, %s233
      %p245 = scmp.eq.s32.totalorder %s34, 1
      %p246 = por %p244, %p245
      %p248 = scmp.ne.s32.totalorder %s233, %s247
      %p249 = scmp.eq.s32.totalorder %s34, 0
      %p250 = por %p248, %p249
      %s252 = sadd.s32 %s251, 1
      %p255 = scmp.eq.s32.totalorder %s28, 1
      %p256 = scmp.ne.s32.totalorder %s251, %s253
      %p257 = scmp.eq.s32.totalorder %s28, 0
      %p258 = por %p256, %p257
      %p259 = scmp.ne.s32.totalorder %s251, %s253
      %p260 = scmp.eq.s32.totalorder %s33, 1
      %p261 = por %p259, %p260
      %p262 = scmp.ne.s32.totalorder %s253, %s254
      %p263 = scmp.eq.s32.totalorder %s33, 0
      %p264 = por %p262, %p263
      %p265 = scmp.ne.s32.totalorder %s253, %s254
      %p266 = scmp.eq.s32.totalorder %s34, 1
      %p267 = por %p265, %p266
      %p269 = scmp.ne.s32.totalorder %s254, %s268
      %p270 = scmp.eq.s32.totalorder %s34, 0
      %p271 = por %p269, %p270
      %s273 = sadd.s32 %s272, 1
      %p276 = scmp.eq.s32.totalorder %s28, 1
      %p277 = scmp.ne.s32.totalorder %s272, %s274
      %p278 = scmp.eq.s32.totalorder %s28, 0
      %p279 = por %p277, %p278
      %p280 = scmp.ne.s32.totalorder %s272, %s274
      %p281 = scmp.eq.s32.totalorder %s33, 1
      %p282 = por %p280, %p281
      %p283 = scmp.ne.s32.totalorder %s274, %s275
      %p284 = scmp.eq.s32.totalorder %s33, 0
      %p285 = por %p283, %p284
      %p286 = scmp.ne.s32.totalorder %s274, %s275
      %p287 = scmp.eq.s32.totalorder %s34, 1
      %p288 = por %p286, %p287
      %p290 = scmp.ne.s32.totalorder %s275, %s289
      %p291 = scmp.eq.s32.totalorder %s34, 0
      %p292 = por %p290, %p291
      %s294 = sadd.s32 %s293, 1
      %p297 = scmp.eq.s32.totalorder %s28, 1
      %p298 = scmp.ne.s32.totalorder %s293, %s295
      %p299 = scmp.eq.s32.totalorder %s28, 0
      %p300 = por %p298, %p299
      %p301 = scmp.ne.s32.totalorder %s293, %s295
      %p302 = scmp.eq.s32.totalorder %s33, 1
      %p303 = por %p301, %p302
      %p304 = scmp.ne.s32.totalorder %s295, %s296
      %p305 = scmp.eq.s32.totalorder %s33, 0
      %p306 = por %p304, %p305
      %p307 = scmp.ne.s32.totalorder %s295, %s296
      %p308 = scmp.eq.s32.totalorder %s34, 1
      %p309 = por %p307, %p308
      %p311 = scmp.ne.s32.totalorder %s296, %s310
      %p312 = scmp.eq.s32.totalorder %s34, 0
      %p313 = por %p311, %p312
      %s315 = sadd.s32 %s314, 1
      %p318 = scmp.eq.s32.totalorder %s28, 1
      %p319 = scmp.ne.s32.totalorder %s314, %s316
      %p320 = scmp.eq.s32.totalorder %s28, 0
      %p321 = por %p319, %p320
      %p322 = scmp.ne.s32.totalorder %s314, %s316
      %p323 = scmp.eq.s32.totalorder %s33, 1
      %p324 = por %p322, %p323
      %p325 = scmp.ne.s32.totalorder %s316, %s317
      %p326 = scmp.eq.s32.totalorder %s33, 0
      %p327 = por %p325, %p326
      %p328 = scmp.ne.s32.totalorder %s316, %s317
      %p329 = scmp.eq.s32.totalorder %s34, 1
      %p330 = por %p328, %p329
      %p332 = scmp.ne.s32.totalorder %s317, %s331
      %p333 = scmp.eq.s32.totalorder %s34, 0
      %p334 = por %p332, %p333
      %s336 = sadd.s32 %s335, 1
      %p339 = scmp.eq.s32.totalorder %s28, 1
      %p340 = scmp.ne.s32.totalorder %s335, %s337
      %p341 = scmp.eq.s32.totalorder %s28, 0
      %p342 = por %p340, %p341
      %p343 = scmp.ne.s32.totalorder %s335, %s337
      %p344 = scmp.eq.s32.totalorder %s33, 1
      %p345 = por %p343, %p344
      %p346 = scmp.ne.s32.totalorder %s337, %s338
      %p347 = scmp.eq.s32.totalorder %s33, 0
      %p348 = por %p346, %p347
      %p349 = scmp.ne.s32.totalorder %s337, %s338
      %p350 = scmp.eq.s32.totalorder %s34, 1
      %p351 = por %p349, %p350
      %p353 = scmp.ne.s32.totalorder %s338, %s352
      %p354 = scmp.eq.s32.totalorder %s34, 0
      %p355 = por %p353, %p354
      %s356 = ssub.s32 %s28, %s35
      %p357 = scmp.eq.s32.totalorder %s356, 0
      %s359 = sadd.s32 %s358, 1
      %s360 = scalar_select %p357, %s358, %s359
      %p363 = pneg %p357
      %p364 = scmp.eq.s32.totalorder %s28, 1
      %p365 = por %p363, %p364
      %p366 = scmp.ne.s32.totalorder %s358, %s361
      %p367 = scmp.eq.s32.totalorder %s28, 0
      %p368 = por %p366, %p367
      %p369 = scmp.ne.s32.totalorder %s358, %s361
      %p370 = scmp.eq.s32.totalorder %s33, 1
      %p371 = por %p369, %p370
      %p372 = scmp.ne.s32.totalorder %s361, %s362
      %p373 = scmp.eq.s32.totalorder %s33, 0
      %p374 = por %p372, %p373
      %p375 = scmp.ne.s32.totalorder %s361, %s362
      %p376 = scmp.eq.s32.totalorder %s34, 1
      %p377 = por %p375, %p376
      %p379 = scmp.ne.s32.totalorder %s362, %s378
      %p380 = scmp.eq.s32.totalorder %s34, 0
      %p381 = por %p379, %p380
      %p382 = scmp.le.s32.totalorder 1, %s28
      %p383 = scmp.lt.s32.totalorder %s28, 3
      %p384 = pnand %p382, %p383
      %p385 = pneg %p384
      // Predicated region
      $region9: #{server_model_forward.2} parent=5 // pred_check
        _
      $region10: #{server_model_forward.2} parent=5 // pred_check_branch
        %387 = sbr.rel (%p384) target = $region12
      $region11: #{server_model_forward.2} parent=5 // pred_region
        %s388 = ssub.s32 %s28, 1
        // Predicated region
        $region13: #{server_model_forward.2} parent=11 // pred_check
          %p389 = pneg %p75
        $region14: #{server_model_forward.2} parent=11 // pred_check_branch
          %391 = sbr.rel (%p389) target = $region16
        $region15: #{server_model_forward.2} parent=11 // pred_region
          _
        $region16: #{server_model_forward.2} parent=11 // pred_fallthru
          _
        // Predicated region
        $region17: #{server_model_forward.2} parent=11 // pred_check
          %p392 = pneg %p96
        $region18: #{server_model_forward.2} parent=11 // pred_check_branch
          %394 = sbr.rel (%p392) target = $region20
        $region19: #{server_model_forward.2} parent=11 // pred_region
          %s396 = ssub.s32 16, 16
          %397 = vsyncadd [#allocation7], %s396
          %s399 = sshll.u32 [#allocation6], 4
          %s400 = int_to_ptr.vmem [resolvable:$true] %s399
          %402 = dma.hbm_to_vmem [thread:$0]  %s2, 16, %s400, [#allocation7]
        $region20: #{server_model_forward.2} parent=11 // pred_fallthru
          _
        // Predicated region
        $region21: #{server_model_forward.2} parent=11 // pred_check
          %p403 = pneg %p117
        $region22: #{server_model_forward.2} parent=11 // pred_check_branch
          %405 = sbr.rel (%p403) target = $region24
        $region23: #{server_model_forward.2} parent=11 // pred_region
          _
        $region24: #{server_model_forward.2} parent=11 // pred_fallthru
          _
        // Predicated region
        $region25: #{server_model_forward.2} parent=11 // pred_check
          %p406 = pneg %p138
        $region26: #{server_model_forward.2} parent=11 // pred_check_branch
          %408 = sbr.rel (%p406) target = $region28
        $region27: #{server_model_forward.2} parent=11 // pred_region
          %s410 = ssub.s32 16, 16
          %411 = vsyncadd [#allocation7], %s410
          %s413 = sshll.u32 [#allocation8], 4
          %s414 = int_to_ptr.vmem [resolvable:$true] %s413
          %416 = dma.hbm_to_vmem [thread:$0]  %s4, 16, %s414, [#allocation7]
        $region28: #{server_model_forward.2} parent=11 // pred_fallthru
          _
        // Predicated region
        $region29: #{server_model_forward.2} parent=11 // pred_check
          %p417 = pneg %p159
        $region30: #{server_model_forward.2} parent=11 // pred_check_branch
          %419 = sbr.rel (%p417) target = $region32
        $region31: #{server_model_forward.2} parent=11 // pred_region
          _
        $region32: #{server_model_forward.2} parent=11 // pred_fallthru
          _
        // Predicated region
        $region33: #{server_model_forward.2} parent=11 // pred_check
          %p420 = pneg %p180
        $region34: #{server_model_forward.2} parent=11 // pred_check_branch
          %422 = sbr.rel (%p420) target = $region36
        $region35: #{server_model_forward.2} parent=11 // pred_region
          %s424 = ssub.s32 16, 16
          %425 = vsyncadd [#allocation10], %s424
          %s427 = sshll.u32 [#allocation9], 4
          %s428 = int_to_ptr.vmem [resolvable:$true] %s427
          %430 = dma.hbm_to_vmem [thread:$0]  %s6, 16, %s428, [#allocation10]
        $region36: #{server_model_forward.2} parent=11 // pred_fallthru
          _
        // Predicated region
        $region37: #{server_model_forward.2} parent=11 // pred_check
          %p431 = pneg %p201
        $region38: #{server_model_forward.2} parent=11 // pred_check_branch
          %433 = sbr.rel (%p431) target = $region40
        $region39: #{server_model_forward.2} parent=11 // pred_region
          _
        $region40: #{server_model_forward.2} parent=11 // pred_fallthru
          _
        // Predicated region
        $region41: #{server_model_forward.2} parent=11 // pred_check
          %p434 = pneg %p222
        $region42: #{server_model_forward.2} parent=11 // pred_check_branch
          %436 = sbr.rel (%p434) target = $region44
        $region43: #{server_model_forward.2} parent=11 // pred_region
          %s438 = ssub.s32 16, 16
          %439 = vsyncadd [#allocation10], %s438
          %s441 = sshll.u32 [#allocation11], 4
          %s442 = int_to_ptr.vmem [resolvable:$true] %s441
          %444 = dma.hbm_to_vmem [thread:$0]  %s8, 16, %s442, [#allocation10]
        $region44: #{server_model_forward.2} parent=11 // pred_fallthru
          _
        // Predicated region
        $region45: #{server_model_forward.2} parent=11 // pred_check
          %p445 = pneg %p243
        $region46: #{server_model_forward.2} parent=11 // pred_check_branch
          %447 = sbr.rel (%p445) target = $region48
        $region47: #{server_model_forward.2} parent=11 // pred_region
          _
        $region48: #{server_model_forward.2} parent=11 // pred_fallthru
          _
        // Predicated region
        $region49: #{server_model_forward.2} parent=11 // pred_check
          %p448 = pneg %p264
        $region50: #{server_model_forward.2} parent=11 // pred_check_branch
          %450 = sbr.rel (%p448) target = $region52
        $region51: #{server_model_forward.2} parent=11 // pred_region
          %s452 = ssub.s32 16, 16
          %453 = vsyncadd [#allocation13], %s452
          %s455 = sshll.u32 [#allocation12], 4
          %s456 = int_to_ptr.vmem [resolvable:$true] %s455
          %458 = dma.hbm_to_vmem [thread:$0]  %s10, 16, %s456, [#allocation13]
        $region52: #{server_model_forward.2} parent=11 // pred_fallthru
          _
        // Predicated region
        $region53: #{server_model_forward.2} parent=11 // pred_check
          %p459 = pneg %p285
        $region54: #{server_model_forward.2} parent=11 // pred_check_branch
          %461 = sbr.rel (%p459) target = $region56
        $region55: #{server_model_forward.2} parent=11 // pred_region
          _
        $region56: #{server_model_forward.2} parent=11 // pred_fallthru
          _
        // Predicated region
        $region57: #{server_model_forward.2} parent=11 // pred_check
          %p462 = pneg %p306
        $region58: #{server_model_forward.2} parent=11 // pred_check_branch
          %464 = sbr.rel (%p462) target = $region60
        $region59: #{server_model_forward.2} parent=11 // pred_region
          %s466 = ssub.s32 16, 16
          %467 = vsyncadd [#allocation13], %s466
          %s469 = sshll.u32 [#allocation14], 4
          %s470 = int_to_ptr.vmem [resolvable:$true] %s469
          %472 = dma.hbm_to_vmem [thread:$0]  %s12, 16, %s470, [#allocation13]
        $region60: #{server_model_forward.2} parent=11 // pred_fallthru
          _
        // Predicated region
        $region61: #{server_model_forward.2} parent=11 // pred_check
          %p473 = pneg %p327
        $region62: #{server_model_forward.2} parent=11 // pred_check_branch
          %475 = sbr.rel (%p473) target = $region64
        $region63: #{server_model_forward.2} parent=11 // pred_region
          _
        $region64: #{server_model_forward.2} parent=11 // pred_fallthru
          _
        // Predicated region
        $region65: #{server_model_forward.2} parent=11 // pred_check
          %p476 = pneg %p348
        $region66: #{server_model_forward.2} parent=11 // pred_check_branch
          %478 = sbr.rel (%p476) target = $region68
        $region67: #{server_model_forward.2} parent=11 // pred_region
          %s480 = ssub.s32 16, 16
          %481 = vsyncadd [#allocation16], %s480
          %s483 = sshll.u32 [#allocation15], 4
          %s484 = int_to_ptr.vmem [resolvable:$true] %s483
          %486 = dma.hbm_to_vmem [thread:$0]  %s14, 16, %s484, [#allocation16]
        $region68: #{server_model_forward.2} parent=11 // pred_fallthru
          _
      $region12: #{server_model_forward.2} parent=5 // pred_fallthru
        _
      %p487 = scmp.lt.s32.totalorder %s28, 2
      // Predicated region
      $region69: #{server_model_forward.2} parent=5 // pred_check
        %p488 = pneg %p487
      $region70: #{server_model_forward.2} parent=5 // pred_check_branch
        %490 = sbr.rel (%p488) target = $region72
      $region71: #{server_model_forward.2} parent=5 // pred_region
        // Predicated region
        $region73: #{server_model_forward.2} parent=71 // pred_check
          %p491 = pneg %p48
        $region74: #{server_model_forward.2} parent=71 // pred_check_branch
          %493 = sbr.rel (%p491) target = $region76
        $region75: #{server_model_forward.2} parent=71 // pred_region
          %s494 = sand.u32 %s38, 1
          %s495 = scalar_lea.sflag [#allocation5], %s494
          %s496 = sand.u32 %s38, 1
          %s497 = smul.addr %s496, 64
          %s498 = scalar_lea.vmem [#allocation4], %s497
          %s500 = ssub.s32 1024, 1024
          %501 = vsyncadd %s495, %s500
          %s502 = smul.addr %s28, 8
          %s503 = smul.addr %s502, 128
          %s504 = scalar_lea.hbm %s0, %s503
          %s505 = sshll.u32 %s498, 4
          %s506 = int_to_ptr.vmem [resolvable:$true] %s505
          %511 = dma.hbm_to_vmem [thread:$0]  %s504, 1024, %s506, %s495, 128, 128, 8
        $region76: #{server_model_forward.2} parent=71 // pred_fallthru
          _
      $region72: #{server_model_forward.2} parent=5 // pred_fallthru
        _
      %p512 = scmp.le.s32.totalorder 1, %s28
      %p513 = scmp.lt.s32.totalorder %s28, 3
      %p514 = pnand %p512, %p513
      %p515 = pneg %p514
      // Predicated region
      $region77: #{server_model_forward.2} parent=5 // pred_check
        _
      $region78: #{server_model_forward.2} parent=5 // pred_check_branch
        %517 = sbr.rel (%p514) target = $region80
      $region79: #{server_model_forward.2} parent=5 // pred_region
        %s518 = ssub.s32 %s28, 1
        %s519 = sand.u32 %s41, 1
        %s520 = scalar_lea.sflag [#allocation5], %s519
        %s521 = sand.u32 %s41, 1
        %s522 = smul.addr %s521, 64
        %s523 = scalar_lea.vmem [#allocation4], %s522
        // Predicated region
        $region81: #{server_model_forward.2} parent=79 // pred_check
          %p524 = pneg %p54
        $region82: #{server_model_forward.2} parent=79 // pred_check_branch
          %526 = sbr.rel (%p524) target = $region84
        $region83: #{server_model_forward.2} parent=79 // pred_region
          %527 = dma.done %s520, 1024
        $region84: #{server_model_forward.2} parent=79 // pred_fallthru
          _
        // Predicated region
        $region85: #{server_model_forward.2} parent=79 // pred_check
          %p528 = pneg %p96
        $region86: #{server_model_forward.2} parent=79 // pred_check_branch
          %530 = sbr.rel (%p528) target = $region88
        $region87: #{server_model_forward.2} parent=79 // pred_region
          %531 = dma.done [#allocation7], 16
        $region88: #{server_model_forward.2} parent=79 // pred_fallthru
          _
        // Predicated region
        $region89: #{server_model_forward.2} parent=79 // pred_check
          %p532 = pneg %p138
        $region90: #{server_model_forward.2} parent=79 // pred_check_branch
          %534 = sbr.rel (%p532) target = $region92
        $region91: #{server_model_forward.2} parent=79 // pred_region
          %535 = dma.done [#allocation7], 16
        $region92: #{server_model_forward.2} parent=79 // pred_fallthru
          _
        // Predicated region
        $region93: #{server_model_forward.2} parent=79 // pred_check
          %p536 = pneg %p180
        $region94: #{server_model_forward.2} parent=79 // pred_check_branch
          %538 = sbr.rel (%p536) target = $region96
        $region95: #{server_model_forward.2} parent=79 // pred_region
          %539 = dma.done [#allocation10], 16
        $region96: #{server_model_forward.2} parent=79 // pred_fallthru
          _
        // Predicated region
        $region97: #{server_model_forward.2} parent=79 // pred_check
          %p540 = pneg %p222
        $region98: #{server_model_forward.2} parent=79 // pred_check_branch
          %542 = sbr.rel (%p540) target = $region100
        $region99: #{server_model_forward.2} parent=79 // pred_region
          %543 = dma.done [#allocation10], 16
        $region100: #{server_model_forward.2} parent=79 // pred_fallthru
          _
        // Predicated region
        $region101: #{server_model_forward.2} parent=79 // pred_check
          %p544 = pneg %p264
        $region102: #{server_model_forward.2} parent=79 // pred_check_branch
          %546 = sbr.rel (%p544) target = $region104
        $region103: #{server_model_forward.2} parent=79 // pred_region
          %547 = dma.done [#allocation13], 16
        $region104: #{server_model_forward.2} parent=79 // pred_fallthru
          _
        // Predicated region
        $region105: #{server_model_forward.2} parent=79 // pred_check
          %p548 = pneg %p306
        $region106: #{server_model_forward.2} parent=79 // pred_check_branch
          %550 = sbr.rel (%p548) target = $region108
        $region107: #{server_model_forward.2} parent=79 // pred_region
          %551 = dma.done [#allocation13], 16
        $region108: #{server_model_forward.2} parent=79 // pred_fallthru
          _
        // Predicated region
        $region109: #{server_model_forward.2} parent=79 // pred_check
          %p552 = pneg %p348
        $region110: #{server_model_forward.2} parent=79 // pred_check_branch
          %554 = sbr.rel (%p552) target = $region112
        $region111: #{server_model_forward.2} parent=79 // pred_region
          %555 = dma.done [#allocation16], 16
        $region112: #{server_model_forward.2} parent=79 // pred_fallthru
          _
        %s556 = sand.u32 %s41, 1
        %s557 = scalar_lea.sflag [#allocation5], %s556
        %s558 = sand.u32 %s41, 1
        %s559 = smul.addr %s558, 64
        %s560 = scalar_lea.vmem [#allocation4], %s559
        %p561 = pneg %p54
        %p562 = pneg %p51
        %p563 = pneg %p75
        %p564 = pneg %p72
        %p565 = pneg %p96
        %p566 = pneg %p93
        %p567 = pneg %p117
        %p568 = pneg %p114
        %p569 = pneg %p138
        %p570 = pneg %p135
        %p571 = pneg %p159
        %p572 = pneg %p156
        %p573 = pneg %p180
        %p574 = pneg %p177
        %p575 = pneg %p201
        %p576 = pneg %p198
        %p577 = pneg %p222
        %p578 = pneg %p219
        %p579 = pneg %p243
        %p580 = pneg %p240
        %p581 = pneg %p264
        %p582 = pneg %p261
        %p583 = pneg %p285
        %p584 = pneg %p282
        %p585 = pneg %p306
        %p586 = pneg %p303
        %p587 = pneg %p327
        %p588 = pneg %p324
        %p589 = pneg %p348
        %p590 = pneg %p345
        %p591 = pneg %p374
        %p592 = pneg %p371
        %p593 = scmp.lt.s32.totalorder %s33, 1
        %s594 = scalar_select %p593, %s33, 1
        %s595 = smul.addr %s594, 8
        %s596 = smul.addr %s595, 4
        %s597 = scalar_lea.vmem %s15, %s596
        %p598 = scmp.lt.s32.totalorder %s33, 1
        %s599 = scalar_select %p598, %s33, 1
        %s600 = smul.addr %s599, 8
        %s601 = smul.addr %s600, 4
        %s602 = scalar_lea.vmem %s15, %s601
        %v604 = vld [vmem:[%s523] sm:$0xff]
        %v605 = vld [vmem:[%s523 + $0x8] sm:$0xff]
        %v606 = vld [vmem:[%s523 + $0x10] sm:$0xff]
        %v607 = vld [vmem:[%s523 + $0x18] sm:$0xff]
        %v608 = vld [vmem:[%s523 + $0x20] sm:$0xff]
        %v609 = vld [vmem:[%s523 + $0x28] sm:$0xff]
        %v610 = vld [vmem:[%s523 + $0x30] sm:$0xff]
        %v611 = vld [vmem:[%s523 + $0x38] sm:$0xff]
        %v612 = vpack.c.bf16 %v605, %v604
        %v613 = vpack.c.bf16 %v607, %v606
        %v614 = vpack.c.bf16 %v609, %v608
        %v615 = vpack.c.bf16 %v611, %v610
        %v616 = vlaneseq
        %v617 = vshrl.u32 %v616, 7
        %v618 = vadd.s32 %v617, 8
        %v619 = vadd.s32 %v617, 16
        %v620 = vadd.s32 %v617, 24
        %v621 = vadd.s32 %v617, 32
        %v622 = vadd.s32 %v617, 40
        %v623 = vadd.s32 %v617, 48
        %v624 = vadd.s32 %v617, 56
        %vm625 = vcmp.lt.s32.totalorder %v617, 0
        %v626 = vsub.s32 0, %v617
        %v627 = vsel %vm625, %v626, %v617
        %v628 = vshrl.u32 %v627, 3
        %v629 = vand.u32 %v627, 7
        %v630 = vsub.s32 0, %v629
        %v631 = vsel %vm625, %v630, %v629
        %vm632 = vcmp.lt.s32.totalorder %v618, 0
        %v633 = vsub.s32 0, %v618
        %v634 = vsel %vm632, %v633, %v618
        %v635 = vshrl.u32 %v634, 3
        %v636 = vand.u32 %v634, 7
        %v637 = vsub.s32 0, %v636
        %v638 = vsel %vm632, %v637, %v636
        %vm639 = vcmp.lt.s32.totalorder %v619, 0
        %v640 = vsub.s32 0, %v619
        %v641 = vsel %vm639, %v640, %v619
        %v642 = vshrl.u32 %v641, 3
        %v643 = vand.u32 %v641, 7
        %v644 = vsub.s32 0, %v643
        %v645 = vsel %vm639, %v644, %v643
        %vm646 = vcmp.lt.s32.totalorder %v620, 0
        %v647 = vsub.s32 0, %v620
        %v648 = vsel %vm646, %v647, %v620
        %v649 = vshrl.u32 %v648, 3
        %v650 = vand.u32 %v648, 7
        %v651 = vsub.s32 0, %v650
        %v652 = vsel %vm646, %v651, %v650
        %vm653 = vcmp.lt.s32.totalorder %v621, 0
        %v654 = vsub.s32 0, %v621
        %v655 = vsel %vm653, %v654, %v621
        %v656 = vshrl.u32 %v655, 3
        %v657 = vand.u32 %v655, 7
        %v658 = vsub.s32 0, %v657
        %v659 = vsel %vm653, %v658, %v657
        %vm660 = vcmp.lt.s32.totalorder %v622, 0
        %v661 = vsub.s32 0, %v622
        %v662 = vsel %vm660, %v661, %v622
        %v663 = vshrl.u32 %v662, 3
        %v664 = vand.u32 %v662, 7
        %v665 = vsub.s32 0, %v664
        %v666 = vsel %vm660, %v665, %v664
        %vm667 = vcmp.lt.s32.totalorder %v623, 0
        %v668 = vsub.s32 0, %v623
        %v669 = vsel %vm667, %v668, %v623
        %v670 = vshrl.u32 %v669, 3
        %v671 = vand.u32 %v669, 7
        %v672 = vsub.s32 0, %v671
        %v673 = vsel %vm667, %v672, %v671
        %vm674 = vcmp.lt.s32.totalorder %v624, 0
        %v675 = vsub.s32 0, %v624
        %v676 = vsel %vm674, %v675, %v624
        %v677 = vshrl.u32 %v676, 3
        %v678 = vand.u32 %v676, 7
        %v679 = vsub.s32 0, %v678
        %v680 = vsel %vm674, %v679, %v678
        %vm681 = vcmp.ne.s32.totalorder %v631, 0
        %vm682 = vcmp.ne.s32.totalorder %v638, 0
        %vm683 = vcmp.ne.s32.totalorder %v645, 0
        %vm684 = vcmp.ne.s32.totalorder %v652, 0
        %vm685 = vcmp.ne.s32.totalorder %v659, 0
        %vm686 = vcmp.ne.s32.totalorder %v666, 0
        %vm687 = vcmp.ne.s32.totalorder %v673, 0
        %vm688 = vcmp.ne.s32.totalorder %v680, 0
        %vm689 = vcmp.lt.s32.totalorder %v631, 0
        %vm690 = vcmp.lt.s32.totalorder %v638, 0
        %vm691 = vcmp.lt.s32.totalorder %v645, 0
        %vm692 = vcmp.lt.s32.totalorder %v652, 0
        %vm693 = vcmp.lt.s32.totalorder %v659, 0
        %vm694 = vcmp.lt.s32.totalorder %v666, 0
        %vm695 = vcmp.lt.s32.totalorder %v673, 0
        %vm696 = vcmp.lt.s32.totalorder %v680, 0
        %vm697 = vmand %vm689, %vm681
        %vm698 = vmand %vm690, %vm682
        %vm699 = vmand %vm691, %vm683
        %vm700 = vmand %vm692, %vm684
        %vm701 = vmand %vm693, %vm685
        %vm702 = vmand %vm694, %vm686
        %vm703 = vmand %vm695, %vm687
        %vm704 = vmand %vm696, %vm688
        %v705 = vadd.s32 %v631, 8
        %v706 = vadd.s32 %v638, 8
        %v707 = vadd.s32 %v645, 8
        %v708 = vadd.s32 %v652, 8
        %v709 = vadd.s32 %v659, 8
        %v710 = vadd.s32 %v666, 8
        %v711 = vadd.s32 %v673, 8
        %v712 = vadd.s32 %v680, 8
        %v713 = vsel %vm697, %v705, %v631
        %v714 = vsel %vm698, %v706, %v638
        %v715 = vsel %vm699, %v707, %v645
        %v716 = vsel %vm700, %v708, %v652
        %v717 = vsel %vm701, %v709, %v659
        %v718 = vsel %vm702, %v710, %v666
        %v719 = vsel %vm703, %v711, %v673
        %v720 = vsel %vm704, %v712, %v680
        %vm721 = vcmp.ne.s32.totalorder %v713, 0
        %vm722 = vcmp.ne.s32.totalorder %v714, 0
        %vm723 = vcmp.ne.s32.totalorder %v715, 0
        %vm724 = vcmp.ne.s32.totalorder %v716, 0
        %vm725 = vcmp.ne.s32.totalorder %v717, 0
        %vm726 = vcmp.ne.s32.totalorder %v718, 0
        %vm727 = vcmp.ne.s32.totalorder %v719, 0
        %vm728 = vcmp.ne.s32.totalorder %v720, 0
        %vm729 = vcmp.ne.s32.totalorder %v713, 7
        %vm730 = vcmp.ne.s32.totalorder %v714, 7
        %vm731 = vcmp.ne.s32.totalorder %v715, 7
        %vm732 = vcmp.ne.s32.totalorder %v716, 7
        %vm733 = vcmp.ne.s32.totalorder %v717, 7
        %vm734 = vcmp.ne.s32.totalorder %v718, 7
        %vm735 = vcmp.ne.s32.totalorder %v719, 7
        %vm736 = vcmp.ne.s32.totalorder %v720, 7
        %v737 = vld [vmem:[%s1] sm:$0xf]
        %v738 = vld [vmem:[%s1 + $0x4] sm:$0x3]
        %v739 = vld [vmem:[#allocation6] sm:$0x1]
        %v741 = vlaneseq
        %v742 = vshrl.u32 %v741, 7
        %v743 = vsub.s32 0, %v742
        %v744 = vrot.slane %v739, %v743
        %v748 = vunpack.c.l.b16 %v737
        %v749 = vunpack.c.l.b16 %v738
        %v750 = vpack.c.b16 %v749, %v748
        %vm751 = vcmask 97280
        %v753 = vsel %vm751, %v612, 0
        %v756 = vsel %vm751, %v613, 0
        %v759 = vsel %vm751, %v614, 0
        %v762 = vsel %vm751, %v615, 0
        %vm764 = vcmask 1045504
        %v766 = vsel %vm764, %v750, 0
        %768 = vmatprep.subr.bf16.mxu0 0
        %769 = vmatpush1.bf16.msra.mxu0 %v766
        %770 = vmatprep.subr.bf16.mxu0 0
        %771 = vmatpush1.bf16.msra.mxu0 0
        %772 = vmatprep.subr.bf16.mxu0 0
        %773 = vmatpush1.bf16.msra.mxu0 0
        %774 = vmatprep.subr.bf16.mxu0 0
        %775 = vmatpush1.bf16.msra.mxu0 0
        %776 = vmatprep.subr.bf16.mxu0 0
        %777 = vmatpush1.bf16.msra.mxu0 0
        %778 = vmatprep.subr.bf16.mxu0 0
        %779 = vmatpush1.bf16.msra.mxu0 0
        %780 = vmatprep.subr.bf16.mxu0 0
        %781 = vmatpush1.bf16.msra.mxu0 0
        %782 = vmatprep.subr.bf16.mxu0 0
        %783 = vmatpush1.bf16.msra.mxu0 0
        %784 = vmatprep.subr.bf16.mxu0 0
        %785 = vmatpush1.bf16.msra.mxu0 0
        %786 = vmatprep.subr.bf16.mxu0 0
        %787 = vmatpush1.bf16.msra.mxu0 0
        %788 = vmatprep.subr.bf16.mxu0 0
        %789 = vmatpush1.bf16.msra.mxu0 0
        %790 = vmatprep.subr.bf16.mxu0 0
        %791 = vmatpush1.bf16.msra.mxu0 0
        %792 = vmatprep.subr.bf16.mxu0 0
        %793 = vmatpush1.bf16.msra.mxu0 0
        %794 = vmatprep.subr.bf16.mxu0 0
        %795 = vmatpush1.bf16.msra.mxu0 0
        %796 = vmatprep.subr.bf16.mxu0 0
        %797 = vmatpush1.bf16.msra.mxu0 0
        %798 = vmatprep.subr.bf16.mxu0 0
        %799 = vmatpush1.bf16.msra.mxu0 0
        %800 = vmatprep.mubr.bf16.mxu0 0
        %801 = vmatmul.mubr.bf16.gmra.mrb[0].mxu0 %v753
        %v802 = vpop.f32.mrb[0].mxu0
        %v803 = vadd.f32 %v744, %v802
        %v804 = vpop.f32.mrb[0].mxu0
        %v805 = vpop.f32.mrb[0].mxu0
        %v806 = vadd.f32 %v744, %v805
        %v807 = vpop.f32.mrb[0].mxu0
        %808 = vmatprep.mubr.bf16.mxu0 0
        %809 = vmatmul.mubr.bf16.gmra.mrb[0].mxu0 %v756
        %v810 = vpop.f32.mrb[0].mxu0
        %v811 = vadd.f32 %v744, %v810
        %v812 = vpop.f32.mrb[0].mxu0
        %v813 = vpop.f32.mrb[0].mxu0
        %v814 = vadd.f32 %v744, %v813
        %v815 = vpop.f32.mrb[0].mxu0
        %816 = vmatprep.mubr.bf16.mxu0 0
        %817 = vmatmul.mubr.bf16.gmra.mrb[0].mxu0 %v759
        %v818 = vpop.f32.mrb[0].mxu0
        %v819 = vadd.f32 %v744, %v818
        %v820 = vpop.f32.mrb[0].mxu0
        %v821 = vpop.f32.mrb[0].mxu0
        %v822 = vadd.f32 %v744, %v821
        %v823 = vpop.f32.mrb[0].mxu0
        %824 = vmatprep.mubr.bf16.mxu0 0
        %825 = vmatmul.mubr.bf16.gmra.mrb[0].mxu0 %v762
        %v826 = vpop.f32.mrb[0].mxu0
        %v827 = vadd.f32 %v744, %v826
        %v828 = vpop.f32.mrb[0].mxu0
        %v829 = vpop.f32.mrb[0].mxu0
        %v830 = vadd.f32 %v744, %v829
        %v831 = vpop.f32.mrb[0].mxu0
        %832 = vdwg.mxu0
        %v833 = vmax.f32 %v803, 0.0
        %v834 = vmax.f32 %v806, 0.0
        %v835 = vmax.f32 %v811, 0.0
        %v836 = vmax.f32 %v814, 0.0
        %v837 = vmax.f32 %v819, 0.0
        %v838 = vmax.f32 %v822, 0.0
        %v839 = vmax.f32 %v827, 0.0
        %v840 = vmax.f32 %v830, 0.0
        %v841 = vmin.f32 %v833, 6.0
        %v842 = vmin.f32 %v834, 6.0
        %v843 = vmin.f32 %v835, 6.0
        %v844 = vmin.f32 %v836, 6.0
        %v845 = vmin.f32 %v837, 6.0
        %v846 = vmin.f32 %v838, 6.0
        %v847 = vmin.f32 %v839, 6.0
        %v848 = vmin.f32 %v840, 6.0
        %vm849 = vcmask 588800
        %850 = vst.msk [vmem:[#allocation2] sm:$0xff] %vm849, 0.0
        %851 = vst.msk [vmem:[#allocation2 + $0x8] sm:$0xff] %vm849, 0.0
        %852 = vst.msk [vmem:[#allocation2 + $0x50] sm:$0xff] %vm849, 0.0
        %853 = vst.msk [vmem:[#allocation2 + $0x58] sm:$0xff] %vm849, 0.0
        %854 = vst.msk [vmem:[#allocation2 + $0x10] sm:$0xff] %vm849, %v841
        %855 = vst.msk [vmem:[#allocation2 + $0x18] sm:$0xff] %vm849, %v842
        %856 = vst.msk [vmem:[#allocation2 + $0x20] sm:$0xff] %vm849, %v843
        %857 = vst.msk [vmem:[#allocation2 + $0x28] sm:$0xff] %vm849, %v844
        %858 = vst.msk [vmem:[#allocation2 + $0x30] sm:$0xff] %vm849, %v845
        %859 = vst.msk [vmem:[#allocation2 + $0x38] sm:$0xff] %vm849, %v846
        %860 = vst.msk [vmem:[#allocation2 + $0x40] sm:$0xff] %vm849, %v847
        %861 = vst.msk [vmem:[#allocation2 + $0x48] sm:$0xff] %vm849, %v848
        %v862 = vld [vmem:[#allocation2 + $0x7] sm:$0xff]
        %v863 = vld [vmem:[#allocation2 + $0xf] sm:$0xff]
        %v864 = vld [vmem:[#allocation2 + $0x17] sm:$0xff]
        %v865 = vld [vmem:[#allocation2 + $0x1f] sm:$0xff]
        %v866 = vld [vmem:[#allocation2 + $0x27] sm:$0xff]
        %v867 = vld [vmem:[#allocation2 + $0x2f] sm:$0xff]
        %v868 = vld [vmem:[#allocation2 + $0x37] sm:$0xff]
        %v869 = vld [vmem:[#allocation2 + $0x3f] sm:$0xff]
        %v870 = vsel %vm721, 1, 0
        %v871 = vsel %vm722, 1, 0
        %v872 = vsel %vm723, 1, 0
        %v873 = vsel %vm724, 1, 0
        %v874 = vsel %vm725, 1, 0
        %v875 = vsel %vm726, 1, 0
        %v876 = vsel %vm727, 1, 0
        %v877 = vsel %vm728, 1, 0
        %vm878 = vcmp.eq.s32.totalorder %v870, 1
        %vm879 = vcmp.eq.s32.totalorder %v871, 1
        %vm880 = vcmp.eq.s32.totalorder %v872, 1
        %vm881 = vcmp.eq.s32.totalorder %v873, 1
        %vm882 = vcmp.eq.s32.totalorder %v874, 1
        %vm883 = vcmp.eq.s32.totalorder %v875, 1
        %vm884 = vcmp.eq.s32.totalorder %v876, 1
        %vm885 = vcmp.eq.s32.totalorder %v877, 1
        %v886 = vsel %vm878, %v862, 0.0
        %v887 = vsel %vm879, %v863, 0.0
        %v888 = vsel %vm880, %v864, 0.0
        %v889 = vsel %vm881, %v865, 0.0
        %v890 = vsel %vm882, %v866, 0.0
        %v891 = vsel %vm883, %v867, 0.0
        %v892 = vsel %vm884, %v868, 0.0
        %v893 = vsel %vm885, %v869, 0.0
        %v894 = vld [vmem:[%s3] sm:$0x1]
        %v895 = vlaneseq
        %v896 = vshrl.u32 %v895, 7
        %v897 = vsub.s32 0, %v896
        %v898 = vrot.slane %v894, %v897
        %v899 = vmul.f32 %v886, %v898
        %v900 = vmul.f32 %v887, %v898
        %v901 = vmul.f32 %v888, %v898
        %v902 = vmul.f32 %v889, %v898
        %v903 = vmul.f32 %v890, %v898
        %v904 = vmul.f32 %v891, %v898
        %v905 = vmul.f32 %v892, %v898
        %v906 = vmul.f32 %v893, %v898
        %v907 = vld [vmem:[#allocation2 + $0x8] sm:$0xff]
        %v908 = vld [vmem:[#allocation2 + $0x10] sm:$0xff]
        %v909 = vld [vmem:[#allocation2 + $0x18] sm:$0xff]
        %v910 = vld [vmem:[#allocation2 + $0x20] sm:$0xff]
        %v911 = vld [vmem:[#allocation2 + $0x28] sm:$0xff]
        %v912 = vld [vmem:[#allocation2 + $0x30] sm:$0xff]
        %v913 = vld [vmem:[#allocation2 + $0x38] sm:$0xff]
        %v914 = vld [vmem:[#allocation2 + $0x40] sm:$0xff]
        %v915 = vld [vmem:[%s3 + $0x1] sm:$0x1]
        %v916 = vlaneseq
        %v917 = vshrl.u32 %v916, 7
        %v918 = vsub.s32 0, %v917
        %v919 = vrot.slane %v915, %v918
        %v920 = vmul.f32 %v907, %v919
        %v921 = vmul.f32 %v908, %v919
        %v922 = vmul.f32 %v909, %v919
        %v923 = vmul.f32 %v910, %v919
        %v924 = vmul.f32 %v911, %v919
        %v925 = vmul.f32 %v912, %v919
        %v926 = vmul.f32 %v913, %v919
        %v927 = vmul.f32 %v914, %v919
        %v928 = vadd.f32 %v899, %v920
        %v929 = vadd.f32 %v900, %v921
        %v930 = vadd.f32 %v901, %v922
        %v931 = vadd.f32 %v902, %v923
        %v932 = vadd.f32 %v903, %v924
        %v933 = vadd.f32 %v904, %v925
        %v934 = vadd.f32 %v905, %v926
        %v935 = vadd.f32 %v906, %v927
        %v936 = vld [vmem:[#allocation2 + $0x9] sm:$0xff]
        %v937 = vld [vmem:[#allocation2 + $0x11] sm:$0xff]
        %v938 = vld [vmem:[#allocation2 + $0x19] sm:$0xff]
        %v939 = vld [vmem:[#allocation2 + $0x21] sm:$0xff]
        %v940 = vld [vmem:[#allocation2 + $0x29] sm:$0xff]
        %v941 = vld [vmem:[#allocation2 + $0x31] sm:$0xff]
        %v942 = vld [vmem:[#allocation2 + $0x39] sm:$0xff]
        %v943 = vld [vmem:[#allocation2 + $0x41] sm:$0xff]
        %v944 = vsel %vm729, 1, 0
        %v945 = vsel %vm730, 1, 0
        %v946 = vsel %vm731, 1, 0
        %v947 = vsel %vm732, 1, 0
        %v948 = vsel %vm733, 1, 0
        %v949 = vsel %vm734, 1, 0
        %v950 = vsel %vm735, 1, 0
        %v951 = vsel %vm736, 1, 0
        %vm952 = vcmp.eq.s32.totalorder %v944, 1
        %vm953 = vcmp.eq.s32.totalorder %v945, 1
        %vm954 = vcmp.eq.s32.totalorder %v946, 1
        %vm955 = vcmp.eq.s32.totalorder %v947, 1
        %vm956 = vcmp.eq.s32.totalorder %v948, 1
        %vm957 = vcmp.eq.s32.totalorder %v949, 1
        %vm958 = vcmp.eq.s32.totalorder %v950, 1
        %vm959 = vcmp.eq.s32.totalorder %v951, 1
        %v960 = vsel %vm952, %v936, 0.0
        %v961 = vsel %vm953, %v937, 0.0
        %v962 = vsel %vm954, %v938, 0.0
        %v963 = vsel %vm955, %v939, 0.0
        %v964 = vsel %vm956, %v940, 0.0
        %v965 = vsel %vm957, %v941, 0.0
        %v966 = vsel %vm958, %v942, 0.0
        %v967 = vsel %vm959, %v943, 0.0
        %v968 = vld [vmem:[%s3 + $0x2] sm:$0x1]
        %v969 = vlaneseq
        %v970 = vshrl.u32 %v969, 7
        %v971 = vsub.s32 0, %v970
        %v972 = vrot.slane %v968, %v971
        %v973 = vmul.f32 %v960, %v972
        %v974 = vmul.f32 %v961, %v972
        %v975 = vmul.f32 %v962, %v972
        %v976 = vmul.f32 %v963, %v972
        %v977 = vmul.f32 %v964, %v972
        %v978 = vmul.f32 %v965, %v972
        %v979 = vmul.f32 %v966, %v972
        %v980 = vmul.f32 %v967, %v972
        %v981 = vadd.f32 %v928, %v973
        %v982 = vadd.f32 %v929, %v974
        %v983 = vadd.f32 %v930, %v975
        %v984 = vadd.f32 %v931, %v976
        %v985 = vadd.f32 %v932, %v977
        %v986 = vadd.f32 %v933, %v978
        %v987 = vadd.f32 %v934, %v979
        %v988 = vadd.f32 %v935, %v980
        %v989 = vld [vmem:[#allocation2 + $0x47] sm:$0xff]
        %v990 = vsel %vm878, %v863, 0.0
        %v991 = vsel %vm879, %v864, 0.0
        %v992 = vsel %vm880, %v865, 0.0
        %v993 = vsel %vm881, %v866, 0.0
        %v994 = vsel %vm882, %v867, 0.0
        %v995 = vsel %vm883, %v868, 0.0
        %v996 = vsel %vm884, %v869, 0.0
        %v997 = vsel %vm885, %v989, 0.0
        %v998 = vld [vmem:[%s3 + $0x3] sm:$0x1]
        %v999 = vlaneseq
        %v1000 = vshrl.u32 %v999, 7
        %v1001 = vsub.s32 0, %v1000
        %v1002 = vrot.slane %v998, %v1001
        %v1003 = vmul.f32 %v990, %v1002
        %v1004 = vmul.f32 %v991, %v1002
        %v1005 = vmul.f32 %v992, %v1002
        %v1006 = vmul.f32 %v993, %v1002
        %v1007 = vmul.f32 %v994, %v1002
        %v1008 = vmul.f32 %v995, %v1002
        %v1009 = vmul.f32 %v996, %v1002
        %v1010 = vmul.f32 %v997, %v1002
        %v1011 = vadd.f32 %v981, %v1003
        %v1012 = vadd.f32 %v982, %v1004
        %v1013 = vadd.f32 %v983, %v1005
        %v1014 = vadd.f32 %v984, %v1006
        %v1015 = vadd.f32 %v985, %v1007
        %v1016 = vadd.f32 %v986, %v1008
        %v1017 = vadd.f32 %v987, %v1009
        %v1018 = vadd.f32 %v988, %v1010
        %v1019 = vld [vmem:[%s3 + $0x4] sm:$0x1]
        %v1020 = vlaneseq
        %v1021 = vshrl.u32 %v1020, 7
        %v1022 = vsub.s32 0, %v1021
        %v1023 = vrot.slane %v1019, %v1022
        %v1024 = vmul.f32 %v841, %v1023
        %v1025 = vmul.f32 %v842, %v1023
        %v1026 = vmul.f32 %v843, %v1023
        %v1027 = vmul.f32 %v844, %v1023
        %v1028 = vmul.f32 %v845, %v1023
        %v1029 = vmul.f32 %v846, %v1023
        %v1030 = vmul.f32 %v847, %v1023
        %v1031 = vmul.f32 %v848, %v1023
        %v1032 = vadd.f32 %v1011, %v1024
        %v1033 = vadd.f32 %v1012, %v1025
        %v1034 = vadd.f32 %v1013, %v1026
        %v1035 = vadd.f32 %v1014, %v1027
        %v1036 = vadd.f32 %v1015, %v1028
        %v1037 = vadd.f32 %v1016, %v1029
        %v1038 = vadd.f32 %v1017, %v1030
        %v1039 = vadd.f32 %v1018, %v1031
        %v1040 = vld [vmem:[#allocation2 + $0x49] sm:$0xff]
        %v1041 = vsel %vm952, %v937, 0.0
        %v1042 = vsel %vm953, %v938, 0.0
        %v1043 = vsel %vm954, %v939, 0.0
        %v1044 = vsel %vm955, %v940, 0.0
        %v1045 = vsel %vm956, %v941, 0.0
        %v1046 = vsel %vm957, %v942, 0.0
        %v1047 = vsel %vm958, %v943, 0.0
        %v1048 = vsel %vm959, %v1040, 0.0
        %v1049 = vld [vmem:[%s3 + $0x5] sm:$0x1]
        %v1050 = vlaneseq
        %v1051 = vshrl.u32 %v1050, 7
        %v1052 = vsub.s32 0, %v1051
        %v1053 = vrot.slane %v1049, %v1052
        %v1054 = vmul.f32 %v1041, %v1053
        %v1055 = vmul.f32 %v1042, %v1053
        %v1056 = vmul.f32 %v1043, %v1053
        %v1057 = vmul.f32 %v1044, %v1053
        %v1058 = vmul.f32 %v1045, %v1053
        %v1059 = vmul.f32 %v1046, %v1053
        %v1060 = vmul.f32 %v1047, %v1053
        %v1061 = vmul.f32 %v1048, %v1053
        %v1062 = vadd.f32 %v1032, %v1054
        %v1063 = vadd.f32 %v1033, %v1055
        %v1064 = vadd.f32 %v1034, %v1056
        %v1065 = vadd.f32 %v1035, %v1057
        %v1066 = vadd.f32 %v1036, %v1058
        %v1067 = vadd.f32 %v1037, %v1059
        %v1068 = vadd.f32 %v1038, %v1060
        %v1069 = vadd.f32 %v1039, %v1061
        %v1070 = vld [vmem:[#allocation2 + $0x4f] sm:$0xff]
        %v1071 = vsel %vm878, %v864, 0.0
        %v1072 = vsel %vm879, %v865, 0.0
        %v1073 = vsel %vm880, %v866, 0.0
        %v1074 = vsel %vm881, %v867, 0.0
        %v1075 = vsel %vm882, %v868, 0.0
        %v1076 = vsel %vm883, %v869, 0.0
        %v1077 = vsel %vm884, %v989, 0.0
        %v1078 = vsel %vm885, %v1070, 0.0
        %v1079 = vld [vmem:[%s3 + $0x6] sm:$0x1]
        %v1080 = vlaneseq
        %v1081 = vshrl.u32 %v1080, 7
        %v1082 = vsub.s32 0, %v1081
        %v1083 = vrot.slane %v1079, %v1082
        %v1084 = vmul.f32 %v1071, %v1083
        %v1085 = vmul.f32 %v1072, %v1083
        %v1086 = vmul.f32 %v1073, %v1083
        %v1087 = vmul.f32 %v1074, %v1083
        %v1088 = vmul.f32 %v1075, %v1083
        %v1089 = vmul.f32 %v1076, %v1083
        %v1090 = vmul.f32 %v1077, %v1083
        %v1091 = vmul.f32 %v1078, %v1083
        %v1092 = vadd.f32 %v1062, %v1084
        %v1093 = vadd.f32 %v1063, %v1085
        %v1094 = vadd.f32 %v1064, %v1086
        %v1095 = vadd.f32 %v1065, %v1087
        %v1096 = vadd.f32 %v1066, %v1088
        %v1097 = vadd.f32 %v1067, %v1089
        %v1098 = vadd.f32 %v1068, %v1090
        %v1099 = vadd.f32 %v1069, %v1091
        %v1100 = vld [vmem:[#allocation2 + $0x48] sm:$0xff]
        %v1101 = vld [vmem:[#allocation2 + $0x50] sm:$0xff]
        %v1102 = vld [vmem:[%s3 + $0x7] sm:$0x1]
        %v1103 = vlaneseq
        %v1104 = vshrl.u32 %v1103, 7
        %v1105 = vsub.s32 0, %v1104
        %v1106 = vrot.slane %v1102, %v1105
        %v1107 = vmul.f32 %v909, %v1106
        %v1108 = vmul.f32 %v910, %v1106
        %v1109 = vmul.f32 %v911, %v1106
        %v1110 = vmul.f32 %v912, %v1106
        %v1111 = vmul.f32 %v913, %v1106
        %v1112 = vmul.f32 %v914, %v1106
        %v1113 = vmul.f32 %v1100, %v1106
        %v1114 = vmul.f32 %v1101, %v1106
        %v1115 = vadd.f32 %v1092, %v1107
        %v1116 = vadd.f32 %v1093, %v1108
        %v1117 = vadd.f32 %v1094, %v1109
        %v1118 = vadd.f32 %v1095, %v1110
        %v1119 = vadd.f32 %v1096, %v1111
        %v1120 = vadd.f32 %v1097, %v1112
        %v1121 = vadd.f32 %v1098, %v1113
        %v1122 = vadd.f32 %v1099, %v1114
        %v1123 = vld [vmem:[#allocation2 + $0x51] sm:$0xff]
        %v1124 = vsel %vm952, %v938, 0.0
        %v1125 = vsel %vm953, %v939, 0.0
        %v1126 = vsel %vm954, %v940, 0.0
        %v1127 = vsel %vm955, %v941, 0.0
        %v1128 = vsel %vm956, %v942, 0.0
        %v1129 = vsel %vm957, %v943, 0.0
        %v1130 = vsel %vm958, %v1040, 0.0
        %v1131 = vsel %vm959, %v1123, 0.0
        %v1132 = vld [vmem:[%s3 + $0x8] sm:$0x1]
        %v1133 = vlaneseq
        %v1134 = vshrl.u32 %v1133, 7
        %v1135 = vsub.s32 0, %v1134
        %v1136 = vrot.slane %v1132, %v1135
        %v1137 = vmul.f32 %v1124, %v1136
        %v1138 = vmul.f32 %v1125, %v1136
        %v1139 = vmul.f32 %v1126, %v1136
        %v1140 = vmul.f32 %v1127, %v1136
        %v1141 = vmul.f32 %v1128, %v1136
        %v1142 = vmul.f32 %v1129, %v1136
        %v1143 = vmul.f32 %v1130, %v1136
        %v1144 = vmul.f32 %v1131, %v1136
        %v1145 = vadd.f32 %v1115, %v1137
        %v1146 = vadd.f32 %v1116, %v1138
        %v1147 = vadd.f32 %v1117, %v1139
        %v1148 = vadd.f32 %v1118, %v1140
        %v1149 = vadd.f32 %v1119, %v1141
        %v1150 = vadd.f32 %v1120, %v1142
        %v1151 = vadd.f32 %v1121, %v1143
        %v1152 = vadd.f32 %v1122, %v1144
        %v1153 = vld [vmem:[#allocation8] sm:$0x1]
        %v1155 = vlaneseq
        %v1156 = vshrl.u32 %v1155, 7
        %v1157 = vsub.s32 0, %v1156
        %v1158 = vrot.slane %v1153, %v1157
        %v1160 = vadd.f32 %v1145, %v1158
        %v1161 = vadd.f32 %v1146, %v1158
        %v1162 = vadd.f32 %v1147, %v1158
        %v1163 = vadd.f32 %v1148, %v1158
        %v1164 = vadd.f32 %v1149, %v1158
        %v1165 = vadd.f32 %v1150, %v1158
        %v1166 = vadd.f32 %v1151, %v1158
        %v1167 = vadd.f32 %v1152, %v1158
        %v1168 = vmax.f32 %v1160, 0.0
        %v1169 = vmax.f32 %v1161, 0.0
        %v1170 = vmax.f32 %v1162, 0.0
        %v1171 = vmax.f32 %v1163, 0.0
        %v1172 = vmax.f32 %v1164, 0.0
        %v1173 = vmax.f32 %v1165, 0.0
        %v1174 = vmax.f32 %v1166, 0.0
        %v1175 = vmax.f32 %v1167, 0.0
        %v1176 = vmin.f32 %v1168, 6.0
        %v1177 = vmin.f32 %v1169, 6.0
        %v1178 = vmin.f32 %v1170, 6.0
        %v1179 = vmin.f32 %v1171, 6.0
        %v1180 = vmin.f32 %v1172, 6.0
        %v1181 = vmin.f32 %v1173, 6.0
        %v1182 = vmin.f32 %v1174, 6.0
        %v1183 = vmin.f32 %v1175, 6.0
        %v1184 = vpack.c.bf16 %v1177, %v1176
        %v1185 = vpack.c.bf16 %v1179, %v1178
        %v1186 = vpack.c.bf16 %v1181, %v1180
        %v1187 = vpack.c.bf16 %v1183, %v1182
        %v1188 = vld [vmem:[%s5] sm:$0xf]
        %v1189 = vld [vmem:[%s5 + $0x4] sm:$0xf]
        %v1190 = vld [vmem:[%s5 + $0x8] sm:$0xf]
        %v1191 = vld [vmem:[%s5 + $0xc] sm:$0xf]
        %v1192 = vld [vmem:[%s5 + $0x10] sm:$0xf]
        %v1193 = vld [vmem:[%s5 + $0x14] sm:$0xf]
        %v1194 = vld [vmem:[%s5 + $0x18] sm:$0xf]
        %v1195 = vld [vmem:[%s5 + $0x1c] sm:$0xf]
        %v1196 = vld [vmem:[%s5 + $0x20] sm:$0xf]
        %v1197 = vld [vmem:[#allocation9] sm:$0x1]
        %v1199 = vlaneseq
        %v1200 = vshrl.u32 %v1199, 7
        %v1201 = vsub.s32 0, %v1200
        %v1202 = vrot.slane %v1197, %v1201
        %v1213 = vunpack.c.l.b16 %v1188
        %v1214 = vunpack.c.l.b16 %v1189
        %v1215 = vunpack.c.l.b16 %v1190
        %v1216 = vunpack.c.l.b16 %v1191
        %v1217 = vunpack.c.l.b16 %v1192
        %v1218 = vunpack.c.l.b16 %v1193
        %v1219 = vunpack.c.l.b16 %v1194
        %v1220 = vunpack.c.l.b16 %v1195
        %v1221 = vunpack.c.l.b16 %v1196
        %v1222 = vpack.c.b16 %v1214, %v1213
        %v1223 = vpack.c.b16 %v1216, %v1215
        %v1224 = vpack.c.b16 %v1218, %v1217
        %v1225 = vpack.c.b16 %v1220, %v1219
        %v1226 = vpack.c.b16 %v1221, %v1221
        %v1232 = vsel %vm849, %v1184, 0
        %v1235 = vsel %vm849, %v1185, 0
        %v1238 = vsel %vm849, %v1186, 0
        %v1241 = vsel %vm849, %v1187, 0
        %vm1243 = vcmask 1043456
        %v1245 = vsel %vm1243, %v1226, 0
        %1247 = vmatprep.subr.bf16.mxu0 0
        %1248 = vmatpush1.bf16.msra.mxu0 %v1222
        %1249 = vmatprep.subr.bf16.mxu0 0
        %1250 = vmatpush1.bf16.msra.mxu0 %v1223
        %1251 = vmatprep.subr.bf16.mxu0 0
        %1252 = vmatpush1.bf16.msra.mxu0 %v1224
        %1253 = vmatprep.subr.bf16.mxu0 0
        %1254 = vmatpush1.bf16.msra.mxu0 %v1225
        %1255 = vmatprep.subr.bf16.mxu0 0
        %1256 = vmatpush1.bf16.msra.mxu0 %v1245
        %1257 = vmatprep.subr.bf16.mxu0 0
        %1258 = vmatpush1.bf16.msra.mxu0 0
        %1259 = vmatprep.subr.bf16.mxu0 0
        %1260 = vmatpush1.bf16.msra.mxu0 0
        %1261 = vmatprep.subr.bf16.mxu0 0
        %1262 = vmatpush1.bf16.msra.mxu0 0
        %1263 = vmatprep.subr.bf16.mxu0 0
        %1264 = vmatpush1.bf16.msra.mxu0 0
        %1265 = vmatprep.subr.bf16.mxu0 0
        %1266 = vmatpush1.bf16.msra.mxu0 0
        %1267 = vmatprep.subr.bf16.mxu0 0
        %1268 = vmatpush1.bf16.msra.mxu0 0
        %1269 = vmatprep.subr.bf16.mxu0 0
        %1270 = vmatpush1.bf16.msra.mxu0 0
        %1271 = vmatprep.subr.bf16.mxu0 0
        %1272 = vmatpush1.bf16.msra.mxu0 0
        %1273 = vmatprep.subr.bf16.mxu0 0
        %1274 = vmatpush1.bf16.msra.mxu0 0
        %1275 = vmatprep.subr.bf16.mxu0 0
        %1276 = vmatpush1.bf16.msra.mxu0 0
        %1277 = vmatprep.subr.bf16.mxu0 0
        %1278 = vmatpush1.bf16.msra.mxu0 0
        %1279 = vmatprep.mubr.bf16.mxu0 0
        %1280 = vmatmul.mubr.bf16.gmra.mrb[0].mxu0 %v1232
        %v1281 = vpop.f32.mrb[0].mxu0
        %v1282 = vadd.f32 %v1202, %v1281
        %v1283 = vpop.f32.mrb[0].mxu0
        %v1284 = vpop.f32.mrb[0].mxu0
        %v1285 = vadd.f32 %v1202, %v1284
        %v1286 = vpop.f32.mrb[0].mxu0
        %1287 = vmatprep.mubr.bf16.mxu0 0
        %1288 = vmatmul.mubr.bf16.gmra.mrb[0].mxu0 %v1235
        %v1289 = vpop.f32.mrb[0].mxu0
        %v1290 = vadd.f32 %v1202, %v1289
        %v1291 = vpop.f32.mrb[0].mxu0
        %v1292 = vpop.f32.mrb[0].mxu0
        %v1293 = vadd.f32 %v1202, %v1292
        %v1294 = vpop.f32.mrb[0].mxu0
        %1295 = vmatprep.mubr.bf16.mxu0 0
        %1296 = vmatmul.mubr.bf16.gmra.mrb[0].mxu0 %v1238
        %v1297 = vpop.f32.mrb[0].mxu0
        %v1298 = vadd.f32 %v1202, %v1297
        %v1299 = vpop.f32.mrb[0].mxu0
        %v1300 = vpop.f32.mrb[0].mxu0
        %v1301 = vadd.f32 %v1202, %v1300
        %v1302 = vpop.f32.mrb[0].mxu0
        %1303 = vmatprep.mubr.bf16.mxu0 0
        %1304 = vmatmul.mubr.bf16.gmra.mrb[0].mxu0 %v1241
        %v1305 = vpop.f32.mrb[0].mxu0
        %v1306 = vadd.f32 %v1202, %v1305
        %v1307 = vpop.f32.mrb[0].mxu0
        %v1308 = vpop.f32.mrb[0].mxu0
        %v1309 = vadd.f32 %v1202, %v1308
        %v1310 = vpop.f32.mrb[0].mxu0
        %1311 = vdwg.mxu0
        %v1312 = vpack.c.bf16 %v1285, %v1282
        %v1313 = vpack.c.bf16 %v1293, %v1290
        %v1314 = vpack.c.bf16 %v1301, %v1298
        %v1315 = vpack.c.bf16 %v1309, %v1306
        %v1316 = vld [vmem:[%s7] sm:$0xf]
        %v1317 = vld [vmem:[%s7 + $0x4] sm:$0xf]
        %v1318 = vld [vmem:[#allocation11] sm:$0x1]
        %v1320 = vlaneseq
        %v1321 = vshrl.u32 %v1320, 7
        %v1322 = vsub.s32 0, %v1321
        %v1323 = vrot.slane %v1318, %v1322
        %v1327 = vunpack.c.l.b16 %v1316
        %v1328 = vunpack.c.l.b16 %v1317
        %v1329 = vpack.c.b16 %v1328, %v1327
        %vm1331 = vcmask 130048
        %v1333 = vsel %vm1331, %v1312, 0
        %v1336 = vsel %vm1331, %v1313, 0
        %v1339 = vsel %vm1331, %v1314, 0
        %v1342 = vsel %vm1331, %v1315, 0
        %1344 = vmatprep.subr.bf16.mxu0 0
        %1345 = vmatpush1.bf16.msra.mxu0 %v1329
        %1346 = vmatprep.subr.bf16.mxu0 0
        %1347 = vmatpush1.bf16.msra.mxu0 0
        %1348 = vmatprep.subr.bf16.mxu0 0
        %1349 = vmatpush1.bf16.msra.mxu0 0
        %1350 = vmatprep.subr.bf16.mxu0 0
        %1351 = vmatpush1.bf16.msra.mxu0 0
        %1352 = vmatprep.subr.bf16.mxu0 0
        %1353 = vmatpush1.bf16.msra.mxu0 0
        %1354 = vmatprep.subr.bf16.mxu0 0
        %1355 = vmatpush1.bf16.msra.mxu0 0
        %1356 = vmatprep.subr.bf16.mxu0 0
        %1357 = vmatpush1.bf16.msra.mxu0 0
        %1358 = vmatprep.subr.bf16.mxu0 0
        %1359 = vmatpush1.bf16.msra.mxu0 0
        %1360 = vmatprep.subr.bf16.mxu0 0
        %1361 = vmatpush1.bf16.msra.mxu0 0
        %1362 = vmatprep.subr.bf16.mxu0 0
        %1363 = vmatpush1.bf16.msra.mxu0 0
        %1364 = vmatprep.subr.bf16.mxu0 0
        %1365 = vmatpush1.bf16.msra.mxu0 0
        %1366 = vmatprep.subr.bf16.mxu0 0
        %1367 = vmatpush1.bf16.msra.mxu0 0
        %1368 = vmatprep.subr.bf16.mxu0 0
        %1369 = vmatpush1.bf16.msra.mxu0 0
        %1370 = vmatprep.subr.bf16.mxu0 0
        %1371 = vmatpush1.bf16.msra.mxu0 0
        %1372 = vmatprep.subr.bf16.mxu0 0
        %1373 = vmatpush1.bf16.msra.mxu0 0
        %1374 = vmatprep.subr.bf16.mxu0 0
        %1375 = vmatpush1.bf16.msra.mxu0 0
        %1376 = vmatprep.mubr.bf16.mxu0 0
        %1377 = vmatmul.mubr.bf16.gmra.mrb[0].mxu0 %v1333
        %v1378 = vpop.f32.mrb[0].mxu0
        %v1379 = vadd.f32 %v1323, %v1378
        %v1380 = vpop.f32.mrb[0].mxu0
        %v1381 = vpop.f32.mrb[0].mxu0
        %v1382 = vadd.f32 %v1323, %v1381
        %v1383 = vpop.f32.mrb[0].mxu0
        %1384 = vmatprep.mubr.bf16.mxu0 0
        %1385 = vmatmul.mubr.bf16.gmra.mrb[0].mxu0 %v1336
        %v1386 = vpop.f32.mrb[0].mxu0
        %v1387 = vadd.f32 %v1323, %v1386
        %v1388 = vpop.f32.mrb[0].mxu0
        %v1389 = vpop.f32.mrb[0].mxu0
        %v1390 = vadd.f32 %v1323, %v1389
        %v1391 = vpop.f32.mrb[0].mxu0
        %1392 = vmatprep.mubr.bf16.mxu0 0
        %1393 = vmatmul.mubr.bf16.gmra.mrb[0].mxu0 %v1339
        %v1394 = vpop.f32.mrb[0].mxu0
        %v1395 = vadd.f32 %v1323, %v1394
        %v1396 = vpop.f32.mrb[0].mxu0
        %v1397 = vpop.f32.mrb[0].mxu0
        %v1398 = vadd.f32 %v1323, %v1397
        %v1399 = vpop.f32.mrb[0].mxu0
        %1400 = vmatprep.mubr.bf16.mxu0 0
        %1401 = vmatmul.mubr.bf16.gmra.mrb[0].mxu0 %v1342
        %v1402 = vpop.f32.mrb[0].mxu0
        %v1403 = vadd.f32 %v1323, %v1402
        %v1404 = vpop.f32.mrb[0].mxu0
        %v1405 = vpop.f32.mrb[0].mxu0
        %v1406 = vadd.f32 %v1323, %v1405
        %v1407 = vpop.f32.mrb[0].mxu0
        %1408 = vdwg.mxu0
        %v1409 = vmax.f32 %v1379, 0.0
        %v1410 = vmax.f32 %v1382, 0.0
        %v1411 = vmax.f32 %v1387, 0.0
        %v1412 = vmax.f32 %v1390, 0.0
        %v1413 = vmax.f32 %v1395, 0.0
        %v1414 = vmax.f32 %v1398, 0.0
        %v1415 = vmax.f32 %v1403, 0.0
        %v1416 = vmax.f32 %v1406, 0.0
        %v1417 = vmin.f32 %v1409, 6.0
        %v1418 = vmin.f32 %v1410, 6.0
        %v1419 = vmin.f32 %v1411, 6.0
        %v1420 = vmin.f32 %v1412, 6.0
        %v1421 = vmin.f32 %v1413, 6.0
        %v1422 = vmin.f32 %v1414, 6.0
        %v1423 = vmin.f32 %v1415, 6.0
        %v1424 = vmin.f32 %v1416, 6.0
        %vm1425 = vcmask 785408
        %1426 = vst.msk [vmem:[#allocation3] sm:$0xff] %vm1425, 0.0
        %1427 = vst.msk [vmem:[#allocation3 + $0x8] sm:$0xff] %vm1425, 0.0
        %1428 = vst.msk [vmem:[#allocation3 + $0x50] sm:$0xff] %vm1425, 0.0
        %1429 = vst.msk [vmem:[#allocation3 + $0x58] sm:$0xff] %vm1425, 0.0
        %1430 = vst.msk [vmem:[#allocation3 + $0x10] sm:$0xff] %vm1425, %v1417
        %1431 = vst.msk [vmem:[#allocation3 + $0x18] sm:$0xff] %vm1425, %v1418
        %1432 = vst.msk [vmem:[#allocation3 + $0x20] sm:$0xff] %vm1425, %v1419
        %1433 = vst.msk [vmem:[#allocation3 + $0x28] sm:$0xff] %vm1425, %v1420
        %1434 = vst.msk [vmem:[#allocation3 + $0x30] sm:$0xff] %vm1425, %v1421
        %1435 = vst.msk [vmem:[#allocation3 + $0x38] sm:$0xff] %vm1425, %v1422
        %1436 = vst.msk [vmem:[#allocation3 + $0x40] sm:$0xff] %vm1425, %v1423
        %1437 = vst.msk [vmem:[#allocation3 + $0x48] sm:$0xff] %vm1425, %v1424
        %v1438 = vld [vmem:[#allocation3 + $0x7] sm:$0xff]
        %v1439 = vld [vmem:[#allocation3 + $0xf] sm:$0xff]
        %v1440 = vld [vmem:[#allocation3 + $0x17] sm:$0xff]
        %v1441 = vld [vmem:[#allocation3 + $0x1f] sm:$0xff]
        %v1442 = vld [vmem:[#allocation3 + $0x27] sm:$0xff]
        %v1443 = vld [vmem:[#allocation3 + $0x2f] sm:$0xff]
        %v1444 = vld [vmem:[#allocation3 + $0x37] sm:$0xff]
        %v1445 = vld [vmem:[#allocation3 + $0x3f] sm:$0xff]
        %v1446 = vsel %vm878, %v1438, 0.0
        %v1447 = vsel %vm879, %v1439, 0.0
        %v1448 = vsel %vm880, %v1440, 0.0
        %v1449 = vsel %vm881, %v1441, 0.0
        %v1450 = vsel %vm882, %v1442, 0.0
        %v1451 = vsel %vm883, %v1443, 0.0
        %v1452 = vsel %vm884, %v1444, 0.0
        %v1453 = vsel %vm885, %v1445, 0.0
        %v1454 = vld [vmem:[%s9] sm:$0x1]
        %v1455 = vlaneseq
        %v1456 = vshrl.u32 %v1455, 7
        %v1457 = vsub.s32 0, %v1456
        %v1458 = vrot.slane %v1454, %v1457
        %v1459 = vmul.f32 %v1446, %v1458
        %v1460 = vmul.f32 %v1447, %v1458
        %v1461 = vmul.f32 %v1448, %v1458
        %v1462 = vmul.f32 %v1449, %v1458
        %v1463 = vmul.f32 %v1450, %v1458
        %v1464 = vmul.f32 %v1451, %v1458
        %v1465 = vmul.f32 %v1452, %v1458
        %v1466 = vmul.f32 %v1453, %v1458
        %v1467 = vld [vmem:[#allocation3 + $0x8] sm:$0xff]
        %v1468 = vld [vmem:[#allocation3 + $0x10] sm:$0xff]
        %v1469 = vld [vmem:[#allocation3 + $0x18] sm:$0xff]
        %v1470 = vld [vmem:[#allocation3 + $0x20] sm:$0xff]
        %v1471 = vld [vmem:[#allocation3 + $0x28] sm:$0xff]
        %v1472 = vld [vmem:[#allocation3 + $0x30] sm:$0xff]
        %v1473 = vld [vmem:[#allocation3 + $0x38] sm:$0xff]
        %v1474 = vld [vmem:[#allocation3 + $0x40] sm:$0xff]
        %v1475 = vld [vmem:[%s9 + $0x1] sm:$0x1]
        %v1476 = vlaneseq
        %v1477 = vshrl.u32 %v1476, 7
        %v1478 = vsub.s32 0, %v1477
        %v1479 = vrot.slane %v1475, %v1478
        %v1480 = vmul.f32 %v1467, %v1479
        %v1481 = vmul.f32 %v1468, %v1479
        %v1482 = vmul.f32 %v1469, %v1479
        %v1483 = vmul.f32 %v1470, %v1479
        %v1484 = vmul.f32 %v1471, %v1479
        %v1485 = vmul.f32 %v1472, %v1479
        %v1486 = vmul.f32 %v1473, %v1479
        %v1487 = vmul.f32 %v1474, %v1479
        %v1488 = vadd.f32 %v1459, %v1480
        %v1489 = vadd.f32 %v1460, %v1481
        %v1490 = vadd.f32 %v1461, %v1482
        %v1491 = vadd.f32 %v1462, %v1483
        %v1492 = vadd.f32 %v1463, %v1484
        %v1493 = vadd.f32 %v1464, %v1485
        %v1494 = vadd.f32 %v1465, %v1486
        %v1495 = vadd.f32 %v1466, %v1487
        %v1496 = vld [vmem:[#allocation3 + $0x9] sm:$0xff]
        %v1497 = vld [vmem:[#allocation3 + $0x11] sm:$0xff]
        %v1498 = vld [vmem:[#allocation3 + $0x19] sm:$0xff]
        %v1499 = vld [vmem:[#allocation3 + $0x21] sm:$0xff]
        %v1500 = vld [vmem:[#allocation3 + $0x29] sm:$0xff]
        %v1501 = vld [vmem:[#allocation3 + $0x31] sm:$0xff]
        %v1502 = vld [vmem:[#allocation3 + $0x39] sm:$0xff]
        %v1503 = vld [vmem:[#allocation3 + $0x41] sm:$0xff]
        %v1504 = vsel %vm952, %v1496, 0.0
        %v1505 = vsel %vm953, %v1497, 0.0
        %v1506 = vsel %vm954, %v1498, 0.0
        %v1507 = vsel %vm955, %v1499, 0.0
        %v1508 = vsel %vm956, %v1500, 0.0
        %v1509 = vsel %vm957, %v1501, 0.0
        %v1510 = vsel %vm958, %v1502, 0.0
        %v1511 = vsel %vm959, %v1503, 0.0
        %v1512 = vld [vmem:[%s9 + $0x2] sm:$0x1]
        %v1513 = vlaneseq
        %v1514 = vshrl.u32 %v1513, 7
        %v1515 = vsub.s32 0, %v1514
        %v1516 = vrot.slane %v1512, %v1515
        %v1517 = vmul.f32 %v1504, %v1516
        %v1518 = vmul.f32 %v1505, %v1516
        %v1519 = vmul.f32 %v1506, %v1516
        %v1520 = vmul.f32 %v1507, %v1516
        %v1521 = vmul.f32 %v1508, %v1516
        %v1522 = vmul.f32 %v1509, %v1516
        %v1523 = vmul.f32 %v1510, %v1516
        %v1524 = vmul.f32 %v1511, %v1516
        %v1525 = vadd.f32 %v1488, %v1517
        %v1526 = vadd.f32 %v1489, %v1518
        %v1527 = vadd.f32 %v1490, %v1519
        %v1528 = vadd.f32 %v1491, %v1520
        %v1529 = vadd.f32 %v1492, %v1521
        %v1530 = vadd.f32 %v1493, %v1522
        %v1531 = vadd.f32 %v1494, %v1523
        %v1532 = vadd.f32 %v1495, %v1524
        %v1533 = vld [vmem:[#allocation3 + $0x47] sm:$0xff]
        %v1534 = vsel %vm878, %v1439, 0.0
        %v1535 = vsel %vm879, %v1440, 0.0
        %v1536 = vsel %vm880, %v1441, 0.0
        %v1537 = vsel %vm881, %v1442, 0.0
        %v1538 = vsel %vm882, %v1443, 0.0
        %v1539 = vsel %vm883, %v1444, 0.0
        %v1540 = vsel %vm884, %v1445, 0.0
        %v1541 = vsel %vm885, %v1533, 0.0
        %v1542 = vld [vmem:[%s9 + $0x3] sm:$0x1]
        %v1543 = vlaneseq
        %v1544 = vshrl.u32 %v1543, 7
        %v1545 = vsub.s32 0, %v1544
        %v1546 = vrot.slane %v1542, %v1545
        %v1547 = vmul.f32 %v1534, %v1546
        %v1548 = vmul.f32 %v1535, %v1546
        %v1549 = vmul.f32 %v1536, %v1546
        %v1550 = vmul.f32 %v1537, %v1546
        %v1551 = vmul.f32 %v1538, %v1546
        %v1552 = vmul.f32 %v1539, %v1546
        %v1553 = vmul.f32 %v1540, %v1546
        %v1554 = vmul.f32 %v1541, %v1546
        %v1555 = vadd.f32 %v1525, %v1547
        %v1556 = vadd.f32 %v1526, %v1548
        %v1557 = vadd.f32 %v1527, %v1549
        %v1558 = vadd.f32 %v1528, %v1550
        %v1559 = vadd.f32 %v1529, %v1551
        %v1560 = vadd.f32 %v1530, %v1552
        %v1561 = vadd.f32 %v1531, %v1553
        %v1562 = vadd.f32 %v1532, %v1554
        %v1563 = vld [vmem:[%s9 + $0x4] sm:$0x1]
        %v1564 = vlaneseq
        %v1565 = vshrl.u32 %v1564, 7
        %v1566 = vsub.s32 0, %v1565
        %v1567 = vrot.slane %v1563, %v1566
        %v1568 = vmul.f32 %v1417, %v1567
        %v1569 = vmul.f32 %v1418, %v1567
        %v1570 = vmul.f32 %v1419, %v1567
        %v1571 = vmul.f32 %v1420, %v1567
        %v1572 = vmul.f32 %v1421, %v1567
        %v1573 = vmul.f32 %v1422, %v1567
        %v1574 = vmul.f32 %v1423, %v1567
        %v1575 = vmul.f32 %v1424, %v1567
        %v1576 = vadd.f32 %v1555, %v1568
        %v1577 = vadd.f32 %v1556, %v1569
        %v1578 = vadd.f32 %v1557, %v1570
        %v1579 = vadd.f32 %v1558, %v1571
        %v1580 = vadd.f32 %v1559, %v1572
        %v1581 = vadd.f32 %v1560, %v1573
        %v1582 = vadd.f32 %v1561, %v1574
        %v1583 = vadd.f32 %v1562, %v1575
        %v1584 = vld [vmem:[#allocation3 + $0x49] sm:$0xff]
        %v1585 = vsel %vm952, %v1497, 0.0
        %v1586 = vsel %vm953, %v1498, 0.0
        %v1587 = vsel %vm954, %v1499, 0.0
        %v1588 = vsel %vm955, %v1500, 0.0
        %v1589 = vsel %vm956, %v1501, 0.0
        %v1590 = vsel %vm957, %v1502, 0.0
        %v1591 = vsel %vm958, %v1503, 0.0
        %v1592 = vsel %vm959, %v1584, 0.0
        %v1593 = vld [vmem:[%s9 + $0x5] sm:$0x1]
        %v1594 = vlaneseq
        %v1595 = vshrl.u32 %v1594, 7
        %v1596 = vsub.s32 0, %v1595
        %v1597 = vrot.slane %v1593, %v1596
        %v1598 = vmul.f32 %v1585, %v1597
        %v1599 = vmul.f32 %v1586, %v1597
        %v1600 = vmul.f32 %v1587, %v1597
        %v1601 = vmul.f32 %v1588, %v1597
        %v1602 = vmul.f32 %v1589, %v1597
        %v1603 = vmul.f32 %v1590, %v1597
        %v1604 = vmul.f32 %v1591, %v1597
        %v1605 = vmul.f32 %v1592, %v1597
        %v1606 = vadd.f32 %v1576, %v1598
        %v1607 = vadd.f32 %v1577, %v1599
        %v1608 = vadd.f32 %v1578, %v1600
        %v1609 = vadd.f32 %v1579, %v1601
        %v1610 = vadd.f32 %v1580, %v1602
        %v1611 = vadd.f32 %v1581, %v1603
        %v1612 = vadd.f32 %v1582, %v1604
        %v1613 = vadd.f32 %v1583, %v1605
        %v1614 = vld [vmem:[#allocation3 + $0x4f] sm:$0xff]
        %v1615 = vsel %vm878, %v1440, 0.0
        %v1616 = vsel %vm879, %v1441, 0.0
        %v1617 = vsel %vm880, %v1442, 0.0
        %v1618 = vsel %vm881, %v1443, 0.0
        %v1619 = vsel %vm882, %v1444, 0.0
        %v1620 = vsel %vm883, %v1445, 0.0
        %v1621 = vsel %vm884, %v1533, 0.0
        %v1622 = vsel %vm885, %v1614, 0.0
        %v1623 = vld [vmem:[%s9 + $0x6] sm:$0x1]
        %v1624 = vlaneseq
        %v1625 = vshrl.u32 %v1624, 7
        %v1626 = vsub.s32 0, %v1625
        %v1627 = vrot.slane %v1623, %v1626
        %v1628 = vmul.f32 %v1615, %v1627
        %v1629 = vmul.f32 %v1616, %v1627
        %v1630 = vmul.f32 %v1617, %v1627
        %v1631 = vmul.f32 %v1618, %v1627
        %v1632 = vmul.f32 %v1619, %v1627
        %v1633 = vmul.f32 %v1620, %v1627
        %v1634 = vmul.f32 %v1621, %v1627
        %v1635 = vmul.f32 %v1622, %v1627
        %v1636 = vadd.f32 %v1606, %v1628
        %v1637 = vadd.f32 %v1607, %v1629
        %v1638 = vadd.f32 %v1608, %v1630
        %v1639 = vadd.f32 %v1609, %v1631
        %v1640 = vadd.f32 %v1610, %v1632
        %v1641 = vadd.f32 %v1611, %v1633
        %v1642 = vadd.f32 %v1612, %v1634
        %v1643 = vadd.f32 %v1613, %v1635
        %v1644 = vld [vmem:[#allocation3 + $0x48] sm:$0xff]
        %v1645 = vld [vmem:[#allocation3 + $0x50] sm:$0xff]
        %v1646 = vld [vmem:[%s9 + $0x7] sm:$0x1]
        %v1647 = vlaneseq
        %v1648 = vshrl.u32 %v1647, 7
        %v1649 = vsub.s32 0, %v1648
        %v1650 = vrot.slane %v1646, %v1649
        %v1651 = vmul.f32 %v1469, %v1650
        %v1652 = vmul.f32 %v1470, %v1650
        %v1653 = vmul.f32 %v1471, %v1650
        %v1654 = vmul.f32 %v1472, %v1650
        %v1655 = vmul.f32 %v1473, %v1650
        %v1656 = vmul.f32 %v1474, %v1650
        %v1657 = vmul.f32 %v1644, %v1650
        %v1658 = vmul.f32 %v1645, %v1650
        %v1659 = vadd.f32 %v1636, %v1651
        %v1660 = vadd.f32 %v1637, %v1652
        %v1661 = vadd.f32 %v1638, %v1653
        %v1662 = vadd.f32 %v1639, %v1654
        %v1663 = vadd.f32 %v1640, %v1655
        %v1664 = vadd.f32 %v1641, %v1656
        %v1665 = vadd.f32 %v1642, %v1657
        %v1666 = vadd.f32 %v1643, %v1658
        %v1667 = vld [vmem:[#allocation3 + $0x51] sm:$0xff]
        %v1668 = vsel %vm952, %v1498, 0.0
        %v1669 = vsel %vm953, %v1499, 0.0
        %v1670 = vsel %vm954, %v1500, 0.0
        %v1671 = vsel %vm955, %v1501, 0.0
        %v1672 = vsel %vm956, %v1502, 0.0
        %v1673 = vsel %vm957, %v1503, 0.0
        %v1674 = vsel %vm958, %v1584, 0.0
        %v1675 = vsel %vm959, %v1667, 0.0
        %v1676 = vld [vmem:[%s9 + $0x8] sm:$0x1]
        %v1677 = vlaneseq
        %v1678 = vshrl.u32 %v1677, 7
        %v1679 = vsub.s32 0, %v1678
        %v1680 = vrot.slane %v1676, %v1679
        %v1681 = vmul.f32 %v1668, %v1680
        %v1682 = vmul.f32 %v1669, %v1680
        %v1683 = vmul.f32 %v1670, %v1680
        %v1684 = vmul.f32 %v1671, %v1680
        %v1685 = vmul.f32 %v1672, %v1680
        %v1686 = vmul.f32 %v1673, %v1680
        %v1687 = vmul.f32 %v1674, %v1680
        %v1688 = vmul.f32 %v1675, %v1680
        %v1689 = vadd.f32 %v1659, %v1681
        %v1690 = vadd.f32 %v1660, %v1682
        %v1691 = vadd.f32 %v1661, %v1683
        %v1692 = vadd.f32 %v1662, %v1684
        %v1693 = vadd.f32 %v1663, %v1685
        %v1694 = vadd.f32 %v1664, %v1686
        %v1695 = vadd.f32 %v1665, %v1687
        %v1696 = vadd.f32 %v1666, %v1688
        %v1697 = vld [vmem:[#allocation12] sm:$0x1]
        %v1699 = vlaneseq
        %v1700 = vshrl.u32 %v1699, 7
        %v1701 = vsub.s32 0, %v1700
        %v1702 = vrot.slane %v1697, %v1701
        %v1704 = vadd.f32 %v1689, %v1702
        %v1705 = vadd.f32 %v1690, %v1702
        %v1706 = vadd.f32 %v1691, %v1702
        %v1707 = vadd.f32 %v1692, %v1702
        %v1708 = vadd.f32 %v1693, %v1702
        %v1709 = vadd.f32 %v1694, %v1702
        %v1710 = vadd.f32 %v1695, %v1702
        %v1711 = vadd.f32 %v1696, %v1702
        %v1712 = vmax.f32 %v1704, 0.0
        %v1713 = vmax.f32 %v1705, 0.0
        %v1714 = vmax.f32 %v1706, 0.0
        %v1715 = vmax.f32 %v1707, 0.0
        %v1716 = vmax.f32 %v1708, 0.0
        %v1717 = vmax.f32 %v1709, 0.0
        %v1718 = vmax.f32 %v1710, 0.0
        %v1719 = vmax.f32 %v1711, 0.0
        %v1720 = vmin.f32 %v1712, 6.0
        %v1721 = vmin.f32 %v1713, 6.0
        %v1722 = vmin.f32 %v1714, 6.0
        %v1723 = vmin.f32 %v1715, 6.0
        %v1724 = vmin.f32 %v1716, 6.0
        %v1725 = vmin.f32 %v1717, 6.0
        %v1726 = vmin.f32 %v1718, 6.0
        %v1727 = vmin.f32 %v1719, 6.0
        %v1728 = vpack.c.bf16 %v1721, %v1720
        %v1729 = vpack.c.bf16 %v1723, %v1722
        %v1730 = vpack.c.bf16 %v1725, %v1724
        %v1731 = vpack.c.bf16 %v1727, %v1726
        %v1732 = vld [vmem:[%s11] sm:$0xf]
        %v1733 = vld [vmem:[%s11 + $0x4] sm:$0xf]
        %v1734 = vld [vmem:[%s11 + $0x8] sm:$0xf]
        %v1735 = vld [vmem:[%s11 + $0xc] sm:$0xf]
        %v1736 = vld [vmem:[%s11 + $0x10] sm:$0xf]
        %v1737 = vld [vmem:[%s11 + $0x14] sm:$0xf]
        %v1738 = vld [vmem:[%s11 + $0x18] sm:$0xf]
        %v1739 = vld [vmem:[%s11 + $0x1c] sm:$0xf]
        %v1740 = vld [vmem:[%s11 + $0x20] sm:$0xf]
        %v1741 = vld [vmem:[%s11 + $0x24] sm:$0xf]
        %v1742 = vld [vmem:[%s11 + $0x28] sm:$0xf]
        %v1743 = vld [vmem:[%s11 + $0x2c] sm:$0xf]
        %v1744 = vld [vmem:[#allocation14] sm:$0x1]
        %v1746 = vlaneseq
        %v1747 = vshrl.u32 %v1746, 7
        %v1748 = vsub.s32 0, %v1747
        %v1749 = vrot.slane %v1744, %v1748
        %v1763 = vunpack.c.l.b16 %v1732
        %v1764 = vunpack.c.l.b16 %v1733
        %v1765 = vunpack.c.l.b16 %v1734
        %v1766 = vunpack.c.l.b16 %v1735
        %v1767 = vunpack.c.l.b16 %v1736
        %v1768 = vunpack.c.l.b16 %v1737
        %v1769 = vunpack.c.l.b16 %v1738
        %v1770 = vunpack.c.l.b16 %v1739
        %v1771 = vunpack.c.l.b16 %v1740
        %v1772 = vunpack.c.l.b16 %v1741
        %v1773 = vunpack.c.l.b16 %v1742
        %v1774 = vunpack.c.l.b16 %v1743
        %v1775 = vpack.c.b16 %v1764, %v1763
        %v1776 = vpack.c.b16 %v1766, %v1765
        %v1777 = vpack.c.b16 %v1768, %v1767
        %v1778 = vpack.c.b16 %v1770, %v1769
        %v1779 = vpack.c.b16 %v1772, %v1771
        %v1780 = vpack.c.b16 %v1774, %v1773
        %v1788 = vsel %vm1425, %v1728, 0
        %v1791 = vsel %vm1425, %v1729, 0
        %v1794 = vsel %vm1425, %v1730, 0
        %v1797 = vsel %vm1425, %v1731, 0
        %1799 = vmatprep.subr.bf16.mxu0 0
        %1800 = vmatpush1.bf16.msra.mxu0 %v1775
        %1801 = vmatprep.subr.bf16.mxu0 0
        %1802 = vmatpush1.bf16.msra.mxu0 %v1776
        %1803 = vmatprep.subr.bf16.mxu0 0
        %1804 = vmatpush1.bf16.msra.mxu0 %v1777
        %1805 = vmatprep.subr.bf16.mxu0 0
        %1806 = vmatpush1.bf16.msra.mxu0 %v1778
        %1807 = vmatprep.subr.bf16.mxu0 0
        %1808 = vmatpush1.bf16.msra.mxu0 %v1779
        %1809 = vmatprep.subr.bf16.mxu0 0
        %1810 = vmatpush1.bf16.msra.mxu0 %v1780
        %1811 = vmatprep.subr.bf16.mxu0 0
        %1812 = vmatpush1.bf16.msra.mxu0 0
        %1813 = vmatprep.subr.bf16.mxu0 0
        %1814 = vmatpush1.bf16.msra.mxu0 0
        %1815 = vmatprep.subr.bf16.mxu0 0
        %1816 = vmatpush1.bf16.msra.mxu0 0
        %1817 = vmatprep.subr.bf16.mxu0 0
        %1818 = vmatpush1.bf16.msra.mxu0 0
        %1819 = vmatprep.subr.bf16.mxu0 0
        %1820 = vmatpush1.bf16.msra.mxu0 0
        %1821 = vmatprep.subr.bf16.mxu0 0
        %1822 = vmatpush1.bf16.msra.mxu0 0
        %1823 = vmatprep.subr.bf16.mxu0 0
        %1824 = vmatpush1.bf16.msra.mxu0 0
        %1825 = vmatprep.subr.bf16.mxu0 0
        %1826 = vmatpush1.bf16.msra.mxu0 0
        %1827 = vmatprep.subr.bf16.mxu0 0
        %1828 = vmatpush1.bf16.msra.mxu0 0
        %1829 = vmatprep.subr.bf16.mxu0 0
        %1830 = vmatpush1.bf16.msra.mxu0 0
        %1831 = vmatprep.mubr.bf16.mxu0 0
        %1832 = vmatmul.mubr.bf16.gmra.mrb[0].mxu0 %v1788
        %v1833 = vpop.f32.mrb[0].mxu0
        %v1834 = vadd.f32 %v1749, %v1833
        %v1835 = vpop.f32.mrb[0].mxu0
        %v1836 = vpop.f32.mrb[0].mxu0
        %v1837 = vadd.f32 %v1749, %v1836
        %v1838 = vpop.f32.mrb[0].mxu0
        %1839 = vmatprep.mubr.bf16.mxu0 0
        %1840 = vmatmul.mubr.bf16.gmra.mrb[0].mxu0 %v1791
        %v1841 = vpop.f32.mrb[0].mxu0
        %v1842 = vadd.f32 %v1749, %v1841
        %v1843 = vpop.f32.mrb[0].mxu0
        %v1844 = vpop.f32.mrb[0].mxu0
        %v1845 = vadd.f32 %v1749, %v1844
        %v1846 = vpop.f32.mrb[0].mxu0
        %1847 = vmatprep.mubr.bf16.mxu0 0
        %1848 = vmatmul.mubr.bf16.gmra.mrb[0].mxu0 %v1794
        %v1849 = vpop.f32.mrb[0].mxu0
        %v1850 = vadd.f32 %v1749, %v1849
        %v1851 = vpop.f32.mrb[0].mxu0
        %v1852 = vpop.f32.mrb[0].mxu0
        %v1853 = vadd.f32 %v1749, %v1852
        %v1854 = vpop.f32.mrb[0].mxu0
        %1855 = vmatprep.mubr.bf16.mxu0 0
        %1856 = vmatmul.mubr.bf16.gmra.mrb[0].mxu0 %v1797
        %v1857 = vpop.f32.mrb[0].mxu0
        %v1858 = vadd.f32 %v1749, %v1857
        %v1859 = vpop.f32.mrb[0].mxu0
        %v1860 = vpop.f32.mrb[0].mxu0
        %v1861 = vadd.f32 %v1749, %v1860
        %v1862 = vpop.f32.mrb[0].mxu0
        %1863 = vdwg.mxu0
        %v1864 = vadd.f32 %v1834, %v1282
        %v1865 = vadd.f32 %v1837, %v1285
        %v1866 = vadd.f32 %v1842, %v1290
        %v1867 = vadd.f32 %v1845, %v1293
        %v1868 = vadd.f32 %v1850, %v1298
        %v1869 = vadd.f32 %v1853, %v1301
        %v1870 = vadd.f32 %v1858, %v1306
        %v1871 = vadd.f32 %v1861, %v1309
        %v1872 = vpack.c.bf16 %v1865, %v1864
        %v1873 = vpack.c.bf16 %v1867, %v1866
        %v1874 = vpack.c.bf16 %v1869, %v1868
        %v1875 = vpack.c.bf16 %v1871, %v1870
        %v1876 = vld [vmem:[%s13] sm:$0xf]
        %v1877 = vld [vmem:[%s13 + $0x4] sm:$0xf]
        %v1878 = vld [vmem:[#allocation15] sm:$0x1]
        %v1880 = vlaneseq
        %v1881 = vshrl.u32 %v1880, 7
        %v1882 = vsub.s32 0, %v1881
        %v1883 = vrot.slane %v1878, %v1882
        %v1887 = vunpack.c.l.b16 %v1876
        %v1888 = vunpack.c.l.b16 %v1877
        %v1889 = vpack.c.b16 %v1888, %v1887
        %v1892 = vsel %vm1331, %v1872, 0
        %v1895 = vsel %vm1331, %v1873, 0
        %v1898 = vsel %vm1331, %v1874, 0
        %v1901 = vsel %vm1331, %v1875, 0
        %1903 = vmatprep.subr.bf16.mxu0 0
        %1904 = vmatpush1.bf16.msra.mxu0 %v1889
        %1905 = vmatprep.subr.bf16.mxu0 0
        %1906 = vmatpush1.bf16.msra.mxu0 0
        %1907 = vmatprep.subr.bf16.mxu0 0
        %1908 = vmatpush1.bf16.msra.mxu0 0
        %1909 = vmatprep.subr.bf16.mxu0 0
        %1910 = vmatpush1.bf16.msra.mxu0 0
        %1911 = vmatprep.subr.bf16.mxu0 0
        %1912 = vmatpush1.bf16.msra.mxu0 0
        %1913 = vmatprep.subr.bf16.mxu0 0
        %1914 = vmatpush1.bf16.msra.mxu0 0
        %1915 = vmatprep.subr.bf16.mxu0 0
        %1916 = vmatpush1.bf16.msra.mxu0 0
        %1917 = vmatprep.subr.bf16.mxu0 0
        %1918 = vmatpush1.bf16.msra.mxu0 0
        %1919 = vmatprep.subr.bf16.mxu0 0
        %1920 = vmatpush1.bf16.msra.mxu0 0
        %1921 = vmatprep.subr.bf16.mxu0 0
        %1922 = vmatpush1.bf16.msra.mxu0 0
        %1923 = vmatprep.subr.bf16.mxu0 0
        %1924 = vmatpush1.bf16.msra.mxu0 0
        %1925 = vmatprep.subr.bf16.mxu0 0
        %1926 = vmatpush1.bf16.msra.mxu0 0
        %1927 = vmatprep.subr.bf16.mxu0 0
        %1928 = vmatpush1.bf16.msra.mxu0 0
        %1929 = vmatprep.subr.bf16.mxu0 0
        %1930 = vmatpush1.bf16.msra.mxu0 0
        %1931 = vmatprep.subr.bf16.mxu0 0
        %1932 = vmatpush1.bf16.msra.mxu0 0
        %1933 = vmatprep.subr.bf16.mxu0 0
        %1934 = vmatpush1.bf16.msra.mxu0 0
        %1935 = vmatprep.mubr.bf16.mxu0 0
        %1936 = vmatmul.mubr.bf16.gmra.mrb[0].mxu0 %v1892
        %v1937 = vpop.f32.mrb[0].mxu0
        %v1938 = vadd.f32 %v1883, %v1937
        %v1939 = vpop.f32.mrb[0].mxu0
        %v1940 = vpop.f32.mrb[0].mxu0
        %v1941 = vadd.f32 %v1883, %v1940
        %v1942 = vpop.f32.mrb[0].mxu0
        %1943 = vmatprep.mubr.bf16.mxu0 0
        %1944 = vmatmul.mubr.bf16.gmra.mrb[0].mxu0 %v1895
        %v1945 = vpop.f32.mrb[0].mxu0
        %v1946 = vadd.f32 %v1883, %v1945
        %v1947 = vpop.f32.mrb[0].mxu0
        %v1948 = vpop.f32.mrb[0].mxu0
        %v1949 = vadd.f32 %v1883, %v1948
        %v1950 = vpop.f32.mrb[0].mxu0
        %1951 = vmatprep.mubr.bf16.mxu0 0
        %1952 = vmatmul.mubr.bf16.gmra.mrb[0].mxu0 %v1898
        %v1953 = vpop.f32.mrb[0].mxu0
        %v1954 = vadd.f32 %v1883, %v1953
        %v1955 = vpop.f32.mrb[0].mxu0
        %v1956 = vpop.f32.mrb[0].mxu0
        %v1957 = vadd.f32 %v1883, %v1956
        %v1958 = vpop.f32.mrb[0].mxu0
        %1959 = vmatprep.mubr.bf16.mxu0 0
        %1960 = vmatmul.mubr.bf16.gmra.mrb[0].mxu0 %v1901
        %v1961 = vpop.f32.mrb[0].mxu0
        %v1962 = vadd.f32 %v1883, %v1961
        %v1963 = vpop.f32.mrb[0].mxu0
        %v1964 = vpop.f32.mrb[0].mxu0
        %v1965 = vadd.f32 %v1883, %v1964
        %v1966 = vpop.f32.mrb[0].mxu0
        %1967 = vdwg.mxu0
        %v1968 = vmax.f32 %v1938, 0.0
        %v1969 = vmax.f32 %v1941, 0.0
        %v1970 = vmax.f32 %v1946, 0.0
        %v1971 = vmax.f32 %v1949, 0.0
        %v1972 = vmax.f32 %v1954, 0.0
        %v1973 = vmax.f32 %v1957, 0.0
        %v1974 = vmax.f32 %v1962, 0.0
        %v1975 = vmax.f32 %v1965, 0.0
        %v1976 = vmin.f32 %v1968, 6.0
        %v1977 = vmin.f32 %v1969, 6.0
        %v1978 = vmin.f32 %v1970, 6.0
        %v1979 = vmin.f32 %v1971, 6.0
        %v1980 = vmin.f32 %v1972, 6.0
        %v1981 = vmin.f32 %v1973, 6.0
        %v1982 = vmin.f32 %v1974, 6.0
        %v1983 = vmin.f32 %v1975, 6.0
        %v1984 = vpack.c.bf16 %v1977, %v1976
        %v1985 = vpack.c.bf16 %v1979, %v1978
        %v1986 = vpack.c.bf16 %v1981, %v1980
        %v1987 = vpack.c.bf16 %v1983, %v1982
        %v1992 = vunpack.c.l.b16 %v1984
        %v1993 = vunpack.c.h.b16 %v1984
        %v1994 = vunpack.c.l.b16 %v1985
        %v1995 = vunpack.c.h.b16 %v1985
        %v1996 = vunpack.c.l.b16 %v1986
        %v1997 = vunpack.c.h.b16 %v1986
        %v1998 = vunpack.c.l.b16 %v1987
        %v1999 = vunpack.c.h.b16 %v1987
        %v2000 = vpack.c.b16 %v1992, %v1992
        %v2001 = vpack.c.b16 %v1993, %v1993
        %v2002 = vpack.c.b16 %v1994, %v1994
        %v2003 = vpack.c.b16 %v1995, %v1995
        %v2004 = vpack.c.b16 %v1996, %v1996
        %v2005 = vpack.c.b16 %v1997, %v1997
        %v2006 = vpack.c.b16 %v1998, %v1998
        %v2007 = vpack.c.b16 %v1999, %v1999
        %vm2016 = vcmask 519168
        %2017 = vst.msk [vmem:[%s602] sm:$0xf] %vm2016, %v2000
        %2018 = vst.msk [vmem:[%s602 + $0x4] sm:$0xf] %vm2016, %v2001
        %2019 = vst.msk [vmem:[%s602 + $0x8] sm:$0xf] %vm2016, %v2002
        %2020 = vst.msk [vmem:[%s602 + $0xc] sm:$0xf] %vm2016, %v2003
        %2021 = vst.msk [vmem:[%s602 + $0x10] sm:$0xf] %vm2016, %v2004
        %2022 = vst.msk [vmem:[%s602 + $0x14] sm:$0xf] %vm2016, %v2005
        %2023 = vst.msk [vmem:[%s602 + $0x18] sm:$0xf] %vm2016, %v2006
        %2024 = vst.msk [vmem:[%s602 + $0x1c] sm:$0xf] %vm2016, %v2007
        %p2025 = scmp.lt.s32.totalorder %s33, 1
        %s2026 = scalar_select %p2025, %s33, 1
        %s2027 = smul.addr %s2026, 8
        %s2028 = smul.addr %s2027, 4
        %s2029 = scalar_lea.vmem %s15, %s2028
        // Predicated region
        $region113: #{server_model_forward.2} parent=79 // pred_check
          %p2030 = pneg %p371
        $region114: #{server_model_forward.2} parent=79 // pred_check_branch
          %2032 = sbr.rel (%p2030) target = $region116
        $region115: #{server_model_forward.2} parent=79 // pred_region
          _
        $region116: #{server_model_forward.2} parent=79 // pred_fallthru
          _
      $region80: #{server_model_forward.2} parent=5 // pred_fallthru
        _
      %p2033 = scmp.le.s32.totalorder 2, %s28
      // Predicated region
      $region117: #{server_model_forward.2} parent=5 // pred_check
        %p2034 = pneg %p2033
      $region118: #{server_model_forward.2} parent=5 // pred_check_branch
        %2036 = sbr.rel (%p2034) target = $region120
      $region119: #{server_model_forward.2} parent=5 // pred_region
        %s2037 = ssub.s32 %s28, 2
        // Predicated region
        $region121: #{server_model_forward.2} parent=119 // pred_check
          %p2038 = pneg %p377
        $region122: #{server_model_forward.2} parent=119 // pred_check_branch
          %2040 = sbr.rel (%p2038) target = $region124
        $region123: #{server_model_forward.2} parent=119 // pred_region
          %p2041 = scmp.lt.s32.totalorder %s34, 1
          %s2042 = scalar_select %p2041, %s34, 1
          %s2043 = smul.addr %s2042, 8
          %s2044 = smul.addr %s2043, 4
          %s2045 = scalar_lea.vmem %s15, %s2044
        $region124: #{server_model_forward.2} parent=119 // pred_fallthru
          _
      $region120: #{server_model_forward.2} parent=5 // pred_fallthru
        _
    $region6: #{server_model_forward.2} parent=1 // loop_footer
      %s32 = sadd.s32 1, %s28
    $region7: #{server_model_forward.2} parent=1 // loop_footer_branch
      %27 = sbr.rel target = $region3
    $region8: #{server_model_forward.2} parent=1 // loop_exit
      _
    %2046 = vsyncpa [#allocation5], 1
    %s2047 = scalar_lea.sflag [#allocation5], 1
    %2048 = vsyncpa %s2047, 1
    %2049 = vsyncpa [#allocation7], 1
    %2050 = vsyncpa [#allocation10], 1
    %2051 = vsyncpa [#allocation13], 1
    %2052 = vsyncpa [#allocation16], 1

// kernel: server_model_forward.3
$region0: #{server_model_forward.3}
  #allocation0 [shape = 'u32[]', space=smem, size = 0x4, offset = 0x4, fixed_abs, tag = 'smem constant byte address 0x4 - core index']
  #allocation1 [shape = 'u32[144,128]{1,0:T(1,128)}', space=vmem, size = 0x12000, scoped, tag = 'internal scratch']
  %s0 = inlined_call_operand.vmem [shape: bf16[2,4096], index: 0, kind: input, shape index: {}]
  %s1 = inlined_call_operand.vmem [shape: bf16[4096,32], index: 1, kind: input, shape index: {}]
  %s2 = inlined_call_operand.vmem [shape: f32[1,32], index: 2, kind: input, shape index: {}]
  %s3 = inlined_call_operand.vmem [shape: bf16[32,10], index: 3, kind: input, shape index: {}]
  %s4 = inlined_call_operand.vmem [shape: f32[1,10], index: 4, kind: input, shape index: {}]
  %s5 = inlined_call_operand.hbm [shape: f32[2,32], index: 5, kind: output, shape index: {0}]
  %s6 = inlined_call_operand.hbm [shape: f32[2,10], index: 6, kind: output, shape index: {1}]
  %7 = xla_tuple %s5, %s6
  %s8 = sld [smem:[#allocation0]]
  $region38: #{server_model_forward.3} parent=0
    _
  %s10 = ssub.s32 1, %s8
  %s11 = scalar_select 0, %s10, %s8
  $region1: #{server_model_forward.3} parent=0
    #allocation2 [shape = 'u8[1024]{0}', space=vmem, size = 0x400, scoped, tag = 'output window, operand 0, single buffered']
    #allocation3 [shape = 's32[1]{0}', space=sflag, size = 0x4, scoped, tag = 'scoped memory for server_model_forward.3']
    #allocation4 [shape = 'u8[1024]{0}', space=vmem, size = 0x400, scoped, tag = 'output window, operand 1, single buffered']
    #allocation5 [shape = 's32[1]{0}', space=sflag, size = 0x4, scoped, tag = 'scoped memory for server_model_forward.3']
    %12 = vsyncpa [#allocation3], 0
    %13 = vsyncpa [#allocation5], 0
    // Predicated region
    $region2: #{server_model_forward.3} parent=1 // pred_check
      _
    $region3: #{server_model_forward.3} parent=1 // pred_check_branch
      %15 = sbr.rel (0) target = $region5
    $region4: #{server_model_forward.3} parent=1 // pred_region
      _
    $region5: #{server_model_forward.3} parent=1 // pred_fallthru
      _
    // Predicated region
    $region6: #{server_model_forward.3} parent=1 // pred_check
      _
    $region7: #{server_model_forward.3} parent=1 // pred_check_branch
      %17 = sbr.rel (0) target = $region9
    $region8: #{server_model_forward.3} parent=1 // pred_region
      _
    $region9: #{server_model_forward.3} parent=1 // pred_fallthru
      _
    // Predicated region
    $region10: #{server_model_forward.3} parent=1 // pred_check
      _
    $region11: #{server_model_forward.3} parent=1 // pred_check_branch
      %19 = sbr.rel (0) target = $region13
    $region12: #{server_model_forward.3} parent=1 // pred_region
      _
    $region13: #{server_model_forward.3} parent=1 // pred_fallthru
      _
    // Predicated region
    $region14: #{server_model_forward.3} parent=1 // pred_check
      _
    $region15: #{server_model_forward.3} parent=1 // pred_check_branch
      %21 = sbr.rel (0) target = $region17
    $region16: #{server_model_forward.3} parent=1 // pred_region
      _
    $region17: #{server_model_forward.3} parent=1 // pred_fallthru
      _
    // Predicated region
    $region18: #{server_model_forward.3} parent=1 // pred_check
      _
    $region19: #{server_model_forward.3} parent=1 // pred_check_branch
      %23 = sbr.rel (0) target = $region21
    $region20: #{server_model_forward.3} parent=1 // pred_region
      _
    $region21: #{server_model_forward.3} parent=1 // pred_fallthru
      _
    %v25 = vld [vmem:[%s0] sm:$0xff]
    %v26 = vld [vmem:[%s0 + $0x8] sm:$0xff]
    %v27 = vld [vmem:[%s0 + $0x10] sm:$0xff]
    %v28 = vld [vmem:[%s0 + $0x18] sm:$0xff]
    %v29 = vld [vmem:[%s1] sm:$0xf]
    %v30 = vld [vmem:[%s1 + $0x4] sm:$0xf]
    %v31 = vld [vmem:[%s1 + $0x8] sm:$0xf]
    %v32 = vld [vmem:[%s1 + $0xc] sm:$0xf]
    %v33 = vld [vmem:[%s1 + $0x10] sm:$0xf]
    %v34 = vld [vmem:[%s1 + $0x14] sm:$0xf]
    %v35 = vld [vmem:[%s1 + $0x18] sm:$0xf]
    %v36 = vld [vmem:[%s1 + $0x1c] sm:$0xf]
    %v37 = vld [vmem:[%s1 + $0x20] sm:$0xf]
    %v38 = vld [vmem:[%s1 + $0x24] sm:$0xf]
    %v39 = vld [vmem:[%s1 + $0x28] sm:$0xf]
    %v40 = vld [vmem:[%s1 + $0x2c] sm:$0xf]
    %v41 = vld [vmem:[%s1 + $0x30] sm:$0xf]
    %v42 = vld [vmem:[%s1 + $0x34] sm:$0xf]
    %v43 = vld [vmem:[%s1 + $0x38] sm:$0xf]
    %v44 = vld [vmem:[%s1 + $0x3c] sm:$0xf]
    %v45 = vld [vmem:[%s1 + $0x40] sm:$0xf]
    %v46 = vld [vmem:[%s1 + $0x44] sm:$0xf]
    %v47 = vld [vmem:[%s1 + $0x48] sm:$0xf]
    %v48 = vld [vmem:[%s1 + $0x4c] sm:$0xf]
    %v49 = vld [vmem:[%s1 + $0x50] sm:$0xf]
    %v50 = vld [vmem:[%s1 + $0x54] sm:$0xf]
    %v51 = vld [vmem:[%s1 + $0x58] sm:$0xf]
    %v52 = vld [vmem:[%s1 + $0x5c] sm:$0xf]
    %v53 = vld [vmem:[%s1 + $0x60] sm:$0xf]
    %v54 = vld [vmem:[%s1 + $0x64] sm:$0xf]
    %v55 = vld [vmem:[%s1 + $0x68] sm:$0xf]
    %v56 = vld [vmem:[%s1 + $0x6c] sm:$0xf]
    %v57 = vld [vmem:[%s1 + $0x70] sm:$0xf]
    %v58 = vld [vmem:[%s1 + $0x74] sm:$0xf]
    %v59 = vld [vmem:[%s1 + $0x78] sm:$0xf]
    %v60 = vld [vmem:[%s1 + $0x7c] sm:$0xf]
    %v61 = vld [vmem:[%s1 + $0x80] sm:$0xf]
    %v62 = vld [vmem:[%s1 + $0x84] sm:$0xf]
    %v63 = vld [vmem:[%s1 + $0x88] sm:$0xf]
    %v64 = vld [vmem:[%s1 + $0x8c] sm:$0xf]
    %v65 = vld [vmem:[%s1 + $0x90] sm:$0xf]
    %v66 = vld [vmem:[%s1 + $0x94] sm:$0xf]
    %v67 = vld [vmem:[%s1 + $0x98] sm:$0xf]
    %v68 = vld [vmem:[%s1 + $0x9c] sm:$0xf]
    %v69 = vld [vmem:[%s1 + $0xa0] sm:$0xf]
    %v70 = vld [vmem:[%s1 + $0xa4] sm:$0xf]
    %v71 = vld [vmem:[%s1 + $0xa8] sm:$0xf]
    %v72 = vld [vmem:[%s1 + $0xac] sm:$0xf]
    %v73 = vld [vmem:[%s1 + $0xb0] sm:$0xf]
    %v74 = vld [vmem:[%s1 + $0xb4] sm:$0xf]
    %v75 = vld [vmem:[%s1 + $0xb8] sm:$0xf]
    %v76 = vld [vmem:[%s1 + $0xbc] sm:$0xf]
    %v77 = vld [vmem:[%s1 + $0xc0] sm:$0xf]
    %v78 = vld [vmem:[%s1 + $0xc4] sm:$0xf]
    %v79 = vld [vmem:[%s1 + $0xc8] sm:$0xf]
    %v80 = vld [vmem:[%s1 + $0xcc] sm:$0xf]
    %v81 = vld [vmem:[%s1 + $0xd0] sm:$0xf]
    %v82 = vld [vmem:[%s1 + $0xd4] sm:$0xf]
    %v83 = vld [vmem:[%s1 + $0xd8] sm:$0xf]
    %v84 = vld [vmem:[%s1 + $0xdc] sm:$0xf]
    %v85 = vld [vmem:[%s1 + $0xe0] sm:$0xf]
    %v86 = vld [vmem:[%s1 + $0xe4] sm:$0xf]
    %v87 = vld [vmem:[%s1 + $0xe8] sm:$0xf]
    %v88 = vld [vmem:[%s1 + $0xec] sm:$0xf]
    %v89 = vld [vmem:[%s1 + $0xf0] sm:$0xf]
    %v90 = vld [vmem:[%s1 + $0xf4] sm:$0xf]
    %v91 = vld [vmem:[%s1 + $0xf8] sm:$0xf]
    %v92 = vld [vmem:[%s1 + $0xfc] sm:$0xf]
    %v93 = vld [vmem:[%s1 + $0x100] sm:$0xf]
    %v94 = vld [vmem:[%s1 + $0x104] sm:$0xf]
    %v95 = vld [vmem:[%s1 + $0x108] sm:$0xf]
    %v96 = vld [vmem:[%s1 + $0x10c] sm:$0xf]
    %v97 = vld [vmem:[%s1 + $0x110] sm:$0xf]
    %v98 = vld [vmem:[%s1 + $0x114] sm:$0xf]
    %v99 = vld [vmem:[%s1 + $0x118] sm:$0xf]
    %v100 = vld [vmem:[%s1 + $0x11c] sm:$0xf]
    %v101 = vld [vmem:[%s1 + $0x120] sm:$0xf]
    %v102 = vld [vmem:[%s1 + $0x124] sm:$0xf]
    %v103 = vld [vmem:[%s1 + $0x128] sm:$0xf]
    %v104 = vld [vmem:[%s1 + $0x12c] sm:$0xf]
    %v105 = vld [vmem:[%s1 + $0x130] sm:$0xf]
    %v106 = vld [vmem:[%s1 + $0x134] sm:$0xf]
    %v107 = vld [vmem:[%s1 + $0x138] sm:$0xf]
    %v108 = vld [vmem:[%s1 + $0x13c] sm:$0xf]
    %v109 = vld [vmem:[%s1 + $0x140] sm:$0xf]
    %v110 = vld [vmem:[%s1 + $0x144] sm:$0xf]
    %v111 = vld [vmem:[%s1 + $0x148] sm:$0xf]
    %v112 = vld [vmem:[%s1 + $0x14c] sm:$0xf]
    %v113 = vld [vmem:[%s1 + $0x150] sm:$0xf]
    %v114 = vld [vmem:[%s1 + $0x154] sm:$0xf]
    %v115 = vld [vmem:[%s1 + $0x158] sm:$0xf]
    %v116 = vld [vmem:[%s1 + $0x15c] sm:$0xf]
    %v117 = vld [vmem:[%s1 + $0x160] sm:$0xf]
    %v118 = vld [vmem:[%s1 + $0x164] sm:$0xf]
    %v119 = vld [vmem:[%s1 + $0x168] sm:$0xf]
    %v120 = vld [vmem:[%s1 + $0x16c] sm:$0xf]
    %v121 = vld [vmem:[%s1 + $0x170] sm:$0xf]
    %v122 = vld [vmem:[%s1 + $0x174] sm:$0xf]
    %v123 = vld [vmem:[%s1 + $0x178] sm:$0xf]
    %v124 = vld [vmem:[%s1 + $0x17c] sm:$0xf]
    %v125 = vld [vmem:[%s1 + $0x180] sm:$0xf]
    %v126 = vld [vmem:[%s1 + $0x184] sm:$0xf]
    %v127 = vld [vmem:[%s1 + $0x188] sm:$0xf]
    %v128 = vld [vmem:[%s1 + $0x18c] sm:$0xf]
    %v129 = vld [vmem:[%s1 + $0x190] sm:$0xf]
    %v130 = vld [vmem:[%s1 + $0x194] sm:$0xf]
    %v131 = vld [vmem:[%s1 + $0x198] sm:$0xf]
    %v132 = vld [vmem:[%s1 + $0x19c] sm:$0xf]
    %v133 = vld [vmem:[%s1 + $0x1a0] sm:$0xf]
    %v134 = vld [vmem:[%s1 + $0x1a4] sm:$0xf]
    %v135 = vld [vmem:[%s1 + $0x1a8] sm:$0xf]
    %v136 = vld [vmem:[%s1 + $0x1ac] sm:$0xf]
    %v137 = vld [vmem:[%s1 + $0x1b0] sm:$0xf]
    %v138 = vld [vmem:[%s1 + $0x1b4] sm:$0xf]
    %v139 = vld [vmem:[%s1 + $0x1b8] sm:$0xf]
    %v140 = vld [vmem:[%s1 + $0x1bc] sm:$0xf]
    %v141 = vld [vmem:[%s1 + $0x1c0] sm:$0xf]
    %v142 = vld [vmem:[%s1 + $0x1c4] sm:$0xf]
    %v143 = vld [vmem:[%s1 + $0x1c8] sm:$0xf]
    %v144 = vld [vmem:[%s1 + $0x1cc] sm:$0xf]
    %v145 = vld [vmem:[%s1 + $0x1d0] sm:$0xf]
    %v146 = vld [vmem:[%s1 + $0x1d4] sm:$0xf]
    %v147 = vld [vmem:[%s1 + $0x1d8] sm:$0xf]
    %v148 = vld [vmem:[%s1 + $0x1dc] sm:$0xf]
    %v149 = vld [vmem:[%s1 + $0x1e0] sm:$0xf]
    %v150 = vld [vmem:[%s1 + $0x1e4] sm:$0xf]
    %v151 = vld [vmem:[%s1 + $0x1e8] sm:$0xf]
    %v152 = vld [vmem:[%s1 + $0x1ec] sm:$0xf]
    %v153 = vld [vmem:[%s1 + $0x1f0] sm:$0xf]
    %v154 = vld [vmem:[%s1 + $0x1f4] sm:$0xf]
    %v155 = vld [vmem:[%s1 + $0x1f8] sm:$0xf]
    %v156 = vld [vmem:[%s1 + $0x1fc] sm:$0xf]
    %v157 = vld [vmem:[%s1 + $0x200] sm:$0xf]
    %v158 = vld [vmem:[%s1 + $0x204] sm:$0xf]
    %v159 = vld [vmem:[%s1 + $0x208] sm:$0xf]
    %v160 = vld [vmem:[%s1 + $0x20c] sm:$0xf]
    %v161 = vld [vmem:[%s1 + $0x210] sm:$0xf]
    %v162 = vld [vmem:[%s1 + $0x214] sm:$0xf]
    %v163 = vld [vmem:[%s1 + $0x218] sm:$0xf]
    %v164 = vld [vmem:[%s1 + $0x21c] sm:$0xf]
    %v165 = vld [vmem:[%s1 + $0x220] sm:$0xf]
    %v166 = vld [vmem:[%s1 + $0x224] sm:$0xf]
    %v167 = vld [vmem:[%s1 + $0x228] sm:$0xf]
    %v168 = vld [vmem:[%s1 + $0x22c] sm:$0xf]
    %v169 = vld [vmem:[%s1 + $0x230] sm:$0xf]
    %v170 = vld [vmem:[%s1 + $0x234] sm:$0xf]
    %v171 = vld [vmem:[%s1 + $0x238] sm:$0xf]
    %v172 = vld [vmem:[%s1 + $0x23c] sm:$0xf]
    %v173 = vld [vmem:[%s1 + $0x240] sm:$0xf]
    %v174 = vld [vmem:[%s1 + $0x244] sm:$0xf]
    %v175 = vld [vmem:[%s1 + $0x248] sm:$0xf]
    %v176 = vld [vmem:[%s1 + $0x24c] sm:$0xf]
    %v177 = vld [vmem:[%s1 + $0x250] sm:$0xf]
    %v178 = vld [vmem:[%s1 + $0x254] sm:$0xf]
    %v179 = vld [vmem:[%s1 + $0x258] sm:$0xf]
    %v180 = vld [vmem:[%s1 + $0x25c] sm:$0xf]
    %v181 = vld [vmem:[%s1 + $0x260] sm:$0xf]
    %v182 = vld [vmem:[%s1 + $0x264] sm:$0xf]
    %v183 = vld [vmem:[%s1 + $0x268] sm:$0xf]
    %v184 = vld [vmem:[%s1 + $0x26c] sm:$0xf]
    %v185 = vld [vmem:[%s1 + $0x270] sm:$0xf]
    %v186 = vld [vmem:[%s1 + $0x274] sm:$0xf]
    %v187 = vld [vmem:[%s1 + $0x278] sm:$0xf]
    %v188 = vld [vmem:[%s1 + $0x27c] sm:$0xf]
    %v189 = vld [vmem:[%s1 + $0x280] sm:$0xf]
    %v190 = vld [vmem:[%s1 + $0x284] sm:$0xf]
    %v191 = vld [vmem:[%s1 + $0x288] sm:$0xf]
    %v192 = vld [vmem:[%s1 + $0x28c] sm:$0xf]
    %v193 = vld [vmem:[%s1 + $0x290] sm:$0xf]
    %v194 = vld [vmem:[%s1 + $0x294] sm:$0xf]
    %v195 = vld [vmem:[%s1 + $0x298] sm:$0xf]
    %v196 = vld [vmem:[%s1 + $0x29c] sm:$0xf]
    %v197 = vld [vmem:[%s1 + $0x2a0] sm:$0xf]
    %v198 = vld [vmem:[%s1 + $0x2a4] sm:$0xf]
    %v199 = vld [vmem:[%s1 + $0x2a8] sm:$0xf]
    %v200 = vld [vmem:[%s1 + $0x2ac] sm:$0xf]
    %v201 = vld [vmem:[%s1 + $0x2b0] sm:$0xf]
    %v202 = vld [vmem:[%s1 + $0x2b4] sm:$0xf]
    %v203 = vld [vmem:[%s1 + $0x2b8] sm:$0xf]
    %v204 = vld [vmem:[%s1 + $0x2bc] sm:$0xf]
    %v205 = vld [vmem:[%s1 + $0x2c0] sm:$0xf]
    %v206 = vld [vmem:[%s1 + $0x2c4] sm:$0xf]
    %v207 = vld [vmem:[%s1 + $0x2c8] sm:$0xf]
    %v208 = vld [vmem:[%s1 + $0x2cc] sm:$0xf]
    %v209 = vld [vmem:[%s1 + $0x2d0] sm:$0xf]
    %v210 = vld [vmem:[%s1 + $0x2d4] sm:$0xf]
    %v211 = vld [vmem:[%s1 + $0x2d8] sm:$0xf]
    %v212 = vld [vmem:[%s1 + $0x2dc] sm:$0xf]
    %v213 = vld [vmem:[%s1 + $0x2e0] sm:$0xf]
    %v214 = vld [vmem:[%s1 + $0x2e4] sm:$0xf]
    %v215 = vld [vmem:[%s1 + $0x2e8] sm:$0xf]
    %v216 = vld [vmem:[%s1 + $0x2ec] sm:$0xf]
    %v217 = vld [vmem:[%s1 + $0x2f0] sm:$0xf]
    %v218 = vld [vmem:[%s1 + $0x2f4] sm:$0xf]
    %v219 = vld [vmem:[%s1 + $0x2f8] sm:$0xf]
    %v220 = vld [vmem:[%s1 + $0x2fc] sm:$0xf]
    %v221 = vld [vmem:[%s1 + $0x300] sm:$0xf]
    %v222 = vld [vmem:[%s1 + $0x304] sm:$0xf]
    %v223 = vld [vmem:[%s1 + $0x308] sm:$0xf]
    %v224 = vld [vmem:[%s1 + $0x30c] sm:$0xf]
    %v225 = vld [vmem:[%s1 + $0x310] sm:$0xf]
    %v226 = vld [vmem:[%s1 + $0x314] sm:$0xf]
    %v227 = vld [vmem:[%s1 + $0x318] sm:$0xf]
    %v228 = vld [vmem:[%s1 + $0x31c] sm:$0xf]
    %v229 = vld [vmem:[%s1 + $0x320] sm:$0xf]
    %v230 = vld [vmem:[%s1 + $0x324] sm:$0xf]
    %v231 = vld [vmem:[%s1 + $0x328] sm:$0xf]
    %v232 = vld [vmem:[%s1 + $0x32c] sm:$0xf]
    %v233 = vld [vmem:[%s1 + $0x330] sm:$0xf]
    %v234 = vld [vmem:[%s1 + $0x334] sm:$0xf]
    %v235 = vld [vmem:[%s1 + $0x338] sm:$0xf]
    %v236 = vld [vmem:[%s1 + $0x33c] sm:$0xf]
    %v237 = vld [vmem:[%s1 + $0x340] sm:$0xf]
    %v238 = vld [vmem:[%s1 + $0x344] sm:$0xf]
    %v239 = vld [vmem:[%s1 + $0x348] sm:$0xf]
    %v240 = vld [vmem:[%s1 + $0x34c] sm:$0xf]
    %v241 = vld [vmem:[%s1 + $0x350] sm:$0xf]
    %v242 = vld [vmem:[%s1 + $0x354] sm:$0xf]
    %v243 = vld [vmem:[%s1 + $0x358] sm:$0xf]
    %v244 = vld [vmem:[%s1 + $0x35c] sm:$0xf]
    %v245 = vld [vmem:[%s1 + $0x360] sm:$0xf]
    %v246 = vld [vmem:[%s1 + $0x364] sm:$0xf]
    %v247 = vld [vmem:[%s1 + $0x368] sm:$0xf]
    %v248 = vld [vmem:[%s1 + $0x36c] sm:$0xf]
    %v249 = vld [vmem:[%s1 + $0x370] sm:$0xf]
    %v250 = vld [vmem:[%s1 + $0x374] sm:$0xf]
    %v251 = vld [vmem:[%s1 + $0x378] sm:$0xf]
    %v252 = vld [vmem:[%s1 + $0x37c] sm:$0xf]
    %v253 = vld [vmem:[%s1 + $0x380] sm:$0xf]
    %v254 = vld [vmem:[%s1 + $0x384] sm:$0xf]
    %v255 = vld [vmem:[%s1 + $0x388] sm:$0xf]
    %v256 = vld [vmem:[%s1 + $0x38c] sm:$0xf]
    %v257 = vld [vmem:[%s1 + $0x390] sm:$0xf]
    %v258 = vld [vmem:[%s1 + $0x394] sm:$0xf]
    %v259 = vld [vmem:[%s1 + $0x398] sm:$0xf]
    %v260 = vld [vmem:[%s1 + $0x39c] sm:$0xf]
    %v261 = vld [vmem:[%s1 + $0x3a0] sm:$0xf]
    %v262 = vld [vmem:[%s1 + $0x3a4] sm:$0xf]
    %v263 = vld [vmem:[%s1 + $0x3a8] sm:$0xf]
    %v264 = vld [vmem:[%s1 + $0x3ac] sm:$0xf]
    %v265 = vld [vmem:[%s1 + $0x3b0] sm:$0xf]
    %v266 = vld [vmem:[%s1 + $0x3b4] sm:$0xf]
    %v267 = vld [vmem:[%s1 + $0x3b8] sm:$0xf]
    %v268 = vld [vmem:[%s1 + $0x3bc] sm:$0xf]
    %v269 = vld [vmem:[%s1 + $0x3c0] sm:$0xf]
    %v270 = vld [vmem:[%s1 + $0x3c4] sm:$0xf]
    %v271 = vld [vmem:[%s1 + $0x3c8] sm:$0xf]
    %v272 = vld [vmem:[%s1 + $0x3cc] sm:$0xf]
    %v273 = vld [vmem:[%s1 + $0x3d0] sm:$0xf]
    %v274 = vld [vmem:[%s1 + $0x3d4] sm:$0xf]
    %v275 = vld [vmem:[%s1 + $0x3d8] sm:$0xf]
    %v276 = vld [vmem:[%s1 + $0x3dc] sm:$0xf]
    %v277 = vld [vmem:[%s1 + $0x3e0] sm:$0xf]
    %v278 = vld [vmem:[%s1 + $0x3e4] sm:$0xf]
    %v279 = vld [vmem:[%s1 + $0x3e8] sm:$0xf]
    %v280 = vld [vmem:[%s1 + $0x3ec] sm:$0xf]
    %v281 = vld [vmem:[%s1 + $0x3f0] sm:$0xf]
    %v282 = vld [vmem:[%s1 + $0x3f4] sm:$0xf]
    %v283 = vld [vmem:[%s1 + $0x3f8] sm:$0xf]
    %v284 = vld [vmem:[%s1 + $0x3fc] sm:$0xf]
    %v285 = vld [vmem:[%s1 + $0x400] sm:$0xf]
    %v286 = vld [vmem:[%s1 + $0x404] sm:$0xf]
    %v287 = vld [vmem:[%s1 + $0x408] sm:$0xf]
    %v288 = vld [vmem:[%s1 + $0x40c] sm:$0xf]
    %v289 = vld [vmem:[%s1 + $0x410] sm:$0xf]
    %v290 = vld [vmem:[%s1 + $0x414] sm:$0xf]
    %v291 = vld [vmem:[%s1 + $0x418] sm:$0xf]
    %v292 = vld [vmem:[%s1 + $0x41c] sm:$0xf]
    %v293 = vld [vmem:[%s1 + $0x420] sm:$0xf]
    %v294 = vld [vmem:[%s1 + $0x424] sm:$0xf]
    %v295 = vld [vmem:[%s1 + $0x428] sm:$0xf]
    %v296 = vld [vmem:[%s1 + $0x42c] sm:$0xf]
    %v297 = vld [vmem:[%s1 + $0x430] sm:$0xf]
    %v298 = vld [vmem:[%s1 + $0x434] sm:$0xf]
    %v299 = vld [vmem:[%s1 + $0x438] sm:$0xf]
    %v300 = vld [vmem:[%s1 + $0x43c] sm:$0xf]
    %v301 = vld [vmem:[%s1 + $0x440] sm:$0xf]
    %v302 = vld [vmem:[%s1 + $0x444] sm:$0xf]
    %v303 = vld [vmem:[%s1 + $0x448] sm:$0xf]
    %v304 = vld [vmem:[%s1 + $0x44c] sm:$0xf]
    %v305 = vld [vmem:[%s1 + $0x450] sm:$0xf]
    %v306 = vld [vmem:[%s1 + $0x454] sm:$0xf]
    %v307 = vld [vmem:[%s1 + $0x458] sm:$0xf]
    %v308 = vld [vmem:[%s1 + $0x45c] sm:$0xf]
    %v309 = vld [vmem:[%s1 + $0x460] sm:$0xf]
    %v310 = vld [vmem:[%s1 + $0x464] sm:$0xf]
    %v311 = vld [vmem:[%s1 + $0x468] sm:$0xf]
    %v312 = vld [vmem:[%s1 + $0x46c] sm:$0xf]
    %v313 = vld [vmem:[%s1 + $0x470] sm:$0xf]
    %v314 = vld [vmem:[%s1 + $0x474] sm:$0xf]
    %v315 = vld [vmem:[%s1 + $0x478] sm:$0xf]
    %v316 = vld [vmem:[%s1 + $0x47c] sm:$0xf]
    %v317 = vld [vmem:[%s1 + $0x480] sm:$0xf]
    %v318 = vld [vmem:[%s1 + $0x484] sm:$0xf]
    %v319 = vld [vmem:[%s1 + $0x488] sm:$0xf]
    %v320 = vld [vmem:[%s1 + $0x48c] sm:$0xf]
    %v321 = vld [vmem:[%s1 + $0x490] sm:$0xf]
    %v322 = vld [vmem:[%s1 + $0x494] sm:$0xf]
    %v323 = vld [vmem:[%s1 + $0x498] sm:$0xf]
    %v324 = vld [vmem:[%s1 + $0x49c] sm:$0xf]
    %v325 = vld [vmem:[%s1 + $0x4a0] sm:$0xf]
    %v326 = vld [vmem:[%s1 + $0x4a4] sm:$0xf]
    %v327 = vld [vmem:[%s1 + $0x4a8] sm:$0xf]
    %v328 = vld [vmem:[%s1 + $0x4ac] sm:$0xf]
    %v329 = vld [vmem:[%s1 + $0x4b0] sm:$0xf]
    %v330 = vld [vmem:[%s1 + $0x4b4] sm:$0xf]
    %v331 = vld [vmem:[%s1 + $0x4b8] sm:$0xf]
    %v332 = vld [vmem:[%s1 + $0x4bc] sm:$0xf]
    %v333 = vld [vmem:[%s1 + $0x4c0] sm:$0xf]
    %v334 = vld [vmem:[%s1 + $0x4c4] sm:$0xf]
    %v335 = vld [vmem:[%s1 + $0x4c8] sm:$0xf]
    %v336 = vld [vmem:[%s1 + $0x4cc] sm:$0xf]
    %v337 = vld [vmem:[%s1 + $0x4d0] sm:$0xf]
    %v338 = vld [vmem:[%s1 + $0x4d4] sm:$0xf]
    %v339 = vld [vmem:[%s1 + $0x4d8] sm:$0xf]
    %v340 = vld [vmem:[%s1 + $0x4dc] sm:$0xf]
    %v341 = vld [vmem:[%s1 + $0x4e0] sm:$0xf]
    %v342 = vld [vmem:[%s1 + $0x4e4] sm:$0xf]
    %v343 = vld [vmem:[%s1 + $0x4e8] sm:$0xf]
    %v344 = vld [vmem:[%s1 + $0x4ec] sm:$0xf]
    %v345 = vld [vmem:[%s1 + $0x4f0] sm:$0xf]
    %v346 = vld [vmem:[%s1 + $0x4f4] sm:$0xf]
    %v347 = vld [vmem:[%s1 + $0x4f8] sm:$0xf]
    %v348 = vld [vmem:[%s1 + $0x4fc] sm:$0xf]
    %v349 = vld [vmem:[%s1 + $0x500] sm:$0xf]
    %v350 = vld [vmem:[%s1 + $0x504] sm:$0xf]
    %v351 = vld [vmem:[%s1 + $0x508] sm:$0xf]
    %v352 = vld [vmem:[%s1 + $0x50c] sm:$0xf]
    %v353 = vld [vmem:[%s1 + $0x510] sm:$0xf]
    %v354 = vld [vmem:[%s1 + $0x514] sm:$0xf]
    %v355 = vld [vmem:[%s1 + $0x518] sm:$0xf]
    %v356 = vld [vmem:[%s1 + $0x51c] sm:$0xf]
    %v357 = vld [vmem:[%s1 + $0x520] sm:$0xf]
    %v358 = vld [vmem:[%s1 + $0x524] sm:$0xf]
    %v359 = vld [vmem:[%s1 + $0x528] sm:$0xf]
    %v360 = vld [vmem:[%s1 + $0x52c] sm:$0xf]
    %v361 = vld [vmem:[%s1 + $0x530] sm:$0xf]
    %v362 = vld [vmem:[%s1 + $0x534] sm:$0xf]
    %v363 = vld [vmem:[%s1 + $0x538] sm:$0xf]
    %v364 = vld [vmem:[%s1 + $0x53c] sm:$0xf]
    %v365 = vld [vmem:[%s1 + $0x540] sm:$0xf]
    %v366 = vld [vmem:[%s1 + $0x544] sm:$0xf]
    %v367 = vld [vmem:[%s1 + $0x548] sm:$0xf]
    %v368 = vld [vmem:[%s1 + $0x54c] sm:$0xf]
    %v369 = vld [vmem:[%s1 + $0x550] sm:$0xf]
    %v370 = vld [vmem:[%s1 + $0x554] sm:$0xf]
    %v371 = vld [vmem:[%s1 + $0x558] sm:$0xf]
    %v372 = vld [vmem:[%s1 + $0x55c] sm:$0xf]
    %v373 = vld [vmem:[%s1 + $0x560] sm:$0xf]
    %v374 = vld [vmem:[%s1 + $0x564] sm:$0xf]
    %v375 = vld [vmem:[%s1 + $0x568] sm:$0xf]
    %v376 = vld [vmem:[%s1 + $0x56c] sm:$0xf]
    %v377 = vld [vmem:[%s1 + $0x570] sm:$0xf]
    %v378 = vld [vmem:[%s1 + $0x574] sm:$0xf]
    %v379 = vld [vmem:[%s1 + $0x578] sm:$0xf]
    %v380 = vld [vmem:[%s1 + $0x57c] sm:$0xf]
    %v381 = vld [vmem:[%s1 + $0x580] sm:$0xf]
    %v382 = vld [vmem:[%s1 + $0x584] sm:$0xf]
    %v383 = vld [vmem:[%s1 + $0x588] sm:$0xf]
    %v384 = vld [vmem:[%s1 + $0x58c] sm:$0xf]
    %v385 = vld [vmem:[%s1 + $0x590] sm:$0xf]
    %v386 = vld [vmem:[%s1 + $0x594] sm:$0xf]
    %v387 = vld [vmem:[%s1 + $0x598] sm:$0xf]
    %v388 = vld [vmem:[%s1 + $0x59c] sm:$0xf]
    %v389 = vld [vmem:[%s1 + $0x5a0] sm:$0xf]
    %v390 = vld [vmem:[%s1 + $0x5a4] sm:$0xf]
    %v391 = vld [vmem:[%s1 + $0x5a8] sm:$0xf]
    %v392 = vld [vmem:[%s1 + $0x5ac] sm:$0xf]
    %v393 = vld [vmem:[%s1 + $0x5b0] sm:$0xf]
    %v394 = vld [vmem:[%s1 + $0x5b4] sm:$0xf]
    %v395 = vld [vmem:[%s1 + $0x5b8] sm:$0xf]
    %v396 = vld [vmem:[%s1 + $0x5bc] sm:$0xf]
    %v397 = vld [vmem:[%s1 + $0x5c0] sm:$0xf]
    %v398 = vld [vmem:[%s1 + $0x5c4] sm:$0xf]
    %v399 = vld [vmem:[%s1 + $0x5c8] sm:$0xf]
    %v400 = vld [vmem:[%s1 + $0x5cc] sm:$0xf]
    %v401 = vld [vmem:[%s1 + $0x5d0] sm:$0xf]
    %v402 = vld [vmem:[%s1 + $0x5d4] sm:$0xf]
    %v403 = vld [vmem:[%s1 + $0x5d8] sm:$0xf]
    %v404 = vld [vmem:[%s1 + $0x5dc] sm:$0xf]
    %v405 = vld [vmem:[%s1 + $0x5e0] sm:$0xf]
    %v406 = vld [vmem:[%s1 + $0x5e4] sm:$0xf]
    %v407 = vld [vmem:[%s1 + $0x5e8] sm:$0xf]
    %v408 = vld [vmem:[%s1 + $0x5ec] sm:$0xf]
    %v409 = vld [vmem:[%s1 + $0x5f0] sm:$0xf]
    %v410 = vld [vmem:[%s1 + $0x5f4] sm:$0xf]
    %v411 = vld [vmem:[%s1 + $0x5f8] sm:$0xf]
    %v412 = vld [vmem:[%s1 + $0x5fc] sm:$0xf]
    %v413 = vld [vmem:[%s1 + $0x600] sm:$0xf]
    %v414 = vld [vmem:[%s1 + $0x604] sm:$0xf]
    %v415 = vld [vmem:[%s1 + $0x608] sm:$0xf]
    %v416 = vld [vmem:[%s1 + $0x60c] sm:$0xf]
    %v417 = vld [vmem:[%s1 + $0x610] sm:$0xf]
    %v418 = vld [vmem:[%s1 + $0x614] sm:$0xf]
    %v419 = vld [vmem:[%s1 + $0x618] sm:$0xf]
    %v420 = vld [vmem:[%s1 + $0x61c] sm:$0xf]
    %v421 = vld [vmem:[%s1 + $0x620] sm:$0xf]
    %v422 = vld [vmem:[%s1 + $0x624] sm:$0xf]
    %v423 = vld [vmem:[%s1 + $0x628] sm:$0xf]
    %v424 = vld [vmem:[%s1 + $0x62c] sm:$0xf]
    %v425 = vld [vmem:[%s1 + $0x630] sm:$0xf]
    %v426 = vld [vmem:[%s1 + $0x634] sm:$0xf]
    %v427 = vld [vmem:[%s1 + $0x638] sm:$0xf]
    %v428 = vld [vmem:[%s1 + $0x63c] sm:$0xf]
    %v429 = vld [vmem:[%s1 + $0x640] sm:$0xf]
    %v430 = vld [vmem:[%s1 + $0x644] sm:$0xf]
    %v431 = vld [vmem:[%s1 + $0x648] sm:$0xf]
    %v432 = vld [vmem:[%s1 + $0x64c] sm:$0xf]
    %v433 = vld [vmem:[%s1 + $0x650] sm:$0xf]
    %v434 = vld [vmem:[%s1 + $0x654] sm:$0xf]
    %v435 = vld [vmem:[%s1 + $0x658] sm:$0xf]
    %v436 = vld [vmem:[%s1 + $0x65c] sm:$0xf]
    %v437 = vld [vmem:[%s1 + $0x660] sm:$0xf]
    %v438 = vld [vmem:[%s1 + $0x664] sm:$0xf]
    %v439 = vld [vmem:[%s1 + $0x668] sm:$0xf]
    %v440 = vld [vmem:[%s1 + $0x66c] sm:$0xf]
    %v441 = vld [vmem:[%s1 + $0x670] sm:$0xf]
    %v442 = vld [vmem:[%s1 + $0x674] sm:$0xf]
    %v443 = vld [vmem:[%s1 + $0x678] sm:$0xf]
    %v444 = vld [vmem:[%s1 + $0x67c] sm:$0xf]
    %v445 = vld [vmem:[%s1 + $0x680] sm:$0xf]
    %v446 = vld [vmem:[%s1 + $0x684] sm:$0xf]
    %v447 = vld [vmem:[%s1 + $0x688] sm:$0xf]
    %v448 = vld [vmem:[%s1 + $0x68c] sm:$0xf]
    %v449 = vld [vmem:[%s1 + $0x690] sm:$0xf]
    %v450 = vld [vmem:[%s1 + $0x694] sm:$0xf]
    %v451 = vld [vmem:[%s1 + $0x698] sm:$0xf]
    %v452 = vld [vmem:[%s1 + $0x69c] sm:$0xf]
    %v453 = vld [vmem:[%s1 + $0x6a0] sm:$0xf]
    %v454 = vld [vmem:[%s1 + $0x6a4] sm:$0xf]
    %v455 = vld [vmem:[%s1 + $0x6a8] sm:$0xf]
    %v456 = vld [vmem:[%s1 + $0x6ac] sm:$0xf]
    %v457 = vld [vmem:[%s1 + $0x6b0] sm:$0xf]
    %v458 = vld [vmem:[%s1 + $0x6b4] sm:$0xf]
    %v459 = vld [vmem:[%s1 + $0x6b8] sm:$0xf]
    %v460 = vld [vmem:[%s1 + $0x6bc] sm:$0xf]
    %v461 = vld [vmem:[%s1 + $0x6c0] sm:$0xf]
    %v462 = vld [vmem:[%s1 + $0x6c4] sm:$0xf]
    %v463 = vld [vmem:[%s1 + $0x6c8] sm:$0xf]
    %v464 = vld [vmem:[%s1 + $0x6cc] sm:$0xf]
    %v465 = vld [vmem:[%s1 + $0x6d0] sm:$0xf]
    %v466 = vld [vmem:[%s1 + $0x6d4] sm:$0xf]
    %v467 = vld [vmem:[%s1 + $0x6d8] sm:$0xf]
    %v468 = vld [vmem:[%s1 + $0x6dc] sm:$0xf]
    %v469 = vld [vmem:[%s1 + $0x6e0] sm:$0xf]
    %v470 = vld [vmem:[%s1 + $0x6e4] sm:$0xf]
    %v471 = vld [vmem:[%s1 + $0x6e8] sm:$0xf]
    %v472 = vld [vmem:[%s1 + $0x6ec] sm:$0xf]
    %v473 = vld [vmem:[%s1 + $0x6f0] sm:$0xf]
    %v474 = vld [vmem:[%s1 + $0x6f4] sm:$0xf]
    %v475 = vld [vmem:[%s1 + $0x6f8] sm:$0xf]
    %v476 = vld [vmem:[%s1 + $0x6fc] sm:$0xf]
    %v477 = vld [vmem:[%s1 + $0x700] sm:$0xf]
    %v478 = vld [vmem:[%s1 + $0x704] sm:$0xf]
    %v479 = vld [vmem:[%s1 + $0x708] sm:$0xf]
    %v480 = vld [vmem:[%s1 + $0x70c] sm:$0xf]
    %v481 = vld [vmem:[%s1 + $0x710] sm:$0xf]
    %v482 = vld [vmem:[%s1 + $0x714] sm:$0xf]
    %v483 = vld [vmem:[%s1 + $0x718] sm:$0xf]
    %v484 = vld [vmem:[%s1 + $0x71c] sm:$0xf]
    %v485 = vld [vmem:[%s1 + $0x720] sm:$0xf]
    %v486 = vld [vmem:[%s1 + $0x724] sm:$0xf]
    %v487 = vld [vmem:[%s1 + $0x728] sm:$0xf]
    %v488 = vld [vmem:[%s1 + $0x72c] sm:$0xf]
    %v489 = vld [vmem:[%s1 + $0x730] sm:$0xf]
    %v490 = vld [vmem:[%s1 + $0x734] sm:$0xf]
    %v491 = vld [vmem:[%s1 + $0x738] sm:$0xf]
    %v492 = vld [vmem:[%s1 + $0x73c] sm:$0xf]
    %v493 = vld [vmem:[%s1 + $0x740] sm:$0xf]
    %v494 = vld [vmem:[%s1 + $0x744] sm:$0xf]
    %v495 = vld [vmem:[%s1 + $0x748] sm:$0xf]
    %v496 = vld [vmem:[%s1 + $0x74c] sm:$0xf]
    %v497 = vld [vmem:[%s1 + $0x750] sm:$0xf]
    %v498 = vld [vmem:[%s1 + $0x754] sm:$0xf]
    %v499 = vld [vmem:[%s1 + $0x758] sm:$0xf]
    %v500 = vld [vmem:[%s1 + $0x75c] sm:$0xf]
    %v501 = vld [vmem:[%s1 + $0x760] sm:$0xf]
    %v502 = vld [vmem:[%s1 + $0x764] sm:$0xf]
    %v503 = vld [vmem:[%s1 + $0x768] sm:$0xf]
    %v504 = vld [vmem:[%s1 + $0x76c] sm:$0xf]
    %v505 = vld [vmem:[%s1 + $0x770] sm:$0xf]
    %v506 = vld [vmem:[%s1 + $0x774] sm:$0xf]
    %v507 = vld [vmem:[%s1 + $0x778] sm:$0xf]
    %v508 = vld [vmem:[%s1 + $0x77c] sm:$0xf]
    %v509 = vld [vmem:[%s1 + $0x780] sm:$0xf]
    %v510 = vld [vmem:[%s1 + $0x784] sm:$0xf]
    %v511 = vld [vmem:[%s1 + $0x788] sm:$0xf]
    %v512 = vld [vmem:[%s1 + $0x78c] sm:$0xf]
    %v513 = vld [vmem:[%s1 + $0x790] sm:$0xf]
    %v514 = vld [vmem:[%s1 + $0x794] sm:$0xf]
    %v515 = vld [vmem:[%s1 + $0x798] sm:$0xf]
    %v516 = vld [vmem:[%s1 + $0x79c] sm:$0xf]
    %v517 = vld [vmem:[%s1 + $0x7a0] sm:$0xf]
    %v518 = vld [vmem:[%s1 + $0x7a4] sm:$0xf]
    %v519 = vld [vmem:[%s1 + $0x7a8] sm:$0xf]
    %v520 = vld [vmem:[%s1 + $0x7ac] sm:$0xf]
    %v521 = vld [vmem:[%s1 + $0x7b0] sm:$0xf]
    %v522 = vld [vmem:[%s1 + $0x7b4] sm:$0xf]
    %v523 = vld [vmem:[%s1 + $0x7b8] sm:$0xf]
    %v524 = vld [vmem:[%s1 + $0x7bc] sm:$0xf]
    %v525 = vld [vmem:[%s1 + $0x7c0] sm:$0xf]
    %v526 = vld [vmem:[%s1 + $0x7c4] sm:$0xf]
    %v527 = vld [vmem:[%s1 + $0x7c8] sm:$0xf]
    %v528 = vld [vmem:[%s1 + $0x7cc] sm:$0xf]
    %v529 = vld [vmem:[%s1 + $0x7d0] sm:$0xf]
    %v530 = vld [vmem:[%s1 + $0x7d4] sm:$0xf]
    %v531 = vld [vmem:[%s1 + $0x7d8] sm:$0xf]
    %v532 = vld [vmem:[%s1 + $0x7dc] sm:$0xf]
    %v533 = vld [vmem:[%s1 + $0x7e0] sm:$0xf]
    %v534 = vld [vmem:[%s1 + $0x7e4] sm:$0xf]
    %v535 = vld [vmem:[%s1 + $0x7e8] sm:$0xf]
    %v536 = vld [vmem:[%s1 + $0x7ec] sm:$0xf]
    %v537 = vld [vmem:[%s1 + $0x7f0] sm:$0xf]
    %v538 = vld [vmem:[%s1 + $0x7f4] sm:$0xf]
    %v539 = vld [vmem:[%s1 + $0x7f8] sm:$0xf]
    %v540 = vld [vmem:[%s1 + $0x7fc] sm:$0xf]
    %v541 = vld [vmem:[%s2] sm:$0x1]
    %v543 = vlaneseq
    %v544 = vshrl.u32 %v543, 7
    %v545 = vsub.s32 0, %v544
    %v546 = vrot.slane %v541, %v545
    %v552 = vcombine.high %v25, %v25
    %v554 = vunpack.c.l.s4 1966171168
    %v555 = vunpack.c.0.s8 %v554
    %v556 = vlaneseq
    %v557 = vshrl.u32 %v556, 7
    %v558 = vsub.s32 %v555, %v557
    %v559 = vrot.slane %v25, %v558
    %v561 = vunpack.c.l.s4 1966171168
    %v562 = vunpack.c.0.s8 %v561
    %v563 = vlaneseq
    %v564 = vshrl.u32 %v563, 7
    %v565 = vsub.s32 %v562, %v564
    %v566 = vrot.slane %v552, %v565
    %v567 = vcombine.high %v559, %v559
    %v568 = vcombine.high %v566, %v566
    %v570 = vunpack.c.l.s4 1966171168
    %v571 = vunpack.c.0.s8 %v570
    %v572 = vlaneseq
    %v573 = vshrl.u32 %v572, 7
    %v574 = vsub.s32 %v571, %v573
    %v575 = vrot.slane %v559, %v574
    %v577 = vunpack.c.l.s4 1966171168
    %v578 = vunpack.c.0.s8 %v577
    %v579 = vlaneseq
    %v580 = vshrl.u32 %v579, 7
    %v581 = vsub.s32 %v578, %v580
    %v582 = vrot.slane %v566, %v581
    %v584 = vunpack.c.l.s4 1966171168
    %v585 = vunpack.c.0.s8 %v584
    %v586 = vlaneseq
    %v587 = vshrl.u32 %v586, 7
    %v588 = vsub.s32 %v585, %v587
    %v589 = vrot.slane %v567, %v588
    %v591 = vunpack.c.l.s4 1966171168
    %v592 = vunpack.c.0.s8 %v591
    %v593 = vlaneseq
    %v594 = vshrl.u32 %v593, 7
    %v595 = vsub.s32 %v592, %v594
    %v596 = vrot.slane %v568, %v595
    %v597 = vcombine.high %v575, %v575
    %v598 = vcombine.high %v582, %v582
    %v599 = vcombine.high %v589, %v589
    %v600 = vcombine.high %v596, %v596
    %v601 = vcombine.high %v26, %v26
    %v603 = vunpack.c.l.s4 1966171168
    %v604 = vunpack.c.0.s8 %v603
    %v605 = vlaneseq
    %v606 = vshrl.u32 %v605, 7
    %v607 = vsub.s32 %v604, %v606
    %v608 = vrot.slane %v26, %v607
    %v610 = vunpack.c.l.s4 1966171168
    %v611 = vunpack.c.0.s8 %v610
    %v612 = vlaneseq
    %v613 = vshrl.u32 %v612, 7
    %v614 = vsub.s32 %v611, %v613
    %v615 = vrot.slane %v601, %v614
    %v616 = vcombine.high %v608, %v608
    %v617 = vcombine.high %v615, %v615
    %v619 = vunpack.c.l.s4 1966171168
    %v620 = vunpack.c.0.s8 %v619
    %v621 = vlaneseq
    %v622 = vshrl.u32 %v621, 7
    %v623 = vsub.s32 %v620, %v622
    %v624 = vrot.slane %v608, %v623
    %v626 = vunpack.c.l.s4 1966171168
    %v627 = vunpack.c.0.s8 %v626
    %v628 = vlaneseq
    %v629 = vshrl.u32 %v628, 7
    %v630 = vsub.s32 %v627, %v629
    %v631 = vrot.slane %v615, %v630
    %v633 = vunpack.c.l.s4 1966171168
    %v634 = vunpack.c.0.s8 %v633
    %v635 = vlaneseq
    %v636 = vshrl.u32 %v635, 7
    %v637 = vsub.s32 %v634, %v636
    %v638 = vrot.slane %v616, %v637
    %v640 = vunpack.c.l.s4 1966171168
    %v641 = vunpack.c.0.s8 %v640
    %v642 = vlaneseq
    %v643 = vshrl.u32 %v642, 7
    %v644 = vsub.s32 %v641, %v643
    %v645 = vrot.slane %v617, %v644
    %v646 = vcombine.high %v624, %v624
    %v647 = vcombine.high %v631, %v631
    %v648 = vcombine.high %v638, %v638
    %v649 = vcombine.high %v645, %v645
    %v650 = vcombine.high %v27, %v27
    %v652 = vunpack.c.l.s4 1966171168
    %v653 = vunpack.c.0.s8 %v652
    %v654 = vlaneseq
    %v655 = vshrl.u32 %v654, 7
    %v656 = vsub.s32 %v653, %v655
    %v657 = vrot.slane %v27, %v656
    %v659 = vunpack.c.l.s4 1966171168
    %v660 = vunpack.c.0.s8 %v659
    %v661 = vlaneseq
    %v662 = vshrl.u32 %v661, 7
    %v663 = vsub.s32 %v660, %v662
    %v664 = vrot.slane %v650, %v663
    %v665 = vcombine.high %v657, %v657
    %v666 = vcombine.high %v664, %v664
    %v668 = vunpack.c.l.s4 1966171168
    %v669 = vunpack.c.0.s8 %v668
    %v670 = vlaneseq
    %v671 = vshrl.u32 %v670, 7
    %v672 = vsub.s32 %v669, %v671
    %v673 = vrot.slane %v657, %v672
    %v675 = vunpack.c.l.s4 1966171168
    %v676 = vunpack.c.0.s8 %v675
    %v677 = vlaneseq
    %v678 = vshrl.u32 %v677, 7
    %v679 = vsub.s32 %v676, %v678
    %v680 = vrot.slane %v664, %v679
    %v682 = vunpack.c.l.s4 1966171168
    %v683 = vunpack.c.0.s8 %v682
    %v684 = vlaneseq
    %v685 = vshrl.u32 %v684, 7
    %v686 = vsub.s32 %v683, %v685
    %v687 = vrot.slane %v665, %v686
    %v689 = vunpack.c.l.s4 1966171168
    %v690 = vunpack.c.0.s8 %v689
    %v691 = vlaneseq
    %v692 = vshrl.u32 %v691, 7
    %v693 = vsub.s32 %v690, %v692
    %v694 = vrot.slane %v666, %v693
    %v695 = vcombine.high %v673, %v673
    %v696 = vcombine.high %v680, %v680
    %v697 = vcombine.high %v687, %v687
    %v698 = vcombine.high %v694, %v694
    %v699 = vcombine.high %v28, %v28
    %v701 = vunpack.c.l.s4 1966171168
    %v702 = vunpack.c.0.s8 %v701
    %v703 = vlaneseq
    %v704 = vshrl.u32 %v703, 7
    %v705 = vsub.s32 %v702, %v704
    %v706 = vrot.slane %v28, %v705
    %v708 = vunpack.c.l.s4 1966171168
    %v709 = vunpack.c.0.s8 %v708
    %v710 = vlaneseq
    %v711 = vshrl.u32 %v710, 7
    %v712 = vsub.s32 %v709, %v711
    %v713 = vrot.slane %v699, %v712
    %v714 = vcombine.high %v706, %v706
    %v715 = vcombine.high %v713, %v713
    %v717 = vunpack.c.l.s4 1966171168
    %v718 = vunpack.c.0.s8 %v717
    %v719 = vlaneseq
    %v720 = vshrl.u32 %v719, 7
    %v721 = vsub.s32 %v718, %v720
    %v722 = vrot.slane %v706, %v721
    %v724 = vunpack.c.l.s4 1966171168
    %v725 = vunpack.c.0.s8 %v724
    %v726 = vlaneseq
    %v727 = vshrl.u32 %v726, 7
    %v728 = vsub.s32 %v725, %v727
    %v729 = vrot.slane %v713, %v728
    %v731 = vunpack.c.l.s4 1966171168
    %v732 = vunpack.c.0.s8 %v731
    %v733 = vlaneseq
    %v734 = vshrl.u32 %v733, 7
    %v735 = vsub.s32 %v732, %v734
    %v736 = vrot.slane %v714, %v735
    %v738 = vunpack.c.l.s4 1966171168
    %v739 = vunpack.c.0.s8 %v738
    %v740 = vlaneseq
    %v741 = vshrl.u32 %v740, 7
    %v742 = vsub.s32 %v739, %v741
    %v743 = vrot.slane %v715, %v742
    %v744 = vcombine.high %v722, %v722
    %v745 = vcombine.high %v729, %v729
    %v746 = vcombine.high %v736, %v736
    %v747 = vcombine.high %v743, %v743
    %v1292 = vunpack.c.l.b16 %v29
    %v1293 = vunpack.c.l.b16 %v30
    %v1294 = vunpack.c.l.b16 %v31
    %v1295 = vunpack.c.l.b16 %v32
    %v1296 = vunpack.c.l.b16 %v33
    %v1297 = vunpack.c.l.b16 %v34
    %v1298 = vunpack.c.l.b16 %v35
    %v1299 = vunpack.c.l.b16 %v36
    %v1300 = vunpack.c.l.b16 %v37
    %v1301 = vunpack.c.l.b16 %v38
    %v1302 = vunpack.c.l.b16 %v39
    %v1303 = vunpack.c.l.b16 %v40
    %v1304 = vunpack.c.l.b16 %v41
    %v1305 = vunpack.c.l.b16 %v42
    %v1306 = vunpack.c.l.b16 %v43
    %v1307 = vunpack.c.l.b16 %v44
    %v1308 = vunpack.c.l.b16 %v45
    %v1309 = vunpack.c.l.b16 %v46
    %v1310 = vunpack.c.l.b16 %v47
    %v1311 = vunpack.c.l.b16 %v48
    %v1312 = vunpack.c.l.b16 %v49
    %v1313 = vunpack.c.l.b16 %v50
    %v1314 = vunpack.c.l.b16 %v51
    %v1315 = vunpack.c.l.b16 %v52
    %v1316 = vunpack.c.l.b16 %v53
    %v1317 = vunpack.c.l.b16 %v54
    %v1318 = vunpack.c.l.b16 %v55
    %v1319 = vunpack.c.l.b16 %v56
    %v1320 = vunpack.c.l.b16 %v57
    %v1321 = vunpack.c.l.b16 %v58
    %v1322 = vunpack.c.l.b16 %v59
    %v1323 = vunpack.c.l.b16 %v60
    %v1324 = vunpack.c.l.b16 %v61
    %v1325 = vunpack.c.l.b16 %v62
    %v1326 = vunpack.c.l.b16 %v63
    %v1327 = vunpack.c.l.b16 %v64
    %v1328 = vunpack.c.l.b16 %v65
    %v1329 = vunpack.c.l.b16 %v66
    %v1330 = vunpack.c.l.b16 %v67
    %v1331 = vunpack.c.l.b16 %v68
    %v1332 = vunpack.c.l.b16 %v69
    %v1333 = vunpack.c.l.b16 %v70
    %v1334 = vunpack.c.l.b16 %v71
    %v1335 = vunpack.c.l.b16 %v72
    %v1336 = vunpack.c.l.b16 %v73
    %v1337 = vunpack.c.l.b16 %v74
    %v1338 = vunpack.c.l.b16 %v75
    %v1339 = vunpack.c.l.b16 %v76
    %v1340 = vunpack.c.l.b16 %v77
    %v1341 = vunpack.c.l.b16 %v78
    %v1342 = vunpack.c.l.b16 %v79
    %v1343 = vunpack.c.l.b16 %v80
    %v1344 = vunpack.c.l.b16 %v81
    %v1345 = vunpack.c.l.b16 %v82
    %v1346 = vunpack.c.l.b16 %v83
    %v1347 = vunpack.c.l.b16 %v84
    %v1348 = vunpack.c.l.b16 %v85
    %v1349 = vunpack.c.l.b16 %v86
    %v1350 = vunpack.c.l.b16 %v87
    %v1351 = vunpack.c.l.b16 %v88
    %v1352 = vunpack.c.l.b16 %v89
    %v1353 = vunpack.c.l.b16 %v90
    %v1354 = vunpack.c.l.b16 %v91
    %v1355 = vunpack.c.l.b16 %v92
    %v1356 = vunpack.c.l.b16 %v93
    %v1357 = vunpack.c.l.b16 %v94
    %v1358 = vunpack.c.l.b16 %v95
    %v1359 = vunpack.c.l.b16 %v96
    %v1360 = vunpack.c.l.b16 %v97
    %v1361 = vunpack.c.l.b16 %v98
    %v1362 = vunpack.c.l.b16 %v99
    %v1363 = vunpack.c.l.b16 %v100
    %v1364 = vunpack.c.l.b16 %v101
    %v1365 = vunpack.c.l.b16 %v102
    %v1366 = vunpack.c.l.b16 %v103
    %v1367 = vunpack.c.l.b16 %v104
    %v1368 = vunpack.c.l.b16 %v105
    %v1369 = vunpack.c.l.b16 %v106
    %v1370 = vunpack.c.l.b16 %v107
    %v1371 = vunpack.c.l.b16 %v108
    %v1372 = vunpack.c.l.b16 %v109
    %v1373 = vunpack.c.l.b16 %v110
    %v1374 = vunpack.c.l.b16 %v111
    %v1375 = vunpack.c.l.b16 %v112
    %v1376 = vunpack.c.l.b16 %v113
    %v1377 = vunpack.c.l.b16 %v114
    %v1378 = vunpack.c.l.b16 %v115
    %v1379 = vunpack.c.l.b16 %v116
    %v1380 = vunpack.c.l.b16 %v117
    %v1381 = vunpack.c.l.b16 %v118
    %v1382 = vunpack.c.l.b16 %v119
    %v1383 = vunpack.c.l.b16 %v120
    %v1384 = vunpack.c.l.b16 %v121
    %v1385 = vunpack.c.l.b16 %v122
    %v1386 = vunpack.c.l.b16 %v123
    %v1387 = vunpack.c.l.b16 %v124
    %v1388 = vunpack.c.l.b16 %v125
    %v1389 = vunpack.c.l.b16 %v126
    %v1390 = vunpack.c.l.b16 %v127
    %v1391 = vunpack.c.l.b16 %v128
    %v1392 = vunpack.c.l.b16 %v129
    %v1393 = vunpack.c.l.b16 %v130
    %v1394 = vunpack.c.l.b16 %v131
    %v1395 = vunpack.c.l.b16 %v132
    %v1396 = vunpack.c.l.b16 %v133
    %v1397 = vunpack.c.l.b16 %v134
    %v1398 = vunpack.c.l.b16 %v135
    %v1399 = vunpack.c.l.b16 %v136
    %v1400 = vunpack.c.l.b16 %v137
    %v1401 = vunpack.c.l.b16 %v138
    %v1402 = vunpack.c.l.b16 %v139
    %v1403 = vunpack.c.l.b16 %v140
    %v1404 = vunpack.c.l.b16 %v141
    %v1405 = vunpack.c.l.b16 %v142
    %v1406 = vunpack.c.l.b16 %v143
    %v1407 = vunpack.c.l.b16 %v144
    %v1408 = vunpack.c.l.b16 %v145
    %v1409 = vunpack.c.l.b16 %v146
    %v1410 = vunpack.c.l.b16 %v147
    %v1411 = vunpack.c.l.b16 %v148
    %v1412 = vunpack.c.l.b16 %v149
    %v1413 = vunpack.c.l.b16 %v150
    %v1414 = vunpack.c.l.b16 %v151
    %v1415 = vunpack.c.l.b16 %v152
    %v1416 = vunpack.c.l.b16 %v153
    %v1417 = vunpack.c.l.b16 %v154
    %v1418 = vunpack.c.l.b16 %v155
    %v1419 = vunpack.c.l.b16 %v156
    %v1420 = vunpack.c.l.b16 %v157
    %v1421 = vunpack.c.l.b16 %v158
    %v1422 = vunpack.c.l.b16 %v159
    %v1423 = vunpack.c.l.b16 %v160
    %v1424 = vunpack.c.l.b16 %v161
    %v1425 = vunpack.c.l.b16 %v162
    %v1426 = vunpack.c.l.b16 %v163
    %v1427 = vunpack.c.l.b16 %v164
    %v1428 = vunpack.c.l.b16 %v165
    %v1429 = vunpack.c.l.b16 %v166
    %v1430 = vunpack.c.l.b16 %v167
    %v1431 = vunpack.c.l.b16 %v168
    %v1432 = vunpack.c.l.b16 %v169
    %v1433 = vunpack.c.l.b16 %v170
    %v1434 = vunpack.c.l.b16 %v171
    %v1435 = vunpack.c.l.b16 %v172
    %v1436 = vunpack.c.l.b16 %v173
    %v1437 = vunpack.c.l.b16 %v174
    %v1438 = vunpack.c.l.b16 %v175
    %v1439 = vunpack.c.l.b16 %v176
    %v1440 = vunpack.c.l.b16 %v177
    %v1441 = vunpack.c.l.b16 %v178
    %v1442 = vunpack.c.l.b16 %v179
    %v1443 = vunpack.c.l.b16 %v180
    %v1444 = vunpack.c.l.b16 %v181
    %v1445 = vunpack.c.l.b16 %v182
    %v1446 = vunpack.c.l.b16 %v183
    %v1447 = vunpack.c.l.b16 %v184
    %v1448 = vunpack.c.l.b16 %v185
    %v1449 = vunpack.c.l.b16 %v186
    %v1450 = vunpack.c.l.b16 %v187
    %v1451 = vunpack.c.l.b16 %v188
    %v1452 = vunpack.c.l.b16 %v189
    %v1453 = vunpack.c.l.b16 %v190
    %v1454 = vunpack.c.l.b16 %v191
    %v1455 = vunpack.c.l.b16 %v192
    %v1456 = vunpack.c.l.b16 %v193
    %v1457 = vunpack.c.l.b16 %v194
    %v1458 = vunpack.c.l.b16 %v195
    %v1459 = vunpack.c.l.b16 %v196
    %v1460 = vunpack.c.l.b16 %v197
    %v1461 = vunpack.c.l.b16 %v198
    %v1462 = vunpack.c.l.b16 %v199
    %v1463 = vunpack.c.l.b16 %v200
    %v1464 = vunpack.c.l.b16 %v201
    %v1465 = vunpack.c.l.b16 %v202
    %v1466 = vunpack.c.l.b16 %v203
    %v1467 = vunpack.c.l.b16 %v204
    %v1468 = vunpack.c.l.b16 %v205
    %v1469 = vunpack.c.l.b16 %v206
    %v1470 = vunpack.c.l.b16 %v207
    %v1471 = vunpack.c.l.b16 %v208
    %v1472 = vunpack.c.l.b16 %v209
    %v1473 = vunpack.c.l.b16 %v210
    %v1474 = vunpack.c.l.b16 %v211
    %v1475 = vunpack.c.l.b16 %v212
    %v1476 = vunpack.c.l.b16 %v213
    %v1477 = vunpack.c.l.b16 %v214
    %v1478 = vunpack.c.l.b16 %v215
    %v1479 = vunpack.c.l.b16 %v216
    %v1480 = vunpack.c.l.b16 %v217
    %v1481 = vunpack.c.l.b16 %v218
    %v1482 = vunpack.c.l.b16 %v219
    %v1483 = vunpack.c.l.b16 %v220
    %v1484 = vunpack.c.l.b16 %v221
    %v1485 = vunpack.c.l.b16 %v222
    %v1486 = vunpack.c.l.b16 %v223
    %v1487 = vunpack.c.l.b16 %v224
    %v1488 = vunpack.c.l.b16 %v225
    %v1489 = vunpack.c.l.b16 %v226
    %v1490 = vunpack.c.l.b16 %v227
    %v1491 = vunpack.c.l.b16 %v228
    %v1492 = vunpack.c.l.b16 %v229
    %v1493 = vunpack.c.l.b16 %v230
    %v1494 = vunpack.c.l.b16 %v231
    %v1495 = vunpack.c.l.b16 %v232
    %v1496 = vunpack.c.l.b16 %v233
    %v1497 = vunpack.c.l.b16 %v234
    %v1498 = vunpack.c.l.b16 %v235
    %v1499 = vunpack.c.l.b16 %v236
    %v1500 = vunpack.c.l.b16 %v237
    %v1501 = vunpack.c.l.b16 %v238
    %v1502 = vunpack.c.l.b16 %v239
    %v1503 = vunpack.c.l.b16 %v240
    %v1504 = vunpack.c.l.b16 %v241
    %v1505 = vunpack.c.l.b16 %v242
    %v1506 = vunpack.c.l.b16 %v243
    %v1507 = vunpack.c.l.b16 %v244
    %v1508 = vunpack.c.l.b16 %v245
    %v1509 = vunpack.c.l.b16 %v246
    %v1510 = vunpack.c.l.b16 %v247
    %v1511 = vunpack.c.l.b16 %v248
    %v1512 = vunpack.c.l.b16 %v249
    %v1513 = vunpack.c.l.b16 %v250
    %v1514 = vunpack.c.l.b16 %v251
    %v1515 = vunpack.c.l.b16 %v252
    %v1516 = vunpack.c.l.b16 %v253
    %v1517 = vunpack.c.l.b16 %v254
    %v1518 = vunpack.c.l.b16 %v255
    %v1519 = vunpack.c.l.b16 %v256
    %v1520 = vunpack.c.l.b16 %v257
    %v1521 = vunpack.c.l.b16 %v258
    %v1522 = vunpack.c.l.b16 %v259
    %v1523 = vunpack.c.l.b16 %v260
    %v1524 = vunpack.c.l.b16 %v261
    %v1525 = vunpack.c.l.b16 %v262
    %v1526 = vunpack.c.l.b16 %v263
    %v1527 = vunpack.c.l.b16 %v264
    %v1528 = vunpack.c.l.b16 %v265
    %v1529 = vunpack.c.l.b16 %v266
    %v1530 = vunpack.c.l.b16 %v267
    %v1531 = vunpack.c.l.b16 %v268
    %v1532 = vunpack.c.l.b16 %v269
    %v1533 = vunpack.c.l.b16 %v270
    %v1534 = vunpack.c.l.b16 %v271
    %v1535 = vunpack.c.l.b16 %v272
    %v1536 = vunpack.c.l.b16 %v273
    %v1537 = vunpack.c.l.b16 %v274
    %v1538 = vunpack.c.l.b16 %v275
    %v1539 = vunpack.c.l.b16 %v276
    %v1540 = vunpack.c.l.b16 %v277
    %v1541 = vunpack.c.l.b16 %v278
    %v1542 = vunpack.c.l.b16 %v279
    %v1543 = vunpack.c.l.b16 %v280
    %v1544 = vunpack.c.l.b16 %v281
    %v1545 = vunpack.c.l.b16 %v282
    %v1546 = vunpack.c.l.b16 %v283
    %v1547 = vunpack.c.l.b16 %v284
    %v1548 = vunpack.c.l.b16 %v285
    %v1549 = vunpack.c.l.b16 %v286
    %v1550 = vunpack.c.l.b16 %v287
    %v1551 = vunpack.c.l.b16 %v288
    %v1552 = vunpack.c.l.b16 %v289
    %v1553 = vunpack.c.l.b16 %v290
    %v1554 = vunpack.c.l.b16 %v291
    %v1555 = vunpack.c.l.b16 %v292
    %v1556 = vunpack.c.l.b16 %v293
    %v1557 = vunpack.c.l.b16 %v294
    %v1558 = vunpack.c.l.b16 %v295
    %v1559 = vunpack.c.l.b16 %v296
    %v1560 = vunpack.c.l.b16 %v297
    %v1561 = vunpack.c.l.b16 %v298
    %v1562 = vunpack.c.l.b16 %v299
    %v1563 = vunpack.c.l.b16 %v300
    %v1564 = vunpack.c.l.b16 %v301
    %v1565 = vunpack.c.l.b16 %v302
    %v1566 = vunpack.c.l.b16 %v303
    %v1567 = vunpack.c.l.b16 %v304
    %v1568 = vunpack.c.l.b16 %v305
    %v1569 = vunpack.c.l.b16 %v306
    %v1570 = vunpack.c.l.b16 %v307
    %v1571 = vunpack.c.l.b16 %v308
    %v1572 = vunpack.c.l.b16 %v309
    %v1573 = vunpack.c.l.b16 %v310
    %v1574 = vunpack.c.l.b16 %v311
    %v1575 = vunpack.c.l.b16 %v312
    %v1576 = vunpack.c.l.b16 %v313
    %v1577 = vunpack.c.l.b16 %v314
    %v1578 = vunpack.c.l.b16 %v315
    %v1579 = vunpack.c.l.b16 %v316
    %v1580 = vunpack.c.l.b16 %v317
    %v1581 = vunpack.c.l.b16 %v318
    %v1582 = vunpack.c.l.b16 %v319
    %v1583 = vunpack.c.l.b16 %v320
    %v1584 = vunpack.c.l.b16 %v321
    %v1585 = vunpack.c.l.b16 %v322
    %v1586 = vunpack.c.l.b16 %v323
    %v1587 = vunpack.c.l.b16 %v324
    %v1588 = vunpack.c.l.b16 %v325
    %v1589 = vunpack.c.l.b16 %v326
    %v1590 = vunpack.c.l.b16 %v327
    %v1591 = vunpack.c.l.b16 %v328
    %v1592 = vunpack.c.l.b16 %v329
    %v1593 = vunpack.c.l.b16 %v330
    %v1594 = vunpack.c.l.b16 %v331
    %v1595 = vunpack.c.l.b16 %v332
    %v1596 = vunpack.c.l.b16 %v333
    %v1597 = vunpack.c.l.b16 %v334
    %v1598 = vunpack.c.l.b16 %v335
    %v1599 = vunpack.c.l.b16 %v336
    %v1600 = vunpack.c.l.b16 %v337
    %v1601 = vunpack.c.l.b16 %v338
    %v1602 = vunpack.c.l.b16 %v339
    %v1603 = vunpack.c.l.b16 %v340
    %v1604 = vunpack.c.l.b16 %v341
    %v1605 = vunpack.c.l.b16 %v342
    %v1606 = vunpack.c.l.b16 %v343
    %v1607 = vunpack.c.l.b16 %v344
    %v1608 = vunpack.c.l.b16 %v345
    %v1609 = vunpack.c.l.b16 %v346
    %v1610 = vunpack.c.l.b16 %v347
    %v1611 = vunpack.c.l.b16 %v348
    %v1612 = vunpack.c.l.b16 %v349
    %v1613 = vunpack.c.l.b16 %v350
    %v1614 = vunpack.c.l.b16 %v351
    %v1615 = vunpack.c.l.b16 %v352
    %v1616 = vunpack.c.l.b16 %v353
    %v1617 = vunpack.c.l.b16 %v354
    %v1618 = vunpack.c.l.b16 %v355
    %v1619 = vunpack.c.l.b16 %v356
    %v1620 = vunpack.c.l.b16 %v357
    %v1621 = vunpack.c.l.b16 %v358
    %v1622 = vunpack.c.l.b16 %v359
    %v1623 = vunpack.c.l.b16 %v360
    %v1624 = vunpack.c.l.b16 %v361
    %v1625 = vunpack.c.l.b16 %v362
    %v1626 = vunpack.c.l.b16 %v363
    %v1627 = vunpack.c.l.b16 %v364
    %v1628 = vunpack.c.l.b16 %v365
    %v1629 = vunpack.c.l.b16 %v366
    %v1630 = vunpack.c.l.b16 %v367
    %v1631 = vunpack.c.l.b16 %v368
    %v1632 = vunpack.c.l.b16 %v369
    %v1633 = vunpack.c.l.b16 %v370
    %v1634 = vunpack.c.l.b16 %v371
    %v1635 = vunpack.c.l.b16 %v372
    %v1636 = vunpack.c.l.b16 %v373
    %v1637 = vunpack.c.l.b16 %v374
    %v1638 = vunpack.c.l.b16 %v375
    %v1639 = vunpack.c.l.b16 %v376
    %v1640 = vunpack.c.l.b16 %v377
    %v1641 = vunpack.c.l.b16 %v378
    %v1642 = vunpack.c.l.b16 %v379
    %v1643 = vunpack.c.l.b16 %v380
    %v1644 = vunpack.c.l.b16 %v381
    %v1645 = vunpack.c.l.b16 %v382
    %v1646 = vunpack.c.l.b16 %v383
    %v1647 = vunpack.c.l.b16 %v384
    %v1648 = vunpack.c.l.b16 %v385
    %v1649 = vunpack.c.l.b16 %v386
    %v1650 = vunpack.c.l.b16 %v387
    %v1651 = vunpack.c.l.b16 %v388
    %v1652 = vunpack.c.l.b16 %v389
    %v1653 = vunpack.c.l.b16 %v390
    %v1654 = vunpack.c.l.b16 %v391
    %v1655 = vunpack.c.l.b16 %v392
    %v1656 = vunpack.c.l.b16 %v393
    %v1657 = vunpack.c.l.b16 %v394
    %v1658 = vunpack.c.l.b16 %v395
    %v1659 = vunpack.c.l.b16 %v396
    %v1660 = vunpack.c.l.b16 %v397
    %v1661 = vunpack.c.l.b16 %v398
    %v1662 = vunpack.c.l.b16 %v399
    %v1663 = vunpack.c.l.b16 %v400
    %v1664 = vunpack.c.l.b16 %v401
    %v1665 = vunpack.c.l.b16 %v402
    %v1666 = vunpack.c.l.b16 %v403
    %v1667 = vunpack.c.l.b16 %v404
    %v1668 = vunpack.c.l.b16 %v405
    %v1669 = vunpack.c.l.b16 %v406
    %v1670 = vunpack.c.l.b16 %v407
    %v1671 = vunpack.c.l.b16 %v408
    %v1672 = vunpack.c.l.b16 %v409
    %v1673 = vunpack.c.l.b16 %v410
    %v1674 = vunpack.c.l.b16 %v411
    %v1675 = vunpack.c.l.b16 %v412
    %v1676 = vunpack.c.l.b16 %v413
    %v1677 = vunpack.c.l.b16 %v414
    %v1678 = vunpack.c.l.b16 %v415
    %v1679 = vunpack.c.l.b16 %v416
    %v1680 = vunpack.c.l.b16 %v417
    %v1681 = vunpack.c.l.b16 %v418
    %v1682 = vunpack.c.l.b16 %v419
    %v1683 = vunpack.c.l.b16 %v420
    %v1684 = vunpack.c.l.b16 %v421
    %v1685 = vunpack.c.l.b16 %v422
    %v1686 = vunpack.c.l.b16 %v423
    %v1687 = vunpack.c.l.b16 %v424
    %v1688 = vunpack.c.l.b16 %v425
    %v1689 = vunpack.c.l.b16 %v426
    %v1690 = vunpack.c.l.b16 %v427
    %v1691 = vunpack.c.l.b16 %v428
    %v1692 = vunpack.c.l.b16 %v429
    %v1693 = vunpack.c.l.b16 %v430
    %v1694 = vunpack.c.l.b16 %v431
    %v1695 = vunpack.c.l.b16 %v432
    %v1696 = vunpack.c.l.b16 %v433
    %v1697 = vunpack.c.l.b16 %v434
    %v1698 = vunpack.c.l.b16 %v435
    %v1699 = vunpack.c.l.b16 %v436
    %v1700 = vunpack.c.l.b16 %v437
    %v1701 = vunpack.c.l.b16 %v438
    %v1702 = vunpack.c.l.b16 %v439
    %v1703 = vunpack.c.l.b16 %v440
    %v1704 = vunpack.c.l.b16 %v441
    %v1705 = vunpack.c.l.b16 %v442
    %v1706 = vunpack.c.l.b16 %v443
    %v1707 = vunpack.c.l.b16 %v444
    %v1708 = vunpack.c.l.b16 %v445
    %v1709 = vunpack.c.l.b16 %v446
    %v1710 = vunpack.c.l.b16 %v447
    %v1711 = vunpack.c.l.b16 %v448
    %v1712 = vunpack.c.l.b16 %v449
    %v1713 = vunpack.c.l.b16 %v450
    %v1714 = vunpack.c.l.b16 %v451
    %v1715 = vunpack.c.l.b16 %v452
    %v1716 = vunpack.c.l.b16 %v453
    %v1717 = vunpack.c.l.b16 %v454
    %v1718 = vunpack.c.l.b16 %v455
    %v1719 = vunpack.c.l.b16 %v456
    %v1720 = vunpack.c.l.b16 %v457
    %v1721 = vunpack.c.l.b16 %v458
    %v1722 = vunpack.c.l.b16 %v459
    %v1723 = vunpack.c.l.b16 %v460
    %v1724 = vunpack.c.l.b16 %v461
    %v1725 = vunpack.c.l.b16 %v462
    %v1726 = vunpack.c.l.b16 %v463
    %v1727 = vunpack.c.l.b16 %v464
    %v1728 = vunpack.c.l.b16 %v465
    %v1729 = vunpack.c.l.b16 %v466
    %v1730 = vunpack.c.l.b16 %v467
    %v1731 = vunpack.c.l.b16 %v468
    %v1732 = vunpack.c.l.b16 %v469
    %v1733 = vunpack.c.l.b16 %v470
    %v1734 = vunpack.c.l.b16 %v471
    %v1735 = vunpack.c.l.b16 %v472
    %v1736 = vunpack.c.l.b16 %v473
    %v1737 = vunpack.c.l.b16 %v474
    %v1738 = vunpack.c.l.b16 %v475
    %v1739 = vunpack.c.l.b16 %v476
    %v1740 = vunpack.c.l.b16 %v477
    %v1741 = vunpack.c.l.b16 %v478
    %v1742 = vunpack.c.l.b16 %v479
    %v1743 = vunpack.c.l.b16 %v480
    %v1744 = vunpack.c.l.b16 %v481
    %v1745 = vunpack.c.l.b16 %v482
    %v1746 = vunpack.c.l.b16 %v483
    %v1747 = vunpack.c.l.b16 %v484
    %v1748 = vunpack.c.l.b16 %v485
    %v1749 = vunpack.c.l.b16 %v486
    %v1750 = vunpack.c.l.b16 %v487
    %v1751 = vunpack.c.l.b16 %v488
    %v1752 = vunpack.c.l.b16 %v489
    %v1753 = vunpack.c.l.b16 %v490
    %v1754 = vunpack.c.l.b16 %v491
    %v1755 = vunpack.c.l.b16 %v492
    %v1756 = vunpack.c.l.b16 %v493
    %v1757 = vunpack.c.l.b16 %v494
    %v1758 = vunpack.c.l.b16 %v495
    %v1759 = vunpack.c.l.b16 %v496
    %v1760 = vunpack.c.l.b16 %v497
    %v1761 = vunpack.c.l.b16 %v498
    %v1762 = vunpack.c.l.b16 %v499
    %v1763 = vunpack.c.l.b16 %v500
    %v1764 = vunpack.c.l.b16 %v501
    %v1765 = vunpack.c.l.b16 %v502
    %v1766 = vunpack.c.l.b16 %v503
    %v1767 = vunpack.c.l.b16 %v504
    %v1768 = vunpack.c.l.b16 %v505
    %v1769 = vunpack.c.l.b16 %v506
    %v1770 = vunpack.c.l.b16 %v507
    %v1771 = vunpack.c.l.b16 %v508
    %v1772 = vunpack.c.l.b16 %v509
    %v1773 = vunpack.c.l.b16 %v510
    %v1774 = vunpack.c.l.b16 %v511
    %v1775 = vunpack.c.l.b16 %v512
    %v1776 = vunpack.c.l.b16 %v513
    %v1777 = vunpack.c.l.b16 %v514
    %v1778 = vunpack.c.l.b16 %v515
    %v1779 = vunpack.c.l.b16 %v516
    %v1780 = vunpack.c.l.b16 %v517
    %v1781 = vunpack.c.l.b16 %v518
    %v1782 = vunpack.c.l.b16 %v519
    %v1783 = vunpack.c.l.b16 %v520
    %v1784 = vunpack.c.l.b16 %v521
    %v1785 = vunpack.c.l.b16 %v522
    %v1786 = vunpack.c.l.b16 %v523
    %v1787 = vunpack.c.l.b16 %v524
    %v1788 = vunpack.c.l.b16 %v525
    %v1789 = vunpack.c.l.b16 %v526
    %v1790 = vunpack.c.l.b16 %v527
    %v1791 = vunpack.c.l.b16 %v528
    %v1792 = vunpack.c.l.b16 %v529
    %v1793 = vunpack.c.l.b16 %v530
    %v1794 = vunpack.c.l.b16 %v531
    %v1795 = vunpack.c.l.b16 %v532
    %v1796 = vunpack.c.l.b16 %v533
    %v1797 = vunpack.c.l.b16 %v534
    %v1798 = vunpack.c.l.b16 %v535
    %v1799 = vunpack.c.l.b16 %v536
    %v1800 = vunpack.c.l.b16 %v537
    %v1801 = vunpack.c.l.b16 %v538
    %v1802 = vunpack.c.l.b16 %v539
    %v1803 = vunpack.c.l.b16 %v540
    %v1804 = vpack.c.b16 %v1293, %v1292
    %v1805 = vpack.c.b16 %v1295, %v1294
    %v1806 = vpack.c.b16 %v1297, %v1296
    %v1807 = vpack.c.b16 %v1299, %v1298
    %v1808 = vpack.c.b16 %v1301, %v1300
    %v1809 = vpack.c.b16 %v1303, %v1302
    %v1810 = vpack.c.b16 %v1305, %v1304
    %v1811 = vpack.c.b16 %v1307, %v1306
    %v1812 = vpack.c.b16 %v1309, %v1308
    %v1813 = vpack.c.b16 %v1311, %v1310
    %v1814 = vpack.c.b16 %v1313, %v1312
    %v1815 = vpack.c.b16 %v1315, %v1314
    %v1816 = vpack.c.b16 %v1317, %v1316
    %v1817 = vpack.c.b16 %v1319, %v1318
    %v1818 = vpack.c.b16 %v1321, %v1320
    %v1819 = vpack.c.b16 %v1323, %v1322
    %v1820 = vpack.c.b16 %v1325, %v1324
    %v1821 = vpack.c.b16 %v1327, %v1326
    %v1822 = vpack.c.b16 %v1329, %v1328
    %v1823 = vpack.c.b16 %v1331, %v1330
    %v1824 = vpack.c.b16 %v1333, %v1332
    %v1825 = vpack.c.b16 %v1335, %v1334
    %v1826 = vpack.c.b16 %v1337, %v1336
    %v1827 = vpack.c.b16 %v1339, %v1338
    %v1828 = vpack.c.b16 %v1341, %v1340
    %v1829 = vpack.c.b16 %v1343, %v1342
    %v1830 = vpack.c.b16 %v1345, %v1344
    %v1831 = vpack.c.b16 %v1347, %v1346
    %v1832 = vpack.c.b16 %v1349, %v1348
    %v1833 = vpack.c.b16 %v1351, %v1350
    %v1834 = vpack.c.b16 %v1353, %v1352
    %v1835 = vpack.c.b16 %v1355, %v1354
    %v1836 = vpack.c.b16 %v1357, %v1356
    %v1837 = vpack.c.b16 %v1359, %v1358
    %v1838 = vpack.c.b16 %v1361, %v1360
    %v1839 = vpack.c.b16 %v1363, %v1362
    %v1840 = vpack.c.b16 %v1365, %v1364
    %v1841 = vpack.c.b16 %v1367, %v1366
    %v1842 = vpack.c.b16 %v1369, %v1368
    %v1843 = vpack.c.b16 %v1371, %v1370
    %v1844 = vpack.c.b16 %v1373, %v1372
    %v1845 = vpack.c.b16 %v1375, %v1374
    %v1846 = vpack.c.b16 %v1377, %v1376
    %v1847 = vpack.c.b16 %v1379, %v1378
    %v1848 = vpack.c.b16 %v1381, %v1380
    %v1849 = vpack.c.b16 %v1383, %v1382
    %v1850 = vpack.c.b16 %v1385, %v1384
    %v1851 = vpack.c.b16 %v1387, %v1386
    %v1852 = vpack.c.b16 %v1389, %v1388
    %v1853 = vpack.c.b16 %v1391, %v1390
    %v1854 = vpack.c.b16 %v1393, %v1392
    %v1855 = vpack.c.b16 %v1395, %v1394
    %v1856 = vpack.c.b16 %v1397, %v1396
    %v1857 = vpack.c.b16 %v1399, %v1398
    %v1858 = vpack.c.b16 %v1401, %v1400
    %v1859 = vpack.c.b16 %v1403, %v1402
    %v1860 = vpack.c.b16 %v1405, %v1404
    %v1861 = vpack.c.b16 %v1407, %v1406
    %v1862 = vpack.c.b16 %v1409, %v1408
    %v1863 = vpack.c.b16 %v1411, %v1410
    %v1864 = vpack.c.b16 %v1413, %v1412
    %v1865 = vpack.c.b16 %v1415, %v1414
    %v1866 = vpack.c.b16 %v1417, %v1416
    %v1867 = vpack.c.b16 %v1419, %v1418
    %v1868 = vpack.c.b16 %v1421, %v1420
    %v1869 = vpack.c.b16 %v1423, %v1422
    %v1870 = vpack.c.b16 %v1425, %v1424
    %v1871 = vpack.c.b16 %v1427, %v1426
    %v1872 = vpack.c.b16 %v1429, %v1428
    %v1873 = vpack.c.b16 %v1431, %v1430
    %v1874 = vpack.c.b16 %v1433, %v1432
    %v1875 = vpack.c.b16 %v1435, %v1434
    %v1876 = vpack.c.b16 %v1437, %v1436
    %v1877 = vpack.c.b16 %v1439, %v1438
    %v1878 = vpack.c.b16 %v1441, %v1440
    %v1879 = vpack.c.b16 %v1443, %v1442
    %v1880 = vpack.c.b16 %v1445, %v1444
    %v1881 = vpack.c.b16 %v1447, %v1446
    %v1882 = vpack.c.b16 %v1449, %v1448
    %v1883 = vpack.c.b16 %v1451, %v1450
    %v1884 = vpack.c.b16 %v1453, %v1452
    %v1885 = vpack.c.b16 %v1455, %v1454
    %v1886 = vpack.c.b16 %v1457, %v1456
    %v1887 = vpack.c.b16 %v1459, %v1458
    %v1888 = vpack.c.b16 %v1461, %v1460
    %v1889 = vpack.c.b16 %v1463, %v1462
    %v1890 = vpack.c.b16 %v1465, %v1464
    %v1891 = vpack.c.b16 %v1467, %v1466
    %v1892 = vpack.c.b16 %v1469, %v1468
    %v1893 = vpack.c.b16 %v1471, %v1470
    %v1894 = vpack.c.b16 %v1473, %v1472
    %v1895 = vpack.c.b16 %v1475, %v1474
    %v1896 = vpack.c.b16 %v1477, %v1476
    %v1897 = vpack.c.b16 %v1479, %v1478
    %v1898 = vpack.c.b16 %v1481, %v1480
    %v1899 = vpack.c.b16 %v1483, %v1482
    %v1900 = vpack.c.b16 %v1485, %v1484
    %v1901 = vpack.c.b16 %v1487, %v1486
    %v1902 = vpack.c.b16 %v1489, %v1488
    %v1903 = vpack.c.b16 %v1491, %v1490
    %v1904 = vpack.c.b16 %v1493, %v1492
    %v1905 = vpack.c.b16 %v1495, %v1494
    %v1906 = vpack.c.b16 %v1497, %v1496
    %v1907 = vpack.c.b16 %v1499, %v1498
    %v1908 = vpack.c.b16 %v1501, %v1500
    %v1909 = vpack.c.b16 %v1503, %v1502
    %v1910 = vpack.c.b16 %v1505, %v1504
    %v1911 = vpack.c.b16 %v1507, %v1506
    %v1912 = vpack.c.b16 %v1509, %v1508
    %v1913 = vpack.c.b16 %v1511, %v1510
    %v1914 = vpack.c.b16 %v1513, %v1512
    %v1915 = vpack.c.b16 %v1515, %v1514
    %v1916 = vpack.c.b16 %v1517, %v1516
    %v1917 = vpack.c.b16 %v1519, %v1518
    %v1918 = vpack.c.b16 %v1521, %v1520
    %v1919 = vpack.c.b16 %v1523, %v1522
    %v1920 = vpack.c.b16 %v1525, %v1524
    %v1921 = vpack.c.b16 %v1527, %v1526
    %v1922 = vpack.c.b16 %v1529, %v1528
    %v1923 = vpack.c.b16 %v1531, %v1530
    %v1924 = vpack.c.b16 %v1533, %v1532
    %v1925 = vpack.c.b16 %v1535, %v1534
    %v1926 = vpack.c.b16 %v1537, %v1536
    %v1927 = vpack.c.b16 %v1539, %v1538
    %v1928 = vpack.c.b16 %v1541, %v1540
    %v1929 = vpack.c.b16 %v1543, %v1542
    %v1930 = vpack.c.b16 %v1545, %v1544
    %v1931 = vpack.c.b16 %v1547, %v1546
    %v1932 = vpack.c.b16 %v1549, %v1548
    %v1933 = vpack.c.b16 %v1551, %v1550
    %v1934 = vpack.c.b16 %v1553, %v1552
    %v1935 = vpack.c.b16 %v1555, %v1554
    %v1936 = vpack.c.b16 %v1557, %v1556
    %v1937 = vpack.c.b16 %v1559, %v1558
    %v1938 = vpack.c.b16 %v1561, %v1560
    %v1939 = vpack.c.b16 %v1563, %v1562
    %v1940 = vpack.c.b16 %v1565, %v1564
    %v1941 = vpack.c.b16 %v1567, %v1566
    %v1942 = vpack.c.b16 %v1569, %v1568
    %v1943 = vpack.c.b16 %v1571, %v1570
    %v1944 = vpack.c.b16 %v1573, %v1572
    %v1945 = vpack.c.b16 %v1575, %v1574
    %v1946 = vpack.c.b16 %v1577, %v1576
    %v1947 = vpack.c.b16 %v1579, %v1578
    %v1948 = vpack.c.b16 %v1581, %v1580
    %v1949 = vpack.c.b16 %v1583, %v1582
    %v1950 = vpack.c.b16 %v1585, %v1584
    %v1951 = vpack.c.b16 %v1587, %v1586
    %v1952 = vpack.c.b16 %v1589, %v1588
    %v1953 = vpack.c.b16 %v1591, %v1590
    %v1954 = vpack.c.b16 %v1593, %v1592
    %v1955 = vpack.c.b16 %v1595, %v1594
    %v1956 = vpack.c.b16 %v1597, %v1596
    %v1957 = vpack.c.b16 %v1599, %v1598
    %v1958 = vpack.c.b16 %v1601, %v1600
    %v1959 = vpack.c.b16 %v1603, %v1602
    %v1960 = vpack.c.b16 %v1605, %v1604
    %v1961 = vpack.c.b16 %v1607, %v1606
    %v1962 = vpack.c.b16 %v1609, %v1608
    %v1963 = vpack.c.b16 %v1611, %v1610
    %v1964 = vpack.c.b16 %v1613, %v1612
    %v1965 = vpack.c.b16 %v1615, %v1614
    %v1966 = vpack.c.b16 %v1617, %v1616
    %v1967 = vpack.c.b16 %v1619, %v1618
    %v1968 = vpack.c.b16 %v1621, %v1620
    %v1969 = vpack.c.b16 %v1623, %v1622
    %v1970 = vpack.c.b16 %v1625, %v1624
    %v1971 = vpack.c.b16 %v1627, %v1626
    %v1972 = vpack.c.b16 %v1629, %v1628
    %v1973 = vpack.c.b16 %v1631, %v1630
    %v1974 = vpack.c.b16 %v1633, %v1632
    %v1975 = vpack.c.b16 %v1635, %v1634
    %v1976 = vpack.c.b16 %v1637, %v1636
    %v1977 = vpack.c.b16 %v1639, %v1638
    %v1978 = vpack.c.b16 %v1641, %v1640
    %v1979 = vpack.c.b16 %v1643, %v1642
    %v1980 = vpack.c.b16 %v1645, %v1644
    %v1981 = vpack.c.b16 %v1647, %v1646
    %v1982 = vpack.c.b16 %v1649, %v1648
    %v1983 = vpack.c.b16 %v1651, %v1650
    %v1984 = vpack.c.b16 %v1653, %v1652
    %v1985 = vpack.c.b16 %v1655, %v1654
    %v1986 = vpack.c.b16 %v1657, %v1656
    %v1987 = vpack.c.b16 %v1659, %v1658
    %v1988 = vpack.c.b16 %v1661, %v1660
    %v1989 = vpack.c.b16 %v1663, %v1662
    %v1990 = vpack.c.b16 %v1665, %v1664
    %v1991 = vpack.c.b16 %v1667, %v1666
    %v1992 = vpack.c.b16 %v1669, %v1668
    %v1993 = vpack.c.b16 %v1671, %v1670
    %v1994 = vpack.c.b16 %v1673, %v1672
    %v1995 = vpack.c.b16 %v1675, %v1674
    %v1996 = vpack.c.b16 %v1677, %v1676
    %v1997 = vpack.c.b16 %v1679, %v1678
    %v1998 = vpack.c.b16 %v1681, %v1680
    %v1999 = vpack.c.b16 %v1683, %v1682
    %v2000 = vpack.c.b16 %v1685, %v1684
    %v2001 = vpack.c.b16 %v1687, %v1686
    %v2002 = vpack.c.b16 %v1689, %v1688
    %v2003 = vpack.c.b16 %v1691, %v1690
    %v2004 = vpack.c.b16 %v1693, %v1692
    %v2005 = vpack.c.b16 %v1695, %v1694
    %v2006 = vpack.c.b16 %v1697, %v1696
    %v2007 = vpack.c.b16 %v1699, %v1698
    %v2008 = vpack.c.b16 %v1701, %v1700
    %v2009 = vpack.c.b16 %v1703, %v1702
    %v2010 = vpack.c.b16 %v1705, %v1704
    %v2011 = vpack.c.b16 %v1707, %v1706
    %v2012 = vpack.c.b16 %v1709, %v1708
    %v2013 = vpack.c.b16 %v1711, %v1710
    %v2014 = vpack.c.b16 %v1713, %v1712
    %v2015 = vpack.c.b16 %v1715, %v1714
    %v2016 = vpack.c.b16 %v1717, %v1716
    %v2017 = vpack.c.b16 %v1719, %v1718
    %v2018 = vpack.c.b16 %v1721, %v1720
    %v2019 = vpack.c.b16 %v1723, %v1722
    %v2020 = vpack.c.b16 %v1725, %v1724
    %v2021 = vpack.c.b16 %v1727, %v1726
    %v2022 = vpack.c.b16 %v1729, %v1728
    %v2023 = vpack.c.b16 %v1731, %v1730
    %v2024 = vpack.c.b16 %v1733, %v1732
    %v2025 = vpack.c.b16 %v1735, %v1734
    %v2026 = vpack.c.b16 %v1737, %v1736
    %v2027 = vpack.c.b16 %v1739, %v1738
    %v2028 = vpack.c.b16 %v1741, %v1740
    %v2029 = vpack.c.b16 %v1743, %v1742
    %v2030 = vpack.c.b16 %v1745, %v1744
    %v2031 = vpack.c.b16 %v1747, %v1746
    %v2032 = vpack.c.b16 %v1749, %v1748
    %v2033 = vpack.c.b16 %v1751, %v1750
    %v2034 = vpack.c.b16 %v1753, %v1752
    %v2035 = vpack.c.b16 %v1755, %v1754
    %v2036 = vpack.c.b16 %v1757, %v1756
    %v2037 = vpack.c.b16 %v1759, %v1758
    %v2038 = vpack.c.b16 %v1761, %v1760
    %v2039 = vpack.c.b16 %v1763, %v1762
    %v2040 = vpack.c.b16 %v1765, %v1764
    %v2041 = vpack.c.b16 %v1767, %v1766
    %v2042 = vpack.c.b16 %v1769, %v1768
    %v2043 = vpack.c.b16 %v1771, %v1770
    %v2044 = vpack.c.b16 %v1773, %v1772
    %v2045 = vpack.c.b16 %v1775, %v1774
    %v2046 = vpack.c.b16 %v1777, %v1776
    %v2047 = vpack.c.b16 %v1779, %v1778
    %v2048 = vpack.c.b16 %v1781, %v1780
    %v2049 = vpack.c.b16 %v1783, %v1782
    %v2050 = vpack.c.b16 %v1785, %v1784
    %v2051 = vpack.c.b16 %v1787, %v1786
    %v2052 = vpack.c.b16 %v1789, %v1788
    %v2053 = vpack.c.b16 %v1791, %v1790
    %v2054 = vpack.c.b16 %v1793, %v1792
    %v2055 = vpack.c.b16 %v1795, %v1794
    %v2056 = vpack.c.b16 %v1797, %v1796
    %v2057 = vpack.c.b16 %v1799, %v1798
    %v2058 = vpack.c.b16 %v1801, %v1800
    %v2059 = vpack.c.b16 %v1803, %v1802
    %2316 = vmatprep.subr.bf16.mxu0 0
    %2317 = vmatpush1.bf16.msra.mxu0 %v1804
    %2318 = vmatprep.subr.bf16.mxu0 0
    %2319 = vmatpush1.bf16.msra.mxu0 %v1805
    %2320 = vmatprep.subr.bf16.mxu0 0
    %2321 = vmatpush1.bf16.msra.mxu0 %v1806
    %2322 = vmatprep.subr.bf16.mxu0 0
    %2323 = vmatpush1.bf16.msra.mxu0 %v1807
    %2324 = vmatprep.subr.bf16.mxu0 0
    %2325 = vmatpush1.bf16.msra.mxu0 %v1808
    %2326 = vmatprep.subr.bf16.mxu0 0
    %2327 = vmatpush1.bf16.msra.mxu0 %v1809
    %2328 = vmatprep.subr.bf16.mxu0 0
    %2329 = vmatpush1.bf16.msra.mxu0 %v1810
    %2330 = vmatprep.subr.bf16.mxu0 0
    %2331 = vmatpush1.bf16.msra.mxu0 %v1811
    %2332 = vmatprep.subr.bf16.mxu0 0
    %2333 = vmatpush1.bf16.msra.mxu0 %v1812
    %2334 = vmatprep.subr.bf16.mxu0 0
    %2335 = vmatpush1.bf16.msra.mxu0 %v1813
    %2336 = vmatprep.subr.bf16.mxu0 0
    %2337 = vmatpush1.bf16.msra.mxu0 %v1814
    %2338 = vmatprep.subr.bf16.mxu0 0
    %2339 = vmatpush1.bf16.msra.mxu0 %v1815
    %2340 = vmatprep.subr.bf16.mxu0 0
    %2341 = vmatpush1.bf16.msra.mxu0 %v1816
    %2342 = vmatprep.subr.bf16.mxu0 0
    %2343 = vmatpush1.bf16.msra.mxu0 %v1817
    %2344 = vmatprep.subr.bf16.mxu0 0
    %2345 = vmatpush1.bf16.msra.mxu0 %v1818
    %2346 = vmatprep.subr.bf16.mxu0 0
    %2347 = vmatpush1.bf16.msra.mxu0 %v1819
    %2348 = vmatprep.mubr.bf16.mxu0 %v589
    %2349 = vmatmul.mubr.bf16.gmra.mrb[0].mxu0 %v575
    %v2350 = vpop.f32.mrb[0].mxu0
    %v2351 = vadd.f32 %v546, %v2350
    %v2352 = vpop.f32.mrb[0].mxu0
    %v2353 = vpop.f32.mrb[0].mxu0
    %v2354 = vpop.f32.mrb[0].mxu0
    %2355 = vdwg.mxu0
    %2356 = vmatprep.subr.bf16.mxu0 0
    %2357 = vmatpush1.bf16.msra.mxu0 %v1820
    %2358 = vmatprep.subr.bf16.mxu0 0
    %2359 = vmatpush1.bf16.msra.mxu0 %v1821
    %2360 = vmatprep.subr.bf16.mxu0 0
    %2361 = vmatpush1.bf16.msra.mxu0 %v1822
    %2362 = vmatprep.subr.bf16.mxu0 0
    %2363 = vmatpush1.bf16.msra.mxu0 %v1823
    %2364 = vmatprep.subr.bf16.mxu0 0
    %2365 = vmatpush1.bf16.msra.mxu0 %v1824
    %2366 = vmatprep.subr.bf16.mxu0 0
    %2367 = vmatpush1.bf16.msra.mxu0 %v1825
    %2368 = vmatprep.subr.bf16.mxu0 0
    %2369 = vmatpush1.bf16.msra.mxu0 %v1826
    %2370 = vmatprep.subr.bf16.mxu0 0
    %2371 = vmatpush1.bf16.msra.mxu0 %v1827
    %2372 = vmatprep.subr.bf16.mxu0 0
    %2373 = vmatpush1.bf16.msra.mxu0 %v1828
    %2374 = vmatprep.subr.bf16.mxu0 0
    %2375 = vmatpush1.bf16.msra.mxu0 %v1829
    %2376 = vmatprep.subr.bf16.mxu0 0
    %2377 = vmatpush1.bf16.msra.mxu0 %v1830
    %2378 = vmatprep.subr.bf16.mxu0 0
    %2379 = vmatpush1.bf16.msra.mxu0 %v1831
    %2380 = vmatprep.subr.bf16.mxu0 0
    %2381 = vmatpush1.bf16.msra.mxu0 %v1832
    %2382 = vmatprep.subr.bf16.mxu0 0
    %2383 = vmatpush1.bf16.msra.mxu0 %v1833
    %2384 = vmatprep.subr.bf16.mxu0 0
    %2385 = vmatpush1.bf16.msra.mxu0 %v1834
    %2386 = vmatprep.subr.bf16.mxu0 0
    %2387 = vmatpush1.bf16.msra.mxu0 %v1835
    %2388 = vmatprep.mubr.bf16.mxu0 %v599
    %2389 = vmatmul.mubr.bf16.gmra.mrb[0].mxu0 %v597
    %v2390 = vpop.f32.mrb[0].mxu0
    %v2391 = vadd.f32 %v2351, %v2390
    %v2392 = vpop.f32.mrb[0].mxu0
    %v2393 = vpop.f32.mrb[0].mxu0
    %v2394 = vpop.f32.mrb[0].mxu0
    %2395 = vdwg.mxu0
    %2396 = vmatprep.subr.bf16.mxu0 0
    %2397 = vmatpush1.bf16.msra.mxu0 %v1836
    %2398 = vmatprep.subr.bf16.mxu0 0
    %2399 = vmatpush1.bf16.msra.mxu0 %v1837
    %2400 = vmatprep.subr.bf16.mxu0 0
    %2401 = vmatpush1.bf16.msra.mxu0 %v1838
    %2402 = vmatprep.subr.bf16.mxu0 0
    %2403 = vmatpush1.bf16.msra.mxu0 %v1839
    %2404 = vmatprep.subr.bf16.mxu0 0
    %2405 = vmatpush1.bf16.msra.mxu0 %v1840
    %2406 = vmatprep.subr.bf16.mxu0 0
    %2407 = vmatpush1.bf16.msra.mxu0 %v1841
    %2408 = vmatprep.subr.bf16.mxu0 0
    %2409 = vmatpush1.bf16.msra.mxu0 %v1842
    %2410 = vmatprep.subr.bf16.mxu0 0
    %2411 = vmatpush1.bf16.msra.mxu0 %v1843
    %2412 = vmatprep.subr.bf16.mxu0 0
    %2413 = vmatpush1.bf16.msra.mxu0 %v1844
    %2414 = vmatprep.subr.bf16.mxu0 0
    %2415 = vmatpush1.bf16.msra.mxu0 %v1845
    %2416 = vmatprep.subr.bf16.mxu0 0
    %2417 = vmatpush1.bf16.msra.mxu0 %v1846
    %2418 = vmatprep.subr.bf16.mxu0 0
    %2419 = vmatpush1.bf16.msra.mxu0 %v1847
    %2420 = vmatprep.subr.bf16.mxu0 0
    %2421 = vmatpush1.bf16.msra.mxu0 %v1848
    %2422 = vmatprep.subr.bf16.mxu0 0
    %2423 = vmatpush1.bf16.msra.mxu0 %v1849
    %2424 = vmatprep.subr.bf16.mxu0 0
    %2425 = vmatpush1.bf16.msra.mxu0 %v1850
    %2426 = vmatprep.subr.bf16.mxu0 0
    %2427 = vmatpush1.bf16.msra.mxu0 %v1851
    %2428 = vmatprep.mubr.bf16.mxu0 %v596
    %2429 = vmatmul.mubr.bf16.gmra.mrb[0].mxu0 %v582
    %v2430 = vpop.f32.mrb[0].mxu0
    %v2431 = vadd.f32 %v2391, %v2430
    %v2432 = vpop.f32.mrb[0].mxu0
    %v2433 = vpop.f32.mrb[0].mxu0
    %v2434 = vpop.f32.mrb[0].mxu0
    %2435 = vdwg.mxu0
    %2436 = vmatprep.subr.bf16.mxu0 0
    %2437 = vmatpush1.bf16.msra.mxu0 %v1852
    %2438 = vmatprep.subr.bf16.mxu0 0
    %2439 = vmatpush1.bf16.msra.mxu0 %v1853
    %2440 = vmatprep.subr.bf16.mxu0 0
    %2441 = vmatpush1.bf16.msra.mxu0 %v1854
    %2442 = vmatprep.subr.bf16.mxu0 0
    %2443 = vmatpush1.bf16.msra.mxu0 %v1855
    %2444 = vmatprep.subr.bf16.mxu0 0
    %2445 = vmatpush1.bf16.msra.mxu0 %v1856
    %2446 = vmatprep.subr.bf16.mxu0 0
    %2447 = vmatpush1.bf16.msra.mxu0 %v1857
    %2448 = vmatprep.subr.bf16.mxu0 0
    %2449 = vmatpush1.bf16.msra.mxu0 %v1858
    %2450 = vmatprep.subr.bf16.mxu0 0
    %2451 = vmatpush1.bf16.msra.mxu0 %v1859
    %2452 = vmatprep.subr.bf16.mxu0 0
    %2453 = vmatpush1.bf16.msra.mxu0 %v1860
    %2454 = vmatprep.subr.bf16.mxu0 0
    %2455 = vmatpush1.bf16.msra.mxu0 %v1861
    %2456 = vmatprep.subr.bf16.mxu0 0
    %2457 = vmatpush1.bf16.msra.mxu0 %v1862
    %2458 = vmatprep.subr.bf16.mxu0 0
    %2459 = vmatpush1.bf16.msra.mxu0 %v1863
    %2460 = vmatprep.subr.bf16.mxu0 0
    %2461 = vmatpush1.bf16.msra.mxu0 %v1864
    %2462 = vmatprep.subr.bf16.mxu0 0
    %2463 = vmatpush1.bf16.msra.mxu0 %v1865
    %2464 = vmatprep.subr.bf16.mxu0 0
    %2465 = vmatpush1.bf16.msra.mxu0 %v1866
    %2466 = vmatprep.subr.bf16.mxu0 0
    %2467 = vmatpush1.bf16.msra.mxu0 %v1867
    %2468 = vmatprep.mubr.bf16.mxu0 %v600
    %2469 = vmatmul.mubr.bf16.gmra.mrb[0].mxu0 %v598
    %v2470 = vpop.f32.mrb[0].mxu0
    %v2471 = vadd.f32 %v2431, %v2470
    %v2472 = vpop.f32.mrb[0].mxu0
    %v2473 = vpop.f32.mrb[0].mxu0
    %v2474 = vpop.f32.mrb[0].mxu0
    %2475 = vdwg.mxu0
    %2476 = vmatprep.subr.bf16.mxu0 0
    %2477 = vmatpush1.bf16.msra.mxu0 %v1868
    %2478 = vmatprep.subr.bf16.mxu0 0
    %2479 = vmatpush1.bf16.msra.mxu0 %v1869
    %2480 = vmatprep.subr.bf16.mxu0 0
    %2481 = vmatpush1.bf16.msra.mxu0 %v1870
    %2482 = vmatprep.subr.bf16.mxu0 0
    %2483 = vmatpush1.bf16.msra.mxu0 %v1871
    %2484 = vmatprep.subr.bf16.mxu0 0
    %2485 = vmatpush1.bf16.msra.mxu0 %v1872
    %2486 = vmatprep.subr.bf16.mxu0 0
    %2487 = vmatpush1.bf16.msra.mxu0 %v1873
    %2488 = vmatprep.subr.bf16.mxu0 0
    %2489 = vmatpush1.bf16.msra.mxu0 %v1874
    %2490 = vmatprep.subr.bf16.mxu0 0
    %2491 = vmatpush1.bf16.msra.mxu0 %v1875
    %2492 = vmatprep.subr.bf16.mxu0 0
    %2493 = vmatpush1.bf16.msra.mxu0 %v1876
    %2494 = vmatprep.subr.bf16.mxu0 0
    %2495 = vmatpush1.bf16.msra.mxu0 %v1877
    %2496 = vmatprep.subr.bf16.mxu0 0
    %2497 = vmatpush1.bf16.msra.mxu0 %v1878
    %2498 = vmatprep.subr.bf16.mxu0 0
    %2499 = vmatpush1.bf16.msra.mxu0 %v1879
    %2500 = vmatprep.subr.bf16.mxu0 0
    %2501 = vmatpush1.bf16.msra.mxu0 %v1880
    %2502 = vmatprep.subr.bf16.mxu0 0
    %2503 = vmatpush1.bf16.msra.mxu0 %v1881
    %2504 = vmatprep.subr.bf16.mxu0 0
    %2505 = vmatpush1.bf16.msra.mxu0 %v1882
    %2506 = vmatprep.subr.bf16.mxu0 0
    %2507 = vmatpush1.bf16.msra.mxu0 %v1883
    %2508 = vmatprep.mubr.bf16.mxu0 %v638
    %2509 = vmatmul.mubr.bf16.gmra.mrb[0].mxu0 %v624
    %v2510 = vpop.f32.mrb[0].mxu0
    %v2511 = vadd.f32 %v2471, %v2510
    %v2512 = vpop.f32.mrb[0].mxu0
    %v2513 = vpop.f32.mrb[0].mxu0
    %v2514 = vpop.f32.mrb[0].mxu0
    %2515 = vdwg.mxu0
    %2516 = vmatprep.subr.bf16.mxu0 0
    %2517 = vmatpush1.bf16.msra.mxu0 %v1884
    %2518 = vmatprep.subr.bf16.mxu0 0
    %2519 = vmatpush1.bf16.msra.mxu0 %v1885
    %2520 = vmatprep.subr.bf16.mxu0 0
    %2521 = vmatpush1.bf16.msra.mxu0 %v1886
    %2522 = vmatprep.subr.bf16.mxu0 0
    %2523 = vmatpush1.bf16.msra.mxu0 %v1887
    %2524 = vmatprep.subr.bf16.mxu0 0
    %2525 = vmatpush1.bf16.msra.mxu0 %v1888
    %2526 = vmatprep.subr.bf16.mxu0 0
    %2527 = vmatpush1.bf16.msra.mxu0 %v1889
    %2528 = vmatprep.subr.bf16.mxu0 0
    %2529 = vmatpush1.bf16.msra.mxu0 %v1890
    %2530 = vmatprep.subr.bf16.mxu0 0
    %2531 = vmatpush1.bf16.msra.mxu0 %v1891
    %2532 = vmatprep.subr.bf16.mxu0 0
    %2533 = vmatpush1.bf16.msra.mxu0 %v1892
    %2534 = vmatprep.subr.bf16.mxu0 0
    %2535 = vmatpush1.bf16.msra.mxu0 %v1893
    %2536 = vmatprep.subr.bf16.mxu0 0
    %2537 = vmatpush1.bf16.msra.mxu0 %v1894
    %2538 = vmatprep.subr.bf16.mxu0 0
    %2539 = vmatpush1.bf16.msra.mxu0 %v1895
    %2540 = vmatprep.subr.bf16.mxu0 0
    %2541 = vmatpush1.bf16.msra.mxu0 %v1896
    %2542 = vmatprep.subr.bf16.mxu0 0
    %2543 = vmatpush1.bf16.msra.mxu0 %v1897
    %2544 = vmatprep.subr.bf16.mxu0 0
    %2545 = vmatpush1.bf16.msra.mxu0 %v1898
    %2546 = vmatprep.subr.bf16.mxu0 0
    %2547 = vmatpush1.bf16.msra.mxu0 %v1899
    %2548 = vmatprep.mubr.bf16.mxu0 %v648
    %2549 = vmatmul.mubr.bf16.gmra.mrb[0].mxu0 %v646
    %v2550 = vpop.f32.mrb[0].mxu0
    %v2551 = vadd.f32 %v2511, %v2550
    %v2552 = vpop.f32.mrb[0].mxu0
    %v2553 = vpop.f32.mrb[0].mxu0
    %v2554 = vpop.f32.mrb[0].mxu0
    %2555 = vdwg.mxu0
    %2556 = vmatprep.subr.bf16.mxu0 0
    %2557 = vmatpush1.bf16.msra.mxu0 %v1900
    %2558 = vmatprep.subr.bf16.mxu0 0
    %2559 = vmatpush1.bf16.msra.mxu0 %v1901
    %2560 = vmatprep.subr.bf16.mxu0 0
    %2561 = vmatpush1.bf16.msra.mxu0 %v1902
    %2562 = vmatprep.subr.bf16.mxu0 0
    %2563 = vmatpush1.bf16.msra.mxu0 %v1903
    %2564 = vmatprep.subr.bf16.mxu0 0
    %2565 = vmatpush1.bf16.msra.mxu0 %v1904
    %2566 = vmatprep.subr.bf16.mxu0 0
    %2567 = vmatpush1.bf16.msra.mxu0 %v1905
    %2568 = vmatprep.subr.bf16.mxu0 0
    %2569 = vmatpush1.bf16.msra.mxu0 %v1906
    %2570 = vmatprep.subr.bf16.mxu0 0
    %2571 = vmatpush1.bf16.msra.mxu0 %v1907
    %2572 = vmatprep.subr.bf16.mxu0 0
    %2573 = vmatpush1.bf16.msra.mxu0 %v1908
    %2574 = vmatprep.subr.bf16.mxu0 0
    %2575 = vmatpush1.bf16.msra.mxu0 %v1909
    %2576 = vmatprep.subr.bf16.mxu0 0
    %2577 = vmatpush1.bf16.msra.mxu0 %v1910
    %2578 = vmatprep.subr.bf16.mxu0 0
    %2579 = vmatpush1.bf16.msra.mxu0 %v1911
    %2580 = vmatprep.subr.bf16.mxu0 0
    %2581 = vmatpush1.bf16.msra.mxu0 %v1912
    %2582 = vmatprep.subr.bf16.mxu0 0
    %2583 = vmatpush1.bf16.msra.mxu0 %v1913
    %2584 = vmatprep.subr.bf16.mxu0 0
    %2585 = vmatpush1.bf16.msra.mxu0 %v1914
    %2586 = vmatprep.subr.bf16.mxu0 0
    %2587 = vmatpush1.bf16.msra.mxu0 %v1915
    %2588 = vmatprep.mubr.bf16.mxu0 %v645
    %2589 = vmatmul.mubr.bf16.gmra.mrb[0].mxu0 %v631
    %v2590 = vpop.f32.mrb[0].mxu0
    %v2591 = vadd.f32 %v2551, %v2590
    %v2592 = vpop.f32.mrb[0].mxu0
    %v2593 = vpop.f32.mrb[0].mxu0
    %v2594 = vpop.f32.mrb[0].mxu0
    %2595 = vdwg.mxu0
    %2596 = vmatprep.subr.bf16.mxu0 0
    %2597 = vmatpush1.bf16.msra.mxu0 %v1916
    %2598 = vmatprep.subr.bf16.mxu0 0
    %2599 = vmatpush1.bf16.msra.mxu0 %v1917
    %2600 = vmatprep.subr.bf16.mxu0 0
    %2601 = vmatpush1.bf16.msra.mxu0 %v1918
    %2602 = vmatprep.subr.bf16.mxu0 0
    %2603 = vmatpush1.bf16.msra.mxu0 %v1919
    %2604 = vmatprep.subr.bf16.mxu0 0
    %2605 = vmatpush1.bf16.msra.mxu0 %v1920
    %2606 = vmatprep.subr.bf16.mxu0 0
    %2607 = vmatpush1.bf16.msra.mxu0 %v1921
    %2608 = vmatprep.subr.bf16.mxu0 0
    %2609 = vmatpush1.bf16.msra.mxu0 %v1922
    %2610 = vmatprep.subr.bf16.mxu0 0
    %2611 = vmatpush1.bf16.msra.mxu0 %v1923
    %2612 = vmatprep.subr.bf16.mxu0 0
    %2613 = vmatpush1.bf16.msra.mxu0 %v1924
    %2614 = vmatprep.subr.bf16.mxu0 0
    %2615 = vmatpush1.bf16.msra.mxu0 %v1925
    %2616 = vmatprep.subr.bf16.mxu0 0
    %2617 = vmatpush1.bf16.msra.mxu0 %v1926
    %2618 = vmatprep.subr.bf16.mxu0 0
    %2619 = vmatpush1.bf16.msra.mxu0 %v1927
    %2620 = vmatprep.subr.bf16.mxu0 0
    %2621 = vmatpush1.bf16.msra.mxu0 %v1928
    %2622 = vmatprep.subr.bf16.mxu0 0
    %2623 = vmatpush1.bf16.msra.mxu0 %v1929
    %2624 = vmatprep.subr.bf16.mxu0 0
    %2625 = vmatpush1.bf16.msra.mxu0 %v1930
    %2626 = vmatprep.subr.bf16.mxu0 0
    %2627 = vmatpush1.bf16.msra.mxu0 %v1931
    %2628 = vmatprep.mubr.bf16.mxu0 %v649
    %2629 = vmatmul.mubr.bf16.gmra.mrb[0].mxu0 %v647
    %v2630 = vpop.f32.mrb[0].mxu0
    %v2631 = vadd.f32 %v2591, %v2630
    %v2632 = vpop.f32.mrb[0].mxu0
    %v2633 = vpop.f32.mrb[0].mxu0
    %v2634 = vpop.f32.mrb[0].mxu0
    %2635 = vdwg.mxu0
    %2636 = vmatprep.subr.bf16.mxu0 0
    %2637 = vmatpush1.bf16.msra.mxu0 %v1932
    %2638 = vmatprep.subr.bf16.mxu0 0
    %2639 = vmatpush1.bf16.msra.mxu0 %v1933
    %2640 = vmatprep.subr.bf16.mxu0 0
    %2641 = vmatpush1.bf16.msra.mxu0 %v1934
    %2642 = vmatprep.subr.bf16.mxu0 0
    %2643 = vmatpush1.bf16.msra.mxu0 %v1935
    %2644 = vmatprep.subr.bf16.mxu0 0
    %2645 = vmatpush1.bf16.msra.mxu0 %v1936
    %2646 = vmatprep.subr.bf16.mxu0 0
    %2647 = vmatpush1.bf16.msra.mxu0 %v1937
    %2648 = vmatprep.subr.bf16.mxu0 0
    %2649 = vmatpush1.bf16.msra.mxu0 %v1938
    %2650 = vmatprep.subr.bf16.mxu0 0
    %2651 = vmatpush1.bf16.msra.mxu0 %v1939
    %2652 = vmatprep.subr.bf16.mxu0 0
    %2653 = vmatpush1.bf16.msra.mxu0 %v1940
    %2654 = vmatprep.subr.bf16.mxu0 0
    %2655 = vmatpush1.bf16.msra.mxu0 %v1941
    %2656 = vmatprep.subr.bf16.mxu0 0
    %2657 = vmatpush1.bf16.msra.mxu0 %v1942
    %2658 = vmatprep.subr.bf16.mxu0 0
    %2659 = vmatpush1.bf16.msra.mxu0 %v1943
    %2660 = vmatprep.subr.bf16.mxu0 0
    %2661 = vmatpush1.bf16.msra.mxu0 %v1944
    %2662 = vmatprep.subr.bf16.mxu0 0
    %2663 = vmatpush1.bf16.msra.mxu0 %v1945
    %2664 = vmatprep.subr.bf16.mxu0 0
    %2665 = vmatpush1.bf16.msra.mxu0 %v1946
    %2666 = vmatprep.subr.bf16.mxu0 0
    %2667 = vmatpush1.bf16.msra.mxu0 %v1947
    %2668 = vmatprep.mubr.bf16.mxu0 %v687
    %2669 = vmatmul.mubr.bf16.gmra.mrb[0].mxu0 %v673
    %v2670 = vpop.f32.mrb[0].mxu0
    %v2671 = vadd.f32 %v2631, %v2670
    %v2672 = vpop.f32.mrb[0].mxu0
    %v2673 = vpop.f32.mrb[0].mxu0
    %v2674 = vpop.f32.mrb[0].mxu0
    %2675 = vdwg.mxu0
    %2676 = vmatprep.subr.bf16.mxu0 0
    %2677 = vmatpush1.bf16.msra.mxu0 %v1948
    %2678 = vmatprep.subr.bf16.mxu0 0
    %2679 = vmatpush1.bf16.msra.mxu0 %v1949
    %2680 = vmatprep.subr.bf16.mxu0 0
    %2681 = vmatpush1.bf16.msra.mxu0 %v1950
    %2682 = vmatprep.subr.bf16.mxu0 0
    %2683 = vmatpush1.bf16.msra.mxu0 %v1951
    %2684 = vmatprep.subr.bf16.mxu0 0
    %2685 = vmatpush1.bf16.msra.mxu0 %v1952
    %2686 = vmatprep.subr.bf16.mxu0 0
    %2687 = vmatpush1.bf16.msra.mxu0 %v1953
    %2688 = vmatprep.subr.bf16.mxu0 0
    %2689 = vmatpush1.bf16.msra.mxu0 %v1954
    %2690 = vmatprep.subr.bf16.mxu0 0
    %2691 = vmatpush1.bf16.msra.mxu0 %v1955
    %2692 = vmatprep.subr.bf16.mxu0 0
    %2693 = vmatpush1.bf16.msra.mxu0 %v1956
    %2694 = vmatprep.subr.bf16.mxu0 0
    %2695 = vmatpush1.bf16.msra.mxu0 %v1957
    %2696 = vmatprep.subr.bf16.mxu0 0
    %2697 = vmatpush1.bf16.msra.mxu0 %v1958
    %2698 = vmatprep.subr.bf16.mxu0 0
    %2699 = vmatpush1.bf16.msra.mxu0 %v1959
    %2700 = vmatprep.subr.bf16.mxu0 0
    %2701 = vmatpush1.bf16.msra.mxu0 %v1960
    %2702 = vmatprep.subr.bf16.mxu0 0
    %2703 = vmatpush1.bf16.msra.mxu0 %v1961
    %2704 = vmatprep.subr.bf16.mxu0 0
    %2705 = vmatpush1.bf16.msra.mxu0 %v1962
    %2706 = vmatprep.subr.bf16.mxu0 0
    %2707 = vmatpush1.bf16.msra.mxu0 %v1963
    %2708 = vmatprep.mubr.bf16.mxu0 %v697
    %2709 = vmatmul.mubr.bf16.gmra.mrb[0].mxu0 %v695
    %v2710 = vpop.f32.mrb[0].mxu0
    %v2711 = vadd.f32 %v2671, %v2710
    %v2712 = vpop.f32.mrb[0].mxu0
    %v2713 = vpop.f32.mrb[0].mxu0
    %v2714 = vpop.f32.mrb[0].mxu0
    %2715 = vdwg.mxu0
    %2716 = vmatprep.subr.bf16.mxu0 0
    %2717 = vmatpush1.bf16.msra.mxu0 %v1964
    %2718 = vmatprep.subr.bf16.mxu0 0
    %2719 = vmatpush1.bf16.msra.mxu0 %v1965
    %2720 = vmatprep.subr.bf16.mxu0 0
    %2721 = vmatpush1.bf16.msra.mxu0 %v1966
    %2722 = vmatprep.subr.bf16.mxu0 0
    %2723 = vmatpush1.bf16.msra.mxu0 %v1967
    %2724 = vmatprep.subr.bf16.mxu0 0
    %2725 = vmatpush1.bf16.msra.mxu0 %v1968
    %2726 = vmatprep.subr.bf16.mxu0 0
    %2727 = vmatpush1.bf16.msra.mxu0 %v1969
    %2728 = vmatprep.subr.bf16.mxu0 0
    %2729 = vmatpush1.bf16.msra.mxu0 %v1970
    %2730 = vmatprep.subr.bf16.mxu0 0
    %2731 = vmatpush1.bf16.msra.mxu0 %v1971
    %2732 = vmatprep.subr.bf16.mxu0 0
    %2733 = vmatpush1.bf16.msra.mxu0 %v1972
    %2734 = vmatprep.subr.bf16.mxu0 0
    %2735 = vmatpush1.bf16.msra.mxu0 %v1973
    %2736 = vmatprep.subr.bf16.mxu0 0
    %2737 = vmatpush1.bf16.msra.mxu0 %v1974
    %2738 = vmatprep.subr.bf16.mxu0 0
    %2739 = vmatpush1.bf16.msra.mxu0 %v1975
    %2740 = vmatprep.subr.bf16.mxu0 0
    %2741 = vmatpush1.bf16.msra.mxu0 %v1976
    %2742 = vmatprep.subr.bf16.mxu0 0
    %2743 = vmatpush1.bf16.msra.mxu0 %v1977
    %2744 = vmatprep.subr.bf16.mxu0 0
    %2745 = vmatpush1.bf16.msra.mxu0 %v1978
    %2746 = vmatprep.subr.bf16.mxu0 0
    %2747 = vmatpush1.bf16.msra.mxu0 %v1979
    %2748 = vmatprep.mubr.bf16.mxu0 %v694
    %2749 = vmatmul.mubr.bf16.gmra.mrb[0].mxu0 %v680
    %v2750 = vpop.f32.mrb[0].mxu0
    %v2751 = vadd.f32 %v2711, %v2750
    %v2752 = vpop.f32.mrb[0].mxu0
    %v2753 = vpop.f32.mrb[0].mxu0
    %v2754 = vpop.f32.mrb[0].mxu0
    %2755 = vdwg.mxu0
    %2756 = vmatprep.subr.bf16.mxu0 0
    %2757 = vmatpush1.bf16.msra.mxu0 %v1980
    %2758 = vmatprep.subr.bf16.mxu0 0
    %2759 = vmatpush1.bf16.msra.mxu0 %v1981
    %2760 = vmatprep.subr.bf16.mxu0 0
    %2761 = vmatpush1.bf16.msra.mxu0 %v1982
    %2762 = vmatprep.subr.bf16.mxu0 0
    %2763 = vmatpush1.bf16.msra.mxu0 %v1983
    %2764 = vmatprep.subr.bf16.mxu0 0
    %2765 = vmatpush1.bf16.msra.mxu0 %v1984
    %2766 = vmatprep.subr.bf16.mxu0 0
    %2767 = vmatpush1.bf16.msra.mxu0 %v1985
    %2768 = vmatprep.subr.bf16.mxu0 0
    %2769 = vmatpush1.bf16.msra.mxu0 %v1986
    %2770 = vmatprep.subr.bf16.mxu0 0
    %2771 = vmatpush1.bf16.msra.mxu0 %v1987
    %2772 = vmatprep.subr.bf16.mxu0 0
    %2773 = vmatpush1.bf16.msra.mxu0 %v1988
    %2774 = vmatprep.subr.bf16.mxu0 0
    %2775 = vmatpush1.bf16.msra.mxu0 %v1989
    %2776 = vmatprep.subr.bf16.mxu0 0
    %2777 = vmatpush1.bf16.msra.mxu0 %v1990
    %2778 = vmatprep.subr.bf16.mxu0 0
    %2779 = vmatpush1.bf16.msra.mxu0 %v1991
    %2780 = vmatprep.subr.bf16.mxu0 0
    %2781 = vmatpush1.bf16.msra.mxu0 %v1992
    %2782 = vmatprep.subr.bf16.mxu0 0
    %2783 = vmatpush1.bf16.msra.mxu0 %v1993
    %2784 = vmatprep.subr.bf16.mxu0 0
    %2785 = vmatpush1.bf16.msra.mxu0 %v1994
    %2786 = vmatprep.subr.bf16.mxu0 0
    %2787 = vmatpush1.bf16.msra.mxu0 %v1995
    %2788 = vmatprep.mubr.bf16.mxu0 %v698
    %2789 = vmatmul.mubr.bf16.gmra.mrb[0].mxu0 %v696
    %v2790 = vpop.f32.mrb[0].mxu0
    %v2791 = vadd.f32 %v2751, %v2790
    %v2792 = vpop.f32.mrb[0].mxu0
    %v2793 = vpop.f32.mrb[0].mxu0
    %v2794 = vpop.f32.mrb[0].mxu0
    %2795 = vdwg.mxu0
    %2796 = vmatprep.subr.bf16.mxu0 0
    %2797 = vmatpush1.bf16.msra.mxu0 %v1996
    %2798 = vmatprep.subr.bf16.mxu0 0
    %2799 = vmatpush1.bf16.msra.mxu0 %v1997
    %2800 = vmatprep.subr.bf16.mxu0 0
    %2801 = vmatpush1.bf16.msra.mxu0 %v1998
    %2802 = vmatprep.subr.bf16.mxu0 0
    %2803 = vmatpush1.bf16.msra.mxu0 %v1999
    %2804 = vmatprep.subr.bf16.mxu0 0
    %2805 = vmatpush1.bf16.msra.mxu0 %v2000
    %2806 = vmatprep.subr.bf16.mxu0 0
    %2807 = vmatpush1.bf16.msra.mxu0 %v2001
    %2808 = vmatprep.subr.bf16.mxu0 0
    %2809 = vmatpush1.bf16.msra.mxu0 %v2002
    %2810 = vmatprep.subr.bf16.mxu0 0
    %2811 = vmatpush1.bf16.msra.mxu0 %v2003
    %2812 = vmatprep.subr.bf16.mxu0 0
    %2813 = vmatpush1.bf16.msra.mxu0 %v2004
    %2814 = vmatprep.subr.bf16.mxu0 0
    %2815 = vmatpush1.bf16.msra.mxu0 %v2005
    %2816 = vmatprep.subr.bf16.mxu0 0
    %2817 = vmatpush1.bf16.msra.mxu0 %v2006
    %2818 = vmatprep.subr.bf16.mxu0 0
    %2819 = vmatpush1.bf16.msra.mxu0 %v2007
    %2820 = vmatprep.subr.bf16.mxu0 0
    %2821 = vmatpush1.bf16.msra.mxu0 %v2008
    %2822 = vmatprep.subr.bf16.mxu0 0
    %2823 = vmatpush1.bf16.msra.mxu0 %v2009
    %2824 = vmatprep.subr.bf16.mxu0 0
    %2825 = vmatpush1.bf16.msra.mxu0 %v2010
    %2826 = vmatprep.subr.bf16.mxu0 0
    %2827 = vmatpush1.bf16.msra.mxu0 %v2011
    %2828 = vmatprep.mubr.bf16.mxu0 %v736
    %2829 = vmatmul.mubr.bf16.gmra.mrb[0].mxu0 %v722
    %v2830 = vpop.f32.mrb[0].mxu0
    %v2831 = vadd.f32 %v2791, %v2830
    %v2832 = vpop.f32.mrb[0].mxu0
    %v2833 = vpop.f32.mrb[0].mxu0
    %v2834 = vpop.f32.mrb[0].mxu0
    %2835 = vdwg.mxu0
    %2836 = vmatprep.subr.bf16.mxu0 0
    %2837 = vmatpush1.bf16.msra.mxu0 %v2012
    %2838 = vmatprep.subr.bf16.mxu0 0
    %2839 = vmatpush1.bf16.msra.mxu0 %v2013
    %2840 = vmatprep.subr.bf16.mxu0 0
    %2841 = vmatpush1.bf16.msra.mxu0 %v2014
    %2842 = vmatprep.subr.bf16.mxu0 0
    %2843 = vmatpush1.bf16.msra.mxu0 %v2015
    %2844 = vmatprep.subr.bf16.mxu0 0
    %2845 = vmatpush1.bf16.msra.mxu0 %v2016
    %2846 = vmatprep.subr.bf16.mxu0 0
    %2847 = vmatpush1.bf16.msra.mxu0 %v2017
    %2848 = vmatprep.subr.bf16.mxu0 0
    %2849 = vmatpush1.bf16.msra.mxu0 %v2018
    %2850 = vmatprep.subr.bf16.mxu0 0
    %2851 = vmatpush1.bf16.msra.mxu0 %v2019
    %2852 = vmatprep.subr.bf16.mxu0 0
    %2853 = vmatpush1.bf16.msra.mxu0 %v2020
    %2854 = vmatprep.subr.bf16.mxu0 0
    %2855 = vmatpush1.bf16.msra.mxu0 %v2021
    %2856 = vmatprep.subr.bf16.mxu0 0
    %2857 = vmatpush1.bf16.msra.mxu0 %v2022
    %2858 = vmatprep.subr.bf16.mxu0 0
    %2859 = vmatpush1.bf16.msra.mxu0 %v2023
    %2860 = vmatprep.subr.bf16.mxu0 0
    %2861 = vmatpush1.bf16.msra.mxu0 %v2024
    %2862 = vmatprep.subr.bf16.mxu0 0
    %2863 = vmatpush1.bf16.msra.mxu0 %v2025
    %2864 = vmatprep.subr.bf16.mxu0 0
    %2865 = vmatpush1.bf16.msra.mxu0 %v2026
    %2866 = vmatprep.subr.bf16.mxu0 0
    %2867 = vmatpush1.bf16.msra.mxu0 %v2027
    %2868 = vmatprep.mubr.bf16.mxu0 %v746
    %2869 = vmatmul.mubr.bf16.gmra.mrb[0].mxu0 %v744
    %v2870 = vpop.f32.mrb[0].mxu0
    %v2871 = vadd.f32 %v2831, %v2870
    %v2872 = vpop.f32.mrb[0].mxu0
    %v2873 = vpop.f32.mrb[0].mxu0
    %v2874 = vpop.f32.mrb[0].mxu0
    %2875 = vdwg.mxu0
    %2876 = vmatprep.subr.bf16.mxu0 0
    %2877 = vmatpush1.bf16.msra.mxu0 %v2028
    %2878 = vmatprep.subr.bf16.mxu0 0
    %2879 = vmatpush1.bf16.msra.mxu0 %v2029
    %2880 = vmatprep.subr.bf16.mxu0 0
    %2881 = vmatpush1.bf16.msra.mxu0 %v2030
    %2882 = vmatprep.subr.bf16.mxu0 0
    %2883 = vmatpush1.bf16.msra.mxu0 %v2031
    %2884 = vmatprep.subr.bf16.mxu0 0
    %2885 = vmatpush1.bf16.msra.mxu0 %v2032
    %2886 = vmatprep.subr.bf16.mxu0 0
    %2887 = vmatpush1.bf16.msra.mxu0 %v2033
    %2888 = vmatprep.subr.bf16.mxu0 0
    %2889 = vmatpush1.bf16.msra.mxu0 %v2034
    %2890 = vmatprep.subr.bf16.mxu0 0
    %2891 = vmatpush1.bf16.msra.mxu0 %v2035
    %2892 = vmatprep.subr.bf16.mxu0 0
    %2893 = vmatpush1.bf16.msra.mxu0 %v2036
    %2894 = vmatprep.subr.bf16.mxu0 0
    %2895 = vmatpush1.bf16.msra.mxu0 %v2037
    %2896 = vmatprep.subr.bf16.mxu0 0
    %2897 = vmatpush1.bf16.msra.mxu0 %v2038
    %2898 = vmatprep.subr.bf16.mxu0 0
    %2899 = vmatpush1.bf16.msra.mxu0 %v2039
    %2900 = vmatprep.subr.bf16.mxu0 0
    %2901 = vmatpush1.bf16.msra.mxu0 %v2040
    %2902 = vmatprep.subr.bf16.mxu0 0
    %2903 = vmatpush1.bf16.msra.mxu0 %v2041
    %2904 = vmatprep.subr.bf16.mxu0 0
    %2905 = vmatpush1.bf16.msra.mxu0 %v2042
    %2906 = vmatprep.subr.bf16.mxu0 0
    %2907 = vmatpush1.bf16.msra.mxu0 %v2043
    %2908 = vmatprep.mubr.bf16.mxu0 %v743
    %2909 = vmatmul.mubr.bf16.gmra.mrb[0].mxu0 %v729
    %v2910 = vpop.f32.mrb[0].mxu0
    %v2911 = vadd.f32 %v2871, %v2910
    %v2912 = vpop.f32.mrb[0].mxu0
    %v2913 = vpop.f32.mrb[0].mxu0
    %v2914 = vpop.f32.mrb[0].mxu0
    %2915 = vdwg.mxu0
    %2916 = vmatprep.subr.bf16.mxu0 0
    %2917 = vmatpush1.bf16.msra.mxu0 %v2044
    %2918 = vmatprep.subr.bf16.mxu0 0
    %2919 = vmatpush1.bf16.msra.mxu0 %v2045
    %2920 = vmatprep.subr.bf16.mxu0 0
    %2921 = vmatpush1.bf16.msra.mxu0 %v2046
    %2922 = vmatprep.subr.bf16.mxu0 0
    %2923 = vmatpush1.bf16.msra.mxu0 %v2047
    %2924 = vmatprep.subr.bf16.mxu0 0
    %2925 = vmatpush1.bf16.msra.mxu0 %v2048
    %2926 = vmatprep.subr.bf16.mxu0 0
    %2927 = vmatpush1.bf16.msra.mxu0 %v2049
    %2928 = vmatprep.subr.bf16.mxu0 0
    %2929 = vmatpush1.bf16.msra.mxu0 %v2050
    %2930 = vmatprep.subr.bf16.mxu0 0
    %2931 = vmatpush1.bf16.msra.mxu0 %v2051
    %2932 = vmatprep.subr.bf16.mxu0 0
    %2933 = vmatpush1.bf16.msra.mxu0 %v2052
    %2934 = vmatprep.subr.bf16.mxu0 0
    %2935 = vmatpush1.bf16.msra.mxu0 %v2053
    %2936 = vmatprep.subr.bf16.mxu0 0
    %2937 = vmatpush1.bf16.msra.mxu0 %v2054
    %2938 = vmatprep.subr.bf16.mxu0 0
    %2939 = vmatpush1.bf16.msra.mxu0 %v2055
    %2940 = vmatprep.subr.bf16.mxu0 0
    %2941 = vmatpush1.bf16.msra.mxu0 %v2056
    %2942 = vmatprep.subr.bf16.mxu0 0
    %2943 = vmatpush1.bf16.msra.mxu0 %v2057
    %2944 = vmatprep.subr.bf16.mxu0 0
    %2945 = vmatpush1.bf16.msra.mxu0 %v2058
    %2946 = vmatprep.subr.bf16.mxu0 0
    %2947 = vmatpush1.bf16.msra.mxu0 %v2059
    %2948 = vmatprep.mubr.bf16.mxu0 %v747
    %2949 = vmatmul.mubr.bf16.gmra.mrb[0].mxu0 %v745
    %v2950 = vpop.f32.mrb[0].mxu0
    %v2951 = vadd.f32 %v2911, %v2950
    %v2952 = vpop.f32.mrb[0].mxu0
    %v2953 = vpop.f32.mrb[0].mxu0
    %v2954 = vpop.f32.mrb[0].mxu0
    %2955 = vdwg.mxu0
    %vm2956 = vcmask 254976
    %2957 = vst.msk [vmem:[#allocation2] sm:$0x3] %vm2956, %v2951
    %v2958 = vmax.f32 %v2951, 0.0
    %v2959 = vpack.c.bf16 %v2958, %v2958
    %v2960 = vld [vmem:[%s3] sm:$0xf]
    %v2961 = vld [vmem:[%s3 + $0x4] sm:$0xf]
    %v2962 = vld [vmem:[%s3 + $0x8] sm:$0xf]
    %v2963 = vld [vmem:[%s3 + $0xc] sm:$0xf]
    %v2964 = vld [vmem:[%s4] sm:$0x1]
    %v2966 = vlaneseq
    %v2967 = vshrl.u32 %v2966, 7
    %v2968 = vsub.s32 0, %v2967
    %v2969 = vrot.slane %v2964, %v2968
    %v2975 = vunpack.c.l.b16 %v2960
    %v2976 = vunpack.c.l.b16 %v2961
    %v2977 = vunpack.c.l.b16 %v2962
    %v2978 = vunpack.c.l.b16 %v2963
    %v2979 = vpack.c.b16 %v2976, %v2975
    %v2980 = vpack.c.b16 %v2978, %v2977
    %vm2983 = vcmask 261120
    %v2985 = vsel %vm2983, %v2959, 0
    %2987 = vmatprep.subr.bf16.mxu0 0
    %2988 = vmatpush1.bf16.msra.mxu0 %v2979
    %2989 = vmatprep.subr.bf16.mxu0 0
    %2990 = vmatpush1.bf16.msra.mxu0 %v2980
    %2991 = vmatprep.subr.bf16.mxu0 0
    %2992 = vmatpush1.bf16.msra.mxu0 0
    %2993 = vmatprep.subr.bf16.mxu0 0
    %2994 = vmatpush1.bf16.msra.mxu0 0
    %2995 = vmatprep.subr.bf16.mxu0 0
    %2996 = vmatpush1.bf16.msra.mxu0 0
    %2997 = vmatprep.subr.bf16.mxu0 0
    %2998 = vmatpush1.bf16.msra.mxu0 0
    %2999 = vmatprep.subr.bf16.mxu0 0
    %3000 = vmatpush1.bf16.msra.mxu0 0
    %3001 = vmatprep.subr.bf16.mxu0 0
    %3002 = vmatpush1.bf16.msra.mxu0 0
    %3003 = vmatprep.subr.bf16.mxu0 0
    %3004 = vmatpush1.bf16.msra.mxu0 0
    %3005 = vmatprep.subr.bf16.mxu0 0
    %3006 = vmatpush1.bf16.msra.mxu0 0
    %3007 = vmatprep.subr.bf16.mxu0 0
    %3008 = vmatpush1.bf16.msra.mxu0 0
    %3009 = vmatprep.subr.bf16.mxu0 0
    %3010 = vmatpush1.bf16.msra.mxu0 0
    %3011 = vmatprep.subr.bf16.mxu0 0
    %3012 = vmatpush1.bf16.msra.mxu0 0
    %3013 = vmatprep.subr.bf16.mxu0 0
    %3014 = vmatpush1.bf16.msra.mxu0 0
    %3015 = vmatprep.subr.bf16.mxu0 0
    %3016 = vmatpush1.bf16.msra.mxu0 0
    %3017 = vmatprep.subr.bf16.mxu0 0
    %3018 = vmatpush1.bf16.msra.mxu0 0
    %3019 = vmatprep.mubr.bf16.mxu0 0
    %3020 = vmatmul.mubr.bf16.gmra.mrb[0].mxu0 %v2985
    %v3021 = vpop.f32.mrb[0].mxu0
    %v3022 = vadd.f32 %v2969, %v3021
    %v3023 = vpop.f32.mrb[0].mxu0
    %v3024 = vpop.f32.mrb[0].mxu0
    %v3025 = vpop.f32.mrb[0].mxu0
    %3026 = vdwg.mxu0
    %vm3027 = vcmask 74752
    %3028 = vst.msk [vmem:[#allocation4] sm:$0x3] %vm3027, %v3022
    // Predicated region
    $region22: #{server_model_forward.3} parent=1 // pred_check
      _
    $region23: #{server_model_forward.3} parent=1 // pred_check_branch
      %3030 = sbr.rel (0) target = $region25
    $region24: #{server_model_forward.3} parent=1 // pred_region
      %s3032 = ssub.s32 32, 32
      %3033 = vsyncadd [#allocation3], %s3032
      %s3035 = sshll.u32 [#allocation2], 4
      %s3036 = int_to_ptr.vmem [resolvable:$true] %s3035
      %3038 = dma.vmem_to_hbm [thread:$0]  %s3036, 32, %s5, [#allocation3]
    $region25: #{server_model_forward.3} parent=1 // pred_fallthru
      _
    // Predicated region
    $region26: #{server_model_forward.3} parent=1 // pred_check
      _
    $region27: #{server_model_forward.3} parent=1 // pred_check_branch
      %3040 = sbr.rel (0) target = $region29
    $region28: #{server_model_forward.3} parent=1 // pred_region
      %s3042 = ssub.s32 32, 32
      %3043 = vsyncadd [#allocation5], %s3042
      %s3045 = sshll.u32 [#allocation4], 4
      %s3046 = int_to_ptr.vmem [resolvable:$true] %s3045
      %3048 = dma.vmem_to_hbm [thread:$0]  %s3046, 32, %s6, [#allocation5]
    $region29: #{server_model_forward.3} parent=1 // pred_fallthru
      _
    // Predicated region
    $region30: #{server_model_forward.3} parent=1 // pred_check
      _
    $region31: #{server_model_forward.3} parent=1 // pred_check_branch
      %3050 = sbr.rel (0) target = $region33
    $region32: #{server_model_forward.3} parent=1 // pred_region
      %3051 = dma.done [#allocation3], 32
    $region33: #{server_model_forward.3} parent=1 // pred_fallthru
      _
    // Predicated region
    $region34: #{server_model_forward.3} parent=1 // pred_check
      _
    $region35: #{server_model_forward.3} parent=1 // pred_check_branch
      %3053 = sbr.rel (0) target = $region37
    $region36: #{server_model_forward.3} parent=1 // pred_region
      %3054 = dma.done [#allocation5], 32
    $region37: #{server_model_forward.3} parent=1 // pred_fallthru
      _
    %3055 = vsyncpa [#allocation3], 1
    %3056 = vsyncpa [#allocation5], 1

</llo_original>
